<compile_context>
chip_gen: v6e
topology: v6e:2x2x1
jax: 0.10.0
libtpu: 0.0.40
codegen_flags: <defaults>
</compile_context>

<pallas_src>
import functools

import jax
import jax.numpy as jnp
from jax import lax
from jax.experimental import pallas as pl
from jax.experimental.pallas import tpu as pltpu

EPS = 1e-5  # PyTorch BatchNorm2d default eps


def _round_up(x, m):
    return ((x + m - 1) // m) * m


# --------------------------- BN1 statistics kernel ---------------------------

def bn_stats_kernel(x_ref, s_ref, sq_ref):
    """Per-tile partial sum / sum-of-squares of a lane-folded (tm, k*C) block."""
    x = x_ref[...].astype(jnp.float32)
    s_ref[0] = jnp.sum(x, axis=0, keepdims=True)
    sq_ref[0] = jnp.sum(x * x, axis=0, keepdims=True)


def bn_moments(x2d, tile_rows=256):
    """Per-channel (mean, biased var) of an (M, C) f32 array.

    Small C is folded into the lane dim ((M, C) -> (M/k, k*C) with k*C >= 128)
    so the reduction is lane-dense; every grid step writes its own partial-sum
    row ("parallel" axis, megacore friendly) and the tiny fold-up runs in XLA.
    Zero-padded rows contribute nothing to the sums.
    """
    m, c = x2d.shape
    k = 1 if c >= 128 else max(1, -(-128 // c))
    rows = -(-m // k)
    tm = min(tile_rows, _round_up(rows, 8))
    rows_p = _round_up(rows, tm)
    m_pad = rows_p * k
    if m_pad != m:
        x2d = jnp.pad(x2d, ((0, m_pad - m), (0, 0)))
    xf = x2d.reshape(rows_p, k * c)
    ntiles = rows_p // tm
    s, sq = pl.pallas_call(
        bn_stats_kernel,
        out_shape=(jax.ShapeDtypeStruct((ntiles, 1, k * c), jnp.float32),
                   jax.ShapeDtypeStruct((ntiles, 1, k * c), jnp.float32)),
        grid=(ntiles,),
        in_specs=[pl.BlockSpec((tm, k * c), lambda i: (i, 0))],
        out_specs=(pl.BlockSpec((1, 1, k * c), lambda i: (i, 0, 0)),
                   pl.BlockSpec((1, 1, k * c), lambda i: (i, 0, 0))),
        compiler_params=pltpu.CompilerParams(
            dimension_semantics=("parallel",)),
    )(xf)
    s = s.reshape(ntiles * k, c).sum(axis=0)
    sq = sq.reshape(ntiles * k, c).sum(axis=0)
    mean = s / m
    # NOTE(numerics): single-pass E[x^2]-E[x]^2 (fine for unit-scale data).
    var = sq / m - mean * mean
    return mean, var


# ---------------------- fused BN + ReLU + pad + 3x3 conv ----------------------

def _bn_relu_conv3x3(x3d, scale_ref, shift_ref, w_ref, pad_ref, ho, wo, stride):
    """relu(x*scale+shift) -> zero-padded VMEM scratch -> 3x3 conv as one
    im2col matmul with K = 9*Cin (f32 accumulation).  Returns (ho*wo, Cout)."""
    h, w, cin = x3d.shape
    cd = w_ref.dtype
    # BN apply + ReLU in f32, activation kept in the MXU compute dtype.
    a = jnp.maximum(x3d.astype(jnp.float32) * scale_ref[...] + shift_ref[...],
                    0.0).astype(cd)
    # Zero halo re-written every step (megacore-safe), interior overwritten.
    pad_ref[...] = jnp.zeros_like(pad_ref)
    pad_ref[1:h + 1, 1:w + 1, :] = a
    cols = []
    for dh in range(3):
        for dw in range(3):
            if stride == 1:
                tap = pad_ref[dh:dh + ho, dw:dw + wo, :]
            else:
                tap = pad_ref[pl.ds(dh, ho, stride=stride),
                              pl.ds(dw, wo, stride=stride), :]
            cols.append(tap.reshape(ho * wo, cin))
    patches = jnp.concatenate(cols, axis=-1)        # in-VMEM im2col (ho*wo, 9*Cin)
    return jnp.dot(patches, w_ref[...], preferred_element_type=jnp.float32)


def conv1_kernel(x_ref, scale_ref, shift_ref, w_ref,
                 c1_ref, s_ref, sq_ref, pad_ref, *, stride):
    ho, wo = c1_ref.shape[1], c1_ref.shape[2]
    acc = _bn_relu_conv3x3(x_ref[0], scale_ref, shift_ref, w_ref, pad_ref,
                           ho, wo, stride)
    # BN2 per-image partial statistics (f32), fused into the conv epilogue.
    s_ref[0] = jnp.sum(acc, axis=0, keepdims=True)
    sq_ref[0] = jnp.sum(acc * acc, axis=0, keepdims=True)
    c1_ref[0] = acc.reshape(ho, wo, -1).astype(c1_ref.dtype)


def conv2_id_kernel(c1_ref, scale_ref, shift_ref, w_ref, r_ref, o_ref, pad_ref):
    ho, wo = o_ref.shape[1], o_ref.shape[2]
    acc = _bn_relu_conv3x3(c1_ref[0], scale_ref, shift_ref, w_ref, pad_ref,
                           ho, wo, 1)
    o_ref[0] = (acc.reshape(ho, wo, -1)
                + r_ref[0].astype(jnp.float32)).astype(o_ref.dtype)


def conv2_proj_kernel(c1_ref, scale_ref, shift_ref, w_ref, xs_ref, wsc_ref,
                      o_ref, pad_ref):
    ho, wo = o_ref.shape[1], o_ref.shape[2]
    acc = _bn_relu_conv3x3(c1_ref[0], scale_ref, shift_ref, w_ref, pad_ref,
                           ho, wo, 1)
    # 1x1 projection shortcut fused in: (ho*wo, Cin) @ (Cin, Cout), f32 acc.
    xs2d = xs_ref[0].reshape(ho * wo, -1).astype(wsc_ref.dtype)
    sc = jnp.dot(xs2d, wsc_ref[...], preferred_element_type=jnp.float32)
    o_ref[0] = (acc + sc).reshape(ho, wo, -1).astype(o_ref.dtype)


# ------------------------------ kernel wrappers -------------------------------

def conv1_bn_fused(x, scale1, shift1, wk1, planes, stride, compute_dtype):
    """bn1-apply + relu + pad + strided 3x3 conv + BN2 partial stats."""
    n, h, w, cin = x.shape
    ho = (h - 1) // stride + 1
    wo = (w - 1) // stride + 1
    c1, s, sq = pl.pallas_call(
        functools.partial(conv1_kernel, stride=stride),
        out_shape=(jax.ShapeDtypeStruct((n, ho, wo, planes), compute_dtype),
                   jax.ShapeDtypeStruct((n, 1, planes), jnp.float32),
                   jax.ShapeDtypeStruct((n, 1, planes), jnp.float32)),
        grid=(n,),
        in_specs=[pl.BlockSpec((1, h, w, cin), lambda i: (i, 0, 0, 0)),
                  pl.BlockSpec((1, cin), lambda i: (0, 0)),
                  pl.BlockSpec((1, cin), lambda i: (0, 0)),
                  pl.BlockSpec((9 * cin, planes), lambda i: (0, 0))],
        out_specs=(pl.BlockSpec((1, ho, wo, planes), lambda i: (i, 0, 0, 0)),
                   pl.BlockSpec((1, 1, planes), lambda i: (i, 0, 0)),
                   pl.BlockSpec((1, 1, planes), lambda i: (i, 0, 0))),
        scratch_shapes=[pltpu.VMEM((h + 2, w + 2, cin), compute_dtype)],
        compiler_params=pltpu.CompilerParams(
            dimension_semantics=("parallel",)),
    )(x, scale1[None, :], shift1[None, :], wk1)
    # Fold the tiny (N, planes) per-image partial stats in XLA.
    count = n * ho * wo
    mean2 = s[:, 0, :].sum(axis=0) / count
    var2 = sq[:, 0, :].sum(axis=0) / count - mean2 * mean2
    return c1, mean2, var2


def conv2_res_fused(c1, scale2, shift2, wk2, residual, wsc, compute_dtype):
    """bn2-apply + relu + pad + 3x3 conv + residual add.  The residual is the
    identity (wsc is None) or a 1x1 projection computed inside the kernel."""
    n, ho, wo, planes = c1.shape
    cin_r = residual.shape[-1]
    base_specs = [pl.BlockSpec((1, ho, wo, planes), lambda i: (i, 0, 0, 0)),
                  pl.BlockSpec((1, planes), lambda i: (0, 0)),
                  pl.BlockSpec((1, planes), lambda i: (0, 0)),
                  pl.BlockSpec((9 * planes, planes), lambda i: (0, 0))]
    res_spec = pl.BlockSpec((1, ho, wo, cin_r), lambda i: (i, 0, 0, 0))
    out_spec = pl.BlockSpec((1, ho, wo, planes), lambda i: (i, 0, 0, 0))
    out_shape = jax.ShapeDtypeStruct((n, ho, wo, planes), jnp.float32)
    scratch = [pltpu.VMEM((ho + 2, wo + 2, planes), compute_dtype)]
    cparams = pltpu.CompilerParams(dimension_semantics=("parallel",))
    if wsc is None:
        return pl.pallas_call(
            conv2_id_kernel, out_shape=out_shape, grid=(n,),
            in_specs=base_specs + [res_spec], out_specs=out_spec,
            scratch_shapes=scratch, compiler_params=cparams,
        )(c1, scale2[None, :], shift2[None, :], wk2, residual)
    return pl.pallas_call(
        conv2_proj_kernel, out_shape=out_shape, grid=(n,),
        in_specs=base_specs + [res_spec,
                               pl.BlockSpec((cin_r, planes), lambda i: (0, 0))],
        out_specs=out_spec, scratch_shapes=scratch, compiler_params=cparams,
    )(c1, scale2[None, :], shift2[None, :], wk2, residual, wsc)


# --------------------------------- the block ----------------------------------

@functools.partial(jax.jit, static_argnames=("stride", "compute_dtype"))
def preact_block(x_nchw, params, stride=1, compute_dtype=jnp.bfloat16):
    x = jnp.transpose(x_nchw, (0, 2, 3, 1)).astype(jnp.float32)   # NHWC
    n, h, w, cin = x.shape
    planes = params["conv1_w"].shape[0]

    # Weights (O,I,kh,kw) -> (kh,kw,I,O) -> (9*I, O), matching the in-kernel
    # im2col tap order, cast to the MXU compute dtype.
    wk1 = jnp.transpose(params["conv1_w"], (2, 3, 1, 0)).reshape(9 * cin, planes)
    wk1 = wk1.astype(compute_dtype)
    wk2 = jnp.transpose(params["conv2_w"], (2, 3, 1, 0)).reshape(9 * planes, planes)
    wk2 = wk2.astype(compute_dtype)

    # BN1 (training-mode batch statistics) — lane-folded Pallas reduction.
    mean1, var1 = bn_moments(x.reshape(n * h * w, cin))
    scale1 = params["bn1_gamma"] / jnp.sqrt(var1 + EPS)
    shift1 = params["bn1_beta"] - mean1 * scale1

    # conv1: fused bn1-apply + relu + pad + 3x3 (stride s) conv + BN2 stats.
    c1, mean2, var2 = conv1_bn_fused(x, scale1, shift1, wk1, planes, stride,
                                     compute_dtype)
    scale2 = params["bn2_gamma"] / jnp.sqrt(var2 + EPS)
    shift2 = params["bn2_beta"] - mean2 * scale2

    # conv2: fused bn2-apply + relu + pad + 3x3 conv + residual add; the 1x1
    # projection shortcut (if any) is computed inside the same kernel.
    if stride != 1 or cin != planes:
        xs = x[:, ::stride, ::stride, :] if stride != 1 else x
        w_sc = jnp.transpose(params["sc_w"].reshape(planes, cin), (1, 0))
        out = conv2_res_fused(c1, scale2, shift2, wk2, xs,
                              w_sc.astype(compute_dtype), compute_dtype)
    else:
        out = conv2_res_fused(c1, scale2, shift2, wk2, x, None, compute_dtype)

    return jnp.transpose(out, (0, 3, 1, 2))         # NCHW


# ----------------------------- pure-JAX reference -----------------------------

def _bn_relu_ref(x, g, b):
    mean = x.mean(axis=(0, 2, 3), keepdims=True)
    var = jnp.square(x - mean).mean(axis=(0, 2, 3), keepdims=True)
    y = (x - mean) / jnp.sqrt(var + EPS) * g.reshape(1, -1, 1, 1) + b.reshape(1, -1, 1, 1)
    return jnp.maximum(y, 0.0)


def _conv_ref(x, w, stride, pad):
    return lax.conv_general_dilated(
        x, w, (stride, stride), [(pad, pad), (pad, pad)],
        dimension_numbers=("NCHW", "OIHW", "NCHW"))


def preact_block_ref(x, params, stride=1):
    out = _bn_relu_ref(x, params["bn1_gamma"], params["bn1_beta"])
    if "sc_w" in params:
        shortcut = _conv_ref(x, params["sc_w"], stride, 0)
    else:
        shortcut = x
    out = _conv_ref(out, params["conv1_w"], stride, 1)
    out = _conv_ref(_bn_relu_ref(out, params["bn2_gamma"], params["bn2_beta"]),
                    params["conv2_w"], 1, 1)
    return out + shortcut


# ------------------------------------ main ------------------------------------

if __name__ == "__main__":
    N, IN_PLANES, PLANES, H, W = 2, 4, 8, 16, 16

    key = jax.random.PRNGKey(0)
    ks = jax.random.split(key, 12)
    params = {
        "bn1_gamma": jax.random.uniform(ks[0], (IN_PLANES,), jnp.float32, 0.5, 1.5),
        "bn1_beta": jax.random.normal(ks[1], (IN_PLANES,), jnp.float32) * 0.1,
        "conv1_w": jax.random.normal(ks[2], (PLANES, IN_PLANES, 3, 3), jnp.float32) * 0.1,
        "bn2_gamma": jax.random.uniform(ks[3], (PLANES,), jnp.float32, 0.5, 1.5),
        "bn2_beta": jax.random.normal(ks[4], (PLANES,), jnp.float32) * 0.1,
        "conv2_w": jax.random.normal(ks[5], (PLANES, PLANES, 3, 3), jnp.float32) * 0.1,
        "sc_w": jax.random.normal(ks[6], (PLANES, IN_PLANES, 1, 1), jnp.float32) * 0.1,
    }
    x = jax.random.normal(ks[7], (N, IN_PLANES, H, W), jnp.float32)

    # 1) stride=1, channel-expanding (fused 1x1-conv shortcut), f32.
    out = jax.block_until_ready(preact_block(x, params, stride=1,
                                             compute_dtype=jnp.float32))
    ref = jax.block_until_ready(preact_block_ref(x, params, stride=1))
    assert out.shape == ref.shape, (out.shape, ref.shape)
    assert jnp.allclose(out, ref, atol=1e-4, rtol=1e-4), \
        float(jnp.max(jnp.abs(out - ref)))

    # 2) stride=2 — in-kernel strided 9-tap conv (no HBM im2col), f32.
    out2 = jax.block_until_ready(preact_block(x, params, stride=2,
                                              compute_dtype=jnp.float32))
    ref2 = jax.block_until_ready(preact_block_ref(x, params, stride=2))
    assert out2.shape == ref2.shape, (out2.shape, ref2.shape)
    assert jnp.allclose(out2, ref2, atol=1e-4, rtol=1e-4), \
        float(jnp.max(jnp.abs(out2 - ref2)))

    # 3) bf16 MXU operands (f32 accumulation, f32 BN math) — looser tolerance.
    out3 = jax.block_until_ready(preact_block(x, params, stride=1,
                                              compute_dtype=jnp.bfloat16))
    assert jnp.allclose(out3, ref, atol=5e-2, rtol=5e-2), \
        float(jnp.max(jnp.abs(out3 - ref)))

    # 4) identity-shortcut path (in_planes == planes, stride 1), f32.
    params_id = {
        "bn1_gamma": jax.random.uniform(ks[8], (PLANES,), jnp.float32, 0.5, 1.5),
        "bn1_beta": jax.random.normal(ks[9], (PLANES,), jnp.float32) * 0.1,
        "conv1_w": jax.random.normal(ks[10], (PLANES, PLANES, 3, 3), jnp.float32) * 0.1,
        "bn2_gamma": params["bn2_gamma"],
        "bn2_beta": params["bn2_beta"],
        "conv2_w": params["conv2_w"],
    }
    x_id = jax.random.normal(ks[11], (N, PLANES, H, W), jnp.float32)
    out4 = jax.block_until_ready(preact_block(x_id, params_id, stride=1,
                                              compute_dtype=jnp.float32))
    ref4 = jax.block_until_ready(preact_block_ref(x_id, params_id, stride=1))
    assert out4.shape == ref4.shape, (out4.shape, ref4.shape)
    assert jnp.allclose(out4, ref4, atol=1e-4, rtol=1e-4), \
        float(jnp.max(jnp.abs(out4 - ref4)))

    print("KERNEL_OK")
</pallas_src>

<mosaic_0001>
module attributes {stable_mosaic.version = 11 : i64} {
  func.func @conv1_kernel(%arg0: i32, %arg1: memref<1x16x16x4xf32, #tpu.memory_space<vmem>>, %arg2: memref<1x4xf32, #tpu.memory_space<vmem>>, %arg3: memref<1x4xf32, #tpu.memory_space<vmem>>, %arg4: memref<36x8xf32, #tpu.memory_space<vmem>>, %arg5: memref<1x16x16x8xf32, #tpu.memory_space<vmem>>, %arg6: memref<1x1x8xf32, #tpu.memory_space<vmem>>, %arg7: memref<1x1x8xf32, #tpu.memory_space<vmem>>, %arg8: memref<18x18x4xf32, #tpu.memory_space<vmem>>) attributes {dimension_semantics = [#tpu.dimension_semantics<parallel>], iteration_bounds = array<i64: 2>, scalar_prefetch = 0 : i64, scratch_operands = 1 : i64, tpu.core_type = #tpu.core_type<tc>, window_params = [{transform_indices = @transform_0, window_bounds = array<i64: 1, 16, 16, 4>}, {pipeline_mode = #tpu.pipeline_mode<synchronous>, transform_indices = @transform_1, window_bounds = array<i64: 1, 4>}, {pipeline_mode = #tpu.pipeline_mode<synchronous>, transform_indices = @transform_2, window_bounds = array<i64: 1, 4>}, {pipeline_mode = #tpu.pipeline_mode<synchronous>, transform_indices = @transform_3, window_bounds = array<i64: 36, 8>}, {transform_indices = @transform_4, window_bounds = array<i64: 1, 16, 16, 8>}, {transform_indices = @transform_5, window_bounds = array<i64: 1, 1, 8>}, {transform_indices = @transform_6, window_bounds = array<i64: 1, 1, 8>}]} {
    %c0 = arith.constant 0 : index
    %c0_0 = arith.constant 0 : index
    %c0_1 = arith.constant 0 : index
    %c0_2 = arith.constant 0 : index
    %0 = vector.load %arg1[%c0, %c0_0, %c0_1, %c0_2] : memref<1x16x16x4xf32, #tpu.memory_space<vmem>>, vector<1x16x16x4xf32>
    %1 = vector.shape_cast %0 : vector<1x16x16x4xf32> to vector<16x16x4xf32>
    %c0_3 = arith.constant 0 : index
    %c0_4 = arith.constant 0 : index
    %2 = vector.load %arg2[%c0_3, %c0_4] : memref<1x4xf32, #tpu.memory_space<vmem>>, vector<1x4xf32>
    %3 = vector.shape_cast %2 : vector<1x4xf32> to vector<1x1x4xf32>
    %4 = vector.broadcast %3 : vector<1x1x4xf32> to vector<16x16x4xf32>
    %5 = arith.mulf %1, %4 : vector<16x16x4xf32>
    %c0_5 = arith.constant 0 : index
    %c0_6 = arith.constant 0 : index
    %6 = vector.load %arg3[%c0_5, %c0_6] : memref<1x4xf32, #tpu.memory_space<vmem>>, vector<1x4xf32>
    %7 = vector.shape_cast %6 : vector<1x4xf32> to vector<1x1x4xf32>
    %8 = vector.broadcast %7 : vector<1x1x4xf32> to vector<16x16x4xf32>
    %9 = arith.addf %5, %8 : vector<16x16x4xf32>
    %cst = arith.constant 0.000000e+00 : f32
    %10 = vector.broadcast %cst : f32 to vector<16x16x4xf32>
    %11 = arith.maximumf %9, %10 : vector<16x16x4xf32>
    %cst_7 = arith.constant 0.000000e+00 : f32
    %12 = vector.broadcast %cst_7 : f32 to vector<18x18x4xf32>
    %c0_8 = arith.constant 0 : index
    %c0_9 = arith.constant 0 : index
    %c0_10 = arith.constant 0 : index
    %13 = vector.load %arg8[%c0_8, %c0_9, %c0_10] : memref<18x18x4xf32, #tpu.memory_space<vmem>>, vector<18x18x4xf32>
    tpu.vector_store %arg8[%c0_8, %c0_9, %c0_10], %12 {strides = array<i32>} : memref<18x18x4xf32, #tpu.memory_space<vmem>>, vector<18x18x4xf32>,
    %c1 = arith.constant 1 : index
    %c1_11 = arith.constant 1 : index
    %c0_12 = arith.constant 0 : index
    %14 = vector.load %arg8[%c1, %c1_11, %c0_12] : memref<18x18x4xf32, #tpu.memory_space<vmem>>, vector<16x16x4xf32>
    tpu.vector_store %arg8[%c1, %c1_11, %c0_12], %11 {strides = array<i32>} : memref<18x18x4xf32, #tpu.memory_space<vmem>>, vector<16x16x4xf32>,
    %c0_13 = arith.constant 0 : index
    %c0_14 = arith.constant 0 : index
    %c0_15 = arith.constant 0 : index
    %15 = vector.load %arg8[%c0_13, %c0_14, %c0_15] : memref<18x18x4xf32, #tpu.memory_space<vmem>>, vector<16x16x4xf32>
    %16 = vector.shape_cast %15 : vector<16x16x4xf32> to vector<256x4xf32>
    %c0_16 = arith.constant 0 : index
    %c1_17 = arith.constant 1 : index
    %c0_18 = arith.constant 0 : index
    %17 = vector.load %arg8[%c0_16, %c1_17, %c0_18] : memref<18x18x4xf32, #tpu.memory_space<vmem>>, vector<16x16x4xf32>
    %18 = vector.shape_cast %17 : vector<16x16x4xf32> to vector<256x4xf32>
    %c0_19 = arith.constant 0 : index
    %c2 = arith.constant 2 : index
    %c0_20 = arith.constant 0 : index
    %19 = vector.load %arg8[%c0_19, %c2, %c0_20] : memref<18x18x4xf32, #tpu.memory_space<vmem>>, vector<16x16x4xf32>
    %20 = vector.shape_cast %19 : vector<16x16x4xf32> to vector<256x4xf32>
    %c1_21 = arith.constant 1 : index
    %c0_22 = arith.constant 0 : index
    %c0_23 = arith.constant 0 : index
    %21 = vector.load %arg8[%c1_21, %c0_22, %c0_23] : memref<18x18x4xf32, #tpu.memory_space<vmem>>, vector<16x16x4xf32>
    %22 = vector.shape_cast %21 : vector<16x16x4xf32> to vector<256x4xf32>
    %c1_24 = arith.constant 1 : index
    %c1_25 = arith.constant 1 : index
    %c0_26 = arith.constant 0 : index
    %23 = vector.load %arg8[%c1_24, %c1_25, %c0_26] : memref<18x18x4xf32, #tpu.memory_space<vmem>>, vector<16x16x4xf32>
    %24 = vector.shape_cast %23 : vector<16x16x4xf32> to vector<256x4xf32>
    %c1_27 = arith.constant 1 : index
    %c2_28 = arith.constant 2 : index
    %c0_29 = arith.constant 0 : index
    %25 = vector.load %arg8[%c1_27, %c2_28, %c0_29] : memref<18x18x4xf32, #tpu.memory_space<vmem>>, vector<16x16x4xf32>
    %26 = vector.shape_cast %25 : vector<16x16x4xf32> to vector<256x4xf32>
    %c2_30 = arith.constant 2 : index
    %c0_31 = arith.constant 0 : index
    %c0_32 = arith.constant 0 : index
    %27 = vector.load %arg8[%c2_30, %c0_31, %c0_32] : memref<18x18x4xf32, #tpu.memory_space<vmem>>, vector<16x16x4xf32>
    %28 = vector.shape_cast %27 : vector<16x16x4xf32> to vector<256x4xf32>
    %c2_33 = arith.constant 2 : index
    %c1_34 = arith.constant 1 : index
    %c0_35 = arith.constant 0 : index
    %29 = vector.load %arg8[%c2_33, %c1_34, %c0_35] : memref<18x18x4xf32, #tpu.memory_space<vmem>>, vector<16x16x4xf32>
    %30 = vector.shape_cast %29 : vector<16x16x4xf32> to vector<256x4xf32>
    %c2_36 = arith.constant 2 : index
    %c2_37 = arith.constant 2 : index
    %c0_38 = arith.constant 0 : index
    %31 = vector.load %arg8[%c2_36, %c2_37, %c0_38] : memref<18x18x4xf32, #tpu.memory_space<vmem>>, vector<16x16x4xf32>
    %32 = vector.shape_cast %31 : vector<16x16x4xf32> to vector<256x4xf32>
    %33 = tpu.concatenate %16, %18, %20, %22, %24, %26, %28, %30, %32 in 1 : vector<256x4xf32>, vector<256x4xf32>, vector<256x4xf32>, vector<256x4xf32>, vector<256x4xf32>, vector<256x4xf32>, vector<256x4xf32>, vector<256x4xf32>, vector<256x4xf32> -> vector<256x36xf32>
    %c0_39 = arith.constant 0 : index
    %c0_40 = arith.constant 0 : index
    %34 = vector.load %arg4[%c0_39, %c0_40] : memref<36x8xf32, #tpu.memory_space<vmem>>, vector<36x8xf32>
    %cst_41 = arith.constant dense<0.000000e+00> : vector<256x8xf32>
    %35 = tpu.matmul %33, %34, %cst_41 {dimension_numbers = #tpu.dot_dimension_numbers<[1], [0], [0], [1], [0, 0, 1, 1], [], []>} : vector<256x36xf32>, vector<36x8xf32>, vector<256x8xf32> -> vector<256x8xf32>
    %cst_42 = arith.constant dense<0.000000e+00> : vector<8xf32>
    %36 = vector.multi_reduction <add>, %35, %cst_42 [0] : vector<256x8xf32> to vector<8xf32>
    %37 = vector.shape_cast %36 : vector<8xf32> to vector<1x8xf32>
    %c0_43 = arith.constant 0 : index
    %c0_44 = arith.constant 0 : index
    %c0_45 = arith.constant 0 : index
    %38 = vector.load %arg6[%c0_43, %c0_44, %c0_45] : memref<1x1x8xf32, #tpu.memory_space<vmem>>, vector<1x1x8xf32>
    %39 = vector.shape_cast %38 : vector<1x1x8xf32> to vector<1x8xf32>
    %40 = vector.shape_cast %37 : vector<1x8xf32> to vector<1x1x8xf32>
    tpu.vector_store %arg6[%c0_43, %c0_44, %c0_45], %40 {strides = array<i32>} : memref<1x1x8xf32, #tpu.memory_space<vmem>>, vector<1x1x8xf32>,
    %41 = arith.mulf %35, %35 : vector<256x8xf32>
    %cst_46 = arith.constant dense<0.000000e+00> : vector<8xf32>
    %42 = vector.multi_reduction <add>, %41, %cst_46 [0] : vector<256x8xf32> to vector<8xf32>
    %43 = vector.shape_cast %42 : vector<8xf32> to vector<1x8xf32>
    %c0_47 = arith.constant 0 : index
    %c0_48 = arith.constant 0 : index
    %c0_49 = arith.constant 0 : index
    %44 = vector.load %arg7[%c0_47, %c0_48, %c0_49] : memref<1x1x8xf32, #tpu.memory_space<vmem>>, vector<1x1x8xf32>
    %45 = vector.shape_cast %44 : vector<1x1x8xf32> to vector<1x8xf32>
    %46 = vector.shape_cast %43 : vector<1x8xf32> to vector<1x1x8xf32>
    tpu.vector_store %arg7[%c0_47, %c0_48, %c0_49], %46 {strides = array<i32>} : memref<1x1x8xf32, #tpu.memory_space<vmem>>, vector<1x1x8xf32>,
    %47 = vector.shape_cast %35 : vector<256x8xf32> to vector<16x16x8xf32>
    %c0_50 = arith.constant 0 : index
    %c0_51 = arith.constant 0 : index
    %c0_52 = arith.constant 0 : index
    %c0_53 = arith.constant 0 : index
    %48 = vector.load %arg5[%c0_50, %c0_51, %c0_52, %c0_53] : memref<1x16x16x8xf32, #tpu.memory_space<vmem>>, vector<1x16x16x8xf32>
    %49 = vector.shape_cast %48 : vector<1x16x16x8xf32> to vector<16x16x8xf32>
    %50 = vector.shape_cast %47 : vector<16x16x8xf32> to vector<1x16x16x8xf32>
    tpu.vector_store %arg5[%c0_50, %c0_51, %c0_52, %c0_53], %50 {strides = array<i32>} : memref<1x16x16x8xf32, #tpu.memory_space<vmem>>, vector<1x16x16x8xf32>,
    return
  }
  func.func @transform_0(%arg0: i32) -> (i32, i32, i32, i32) {
    %c0_i32 = arith.constant 0 : i32
    %c0_i32_0 = arith.constant 0 : i32
    %c0_i32_1 = arith.constant 0 : i32
    %c0_i32_2 = arith.constant 0 : i32
    return %arg0, %c0_i32, %c0_i32_0, %c0_i32_1 : i32, i32, i32, i32
  }
  func.func @transform_1(%arg0: i32) -> (i32, i32) {
    %c0_i32 = arith.constant 0 : i32
    %c0_i32_0 = arith.constant 0 : i32
    %c0_i32_1 = arith.constant 0 : i32
    return %c0_i32, %c0_i32_0 : i32, i32
  }
  func.func @transform_2(%arg0: i32) -> (i32, i32) {
    %c0_i32 = arith.constant 0 : i32
    %c0_i32_0 = arith.constant 0 : i32
    %c0_i32_1 = arith.constant 0 : i32
    return %c0_i32, %c0_i32_0 : i32, i32
  }
  func.func @transform_3(%arg0: i32) -> (i32, i32) {
    %c0_i32 = arith.constant 0 : i32
    %c0_i32_0 = arith.constant 0 : i32
    %c0_i32_1 = arith.constant 0 : i32
    return %c0_i32, %c0_i32_0 : i32, i32
  }
  func.func @transform_4(%arg0: i32) -> (i32, i32, i32, i32) {
    %c0_i32 = arith.constant 0 : i32
    %c0_i32_0 = arith.constant 0 : i32
    %c0_i32_1 = arith.constant 0 : i32
    %c0_i32_2 = arith.constant 0 : i32
    return %arg0, %c0_i32, %c0_i32_0, %c0_i32_1 : i32, i32, i32, i32
  }
  func.func @transform_5(%arg0: i32) -> (i32, i32, i32) {
    %c0_i32 = arith.constant 0 : i32
    %c0_i32_0 = arith.constant 0 : i32
    %c0_i32_1 = arith.constant 0 : i32
    return %arg0, %c0_i32, %c0_i32_0 : i32, i32, i32
  }
  func.func @transform_6(%arg0: i32) -> (i32, i32, i32) {
    %c0_i32 = arith.constant 0 : i32
    %c0_i32_0 = arith.constant 0 : i32
    %c0_i32_1 = arith.constant 0 : i32
    return %arg0, %c0_i32, %c0_i32_0 : i32, i32, i32
  }
}

module attributes {stable_mosaic.version = 11 : i64} {
  func.func @bn_stats_kernel(%arg0: i32, %arg1: memref<16x128xf32, #tpu.memory_space<vmem>>, %arg2: memref<1x1x128xf32, #tpu.memory_space<vmem>>, %arg3: memref<1x1x128xf32, #tpu.memory_space<vmem>>) attributes {dimension_semantics = [#tpu.dimension_semantics<parallel>], iteration_bounds = array<i64: 1>, scalar_prefetch = 0 : i64, scratch_operands = 0 : i64, tpu.core_type = #tpu.core_type<tc>, window_params = [{transform_indices = @transform_0, window_bounds = array<i64: 16, 128>}, {transform_indices = @transform_1, window_bounds = array<i64: 1, 1, 128>}, {transform_indices = @transform_2, window_bounds = array<i64: 1, 1, 128>}]} {
    %c0 = arith.constant 0 : index
    %c0_0 = arith.constant 0 : index
    %0 = vector.load %arg1[%c0, %c0_0] : memref<16x128xf32, #tpu.memory_space<vmem>>, vector<16x128xf32>
    %cst = arith.constant dense<0.000000e+00> : vector<128xf32>
    %1 = vector.multi_reduction <add>, %0, %cst [0] : vector<16x128xf32> to vector<128xf32>
    %2 = vector.shape_cast %1 : vector<128xf32> to vector<1x128xf32>
    %c0_1 = arith.constant 0 : index
    %c0_2 = arith.constant 0 : index
    %c0_3 = arith.constant 0 : index
    %3 = vector.load %arg2[%c0_1, %c0_2, %c0_3] : memref<1x1x128xf32, #tpu.memory_space<vmem>>, vector<1x1x128xf32>
    %4 = vector.shape_cast %3 : vector<1x1x128xf32> to vector<1x128xf32>
    %5 = vector.shape_cast %2 : vector<1x128xf32> to vector<1x1x128xf32>
    tpu.vector_store %arg2[%c0_1, %c0_2, %c0_3], %5 {strides = array<i32>} : memref<1x1x128xf32, #tpu.memory_space<vmem>>, vector<1x1x128xf32>,
    %6 = arith.mulf %0, %0 : vector<16x128xf32>
    %cst_4 = arith.constant dense<0.000000e+00> : vector<128xf32>
    %7 = vector.multi_reduction <add>, %6, %cst_4 [0] : vector<16x128xf32> to vector<128xf32>
    %8 = vector.shape_cast %7 : vector<128xf32> to vector<1x128xf32>
    %c0_5 = arith.constant 0 : index
    %c0_6 = arith.constant 0 : index
    %c0_7 = arith.constant 0 : index
    %9 = vector.load %arg3[%c0_5, %c0_6, %c0_7] : memref<1x1x128xf32, #tpu.memory_space<vmem>>, vector<1x1x128xf32>
    %10 = vector.shape_cast %9 : vector<1x1x128xf32> to vector<1x128xf32>
    %11 = vector.shape_cast %8 : vector<1x128xf32> to vector<1x1x128xf32>
    tpu.vector_store %arg3[%c0_5, %c0_6, %c0_7], %11 {strides = array<i32>} : memref<1x1x128xf32, #tpu.memory_space<vmem>>, vector<1x1x128xf32>,
    return
  }
  func.func @transform_0(%arg0: i32) -> (i32, i32) {
    %c0_i32 = arith.constant 0 : i32
    %c0_i32_0 = arith.constant 0 : i32
    return %arg0, %c0_i32 : i32, i32
  }
  func.func @transform_1(%arg0: i32) -> (i32, i32, i32) {
    %c0_i32 = arith.constant 0 : i32
    %c0_i32_0 = arith.constant 0 : i32
    %c0_i32_1 = arith.constant 0 : i32
    return %arg0, %c0_i32, %c0_i32_0 : i32, i32, i32
  }
  func.func @transform_2(%arg0: i32) -> (i32, i32, i32) {
    %c0_i32 = arith.constant 0 : i32
    %c0_i32_0 = arith.constant 0 : i32
    %c0_i32_1 = arith.constant 0 : i32
    return %arg0, %c0_i32, %c0_i32_0 : i32, i32, i32
  }
}

module attributes {stable_mosaic.version = 11 : i64} {
  func.func @conv2_proj_kernel(%arg0: i32, %arg1: memref<1x16x16x8xf32, #tpu.memory_space<vmem>>, %arg2: memref<1x8xf32, #tpu.memory_space<vmem>>, %arg3: memref<1x8xf32, #tpu.memory_space<vmem>>, %arg4: memref<72x8xf32, #tpu.memory_space<vmem>>, %arg5: memref<1x16x16x4xf32, #tpu.memory_space<vmem>>, %arg6: memref<4x8xf32, #tpu.memory_space<vmem>>, %arg7: memref<1x16x16x8xf32, #tpu.memory_space<vmem>>, %arg8: memref<18x18x8xf32, #tpu.memory_space<vmem>>) attributes {dimension_semantics = [#tpu.dimension_semantics<parallel>], iteration_bounds = array<i64: 2>, scalar_prefetch = 0 : i64, scratch_operands = 1 : i64, tpu.core_type = #tpu.core_type<tc>, window_params = [{transform_indices = @transform_0, window_bounds = array<i64: 1, 16, 16, 8>}, {pipeline_mode = #tpu.pipeline_mode<synchronous>, transform_indices = @transform_1, window_bounds = array<i64: 1, 8>}, {pipeline_mode = #tpu.pipeline_mode<synchronous>, transform_indices = @transform_2, window_bounds = array<i64: 1, 8>}, {pipeline_mode = #tpu.pipeline_mode<synchronous>, transform_indices = @transform_3, window_bounds = array<i64: 72, 8>}, {transform_indices = @transform_4, window_bounds = array<i64: 1, 16, 16, 4>}, {pipeline_mode = #tpu.pipeline_mode<synchronous>, transform_indices = @transform_5, window_bounds = array<i64: 4, 8>}, {transform_indices = @transform_6, window_bounds = array<i64: 1, 16, 16, 8>}]} {
    %c0 = arith.constant 0 : index
    %c0_0 = arith.constant 0 : index
    %c0_1 = arith.constant 0 : index
    %c0_2 = arith.constant 0 : index
    %0 = vector.load %arg1[%c0, %c0_0, %c0_1, %c0_2] : memref<1x16x16x8xf32, #tpu.memory_space<vmem>>, vector<1x16x16x8xf32>
    %1 = vector.shape_cast %0 : vector<1x16x16x8xf32> to vector<16x16x8xf32>
    %c0_3 = arith.constant 0 : index
    %c0_4 = arith.constant 0 : index
    %2 = vector.load %arg2[%c0_3, %c0_4] : memref<1x8xf32, #tpu.memory_space<vmem>>, vector<1x8xf32>
    %3 = vector.shape_cast %2 : vector<1x8xf32> to vector<1x1x8xf32>
    %4 = vector.broadcast %3 : vector<1x1x8xf32> to vector<16x16x8xf32>
    %5 = arith.mulf %1, %4 : vector<16x16x8xf32>
    %c0_5 = arith.constant 0 : index
    %c0_6 = arith.constant 0 : index
    %6 = vector.load %arg3[%c0_5, %c0_6] : memref<1x8xf32, #tpu.memory_space<vmem>>, vector<1x8xf32>
    %7 = vector.shape_cast %6 : vector<1x8xf32> to vector<1x1x8xf32>
    %8 = vector.broadcast %7 : vector<1x1x8xf32> to vector<16x16x8xf32>
    %9 = arith.addf %5, %8 : vector<16x16x8xf32>
    %cst = arith.constant 0.000000e+00 : f32
    %10 = vector.broadcast %cst : f32 to vector<16x16x8xf32>
    %11 = arith.maximumf %9, %10 : vector<16x16x8xf32>
    %cst_7 = arith.constant 0.000000e+00 : f32
    %12 = vector.broadcast %cst_7 : f32 to vector<18x18x8xf32>
    %c0_8 = arith.constant 0 : index
    %c0_9 = arith.constant 0 : index
    %c0_10 = arith.constant 0 : index
    %13 = vector.load %arg8[%c0_8, %c0_9, %c0_10] : memref<18x18x8xf32, #tpu.memory_space<vmem>>, vector<18x18x8xf32>
    tpu.vector_store %arg8[%c0_8, %c0_9, %c0_10], %12 {strides = array<i32>} : memref<18x18x8xf32, #tpu.memory_space<vmem>>, vector<18x18x8xf32>,
    %c1 = arith.constant 1 : index
    %c1_11 = arith.constant 1 : index
    %c0_12 = arith.constant 0 : index
    %14 = vector.load %arg8[%c1, %c1_11, %c0_12] : memref<18x18x8xf32, #tpu.memory_space<vmem>>, vector<16x16x8xf32>
    tpu.vector_store %arg8[%c1, %c1_11, %c0_12], %11 {strides = array<i32>} : memref<18x18x8xf32, #tpu.memory_space<vmem>>, vector<16x16x8xf32>,
    %c0_13 = arith.constant 0 : index
    %c0_14 = arith.constant 0 : index
    %c0_15 = arith.constant 0 : index
    %15 = vector.load %arg8[%c0_13, %c0_14, %c0_15] : memref<18x18x8xf32, #tpu.memory_space<vmem>>, vector<16x16x8xf32>
    %16 = vector.shape_cast %15 : vector<16x16x8xf32> to vector<256x8xf32>
    %c0_16 = arith.constant 0 : index
    %c1_17 = arith.constant 1 : index
    %c0_18 = arith.constant 0 : index
    %17 = vector.load %arg8[%c0_16, %c1_17, %c0_18] : memref<18x18x8xf32, #tpu.memory_space<vmem>>, vector<16x16x8xf32>
    %18 = vector.shape_cast %17 : vector<16x16x8xf32> to vector<256x8xf32>
    %c0_19 = arith.constant 0 : index
    %c2 = arith.constant 2 : index
    %c0_20 = arith.constant 0 : index
    %19 = vector.load %arg8[%c0_19, %c2, %c0_20] : memref<18x18x8xf32, #tpu.memory_space<vmem>>, vector<16x16x8xf32>
    %20 = vector.shape_cast %19 : vector<16x16x8xf32> to vector<256x8xf32>
    %c1_21 = arith.constant 1 : index
    %c0_22 = arith.constant 0 : index
    %c0_23 = arith.constant 0 : index
    %21 = vector.load %arg8[%c1_21, %c0_22, %c0_23] : memref<18x18x8xf32, #tpu.memory_space<vmem>>, vector<16x16x8xf32>
    %22 = vector.shape_cast %21 : vector<16x16x8xf32> to vector<256x8xf32>
    %c1_24 = arith.constant 1 : index
    %c1_25 = arith.constant 1 : index
    %c0_26 = arith.constant 0 : index
    %23 = vector.load %arg8[%c1_24, %c1_25, %c0_26] : memref<18x18x8xf32, #tpu.memory_space<vmem>>, vector<16x16x8xf32>
    %24 = vector.shape_cast %23 : vector<16x16x8xf32> to vector<256x8xf32>
    %c1_27 = arith.constant 1 : index
    %c2_28 = arith.constant 2 : index
    %c0_29 = arith.constant 0 : index
    %25 = vector.load %arg8[%c1_27, %c2_28, %c0_29] : memref<18x18x8xf32, #tpu.memory_space<vmem>>, vector<16x16x8xf32>
    %26 = vector.shape_cast %25 : vector<16x16x8xf32> to vector<256x8xf32>
    %c2_30 = arith.constant 2 : index
    %c0_31 = arith.constant 0 : index
    %c0_32 = arith.constant 0 : index
    %27 = vector.load %arg8[%c2_30, %c0_31, %c0_32] : memref<18x18x8xf32, #tpu.memory_space<vmem>>, vector<16x16x8xf32>
    %28 = vector.shape_cast %27 : vector<16x16x8xf32> to vector<256x8xf32>
    %c2_33 = arith.constant 2 : index
    %c1_34 = arith.constant 1 : index
    %c0_35 = arith.constant 0 : index
    %29 = vector.load %arg8[%c2_33, %c1_34, %c0_35] : memref<18x18x8xf32, #tpu.memory_space<vmem>>, vector<16x16x8xf32>
    %30 = vector.shape_cast %29 : vector<16x16x8xf32> to vector<256x8xf32>
    %c2_36 = arith.constant 2 : index
    %c2_37 = arith.constant 2 : index
    %c0_38 = arith.constant 0 : index
    %31 = vector.load %arg8[%c2_36, %c2_37, %c0_38] : memref<18x18x8xf32, #tpu.memory_space<vmem>>, vector<16x16x8xf32>
    %32 = vector.shape_cast %31 : vector<16x16x8xf32> to vector<256x8xf32>
    %33 = tpu.concatenate %16, %18, %20, %22, %24, %26, %28, %30, %32 in 1 : vector<256x8xf32>, vector<256x8xf32>, vector<256x8xf32>, vector<256x8xf32>, vector<256x8xf32>, vector<256x8xf32>, vector<256x8xf32>, vector<256x8xf32>, vector<256x8xf32> -> vector<256x72xf32>
    %c0_39 = arith.constant 0 : index
    %c0_40 = arith.constant 0 : index
    %34 = vector.load %arg4[%c0_39, %c0_40] : memref<72x8xf32, #tpu.memory_space<vmem>>, vector<72x8xf32>
    %cst_41 = arith.constant dense<0.000000e+00> : vector<256x8xf32>
    %35 = tpu.matmul %33, %34, %cst_41 {dimension_numbers = #tpu.dot_dimension_numbers<[1], [0], [0], [1], [0, 0, 1, 1], [], []>} : vector<256x72xf32>, vector<72x8xf32>, vector<256x8xf32> -> vector<256x8xf32>
    %c0_42 = arith.constant 0 : index
    %c0_43 = arith.constant 0 : index
    %c0_44 = arith.constant 0 : index
    %c0_45 = arith.constant 0 : index
    %36 = vector.load %arg5[%c0_42, %c0_43, %c0_44, %c0_45] : memref<1x16x16x4xf32, #tpu.memory_space<vmem>>, vector<1x16x16x4xf32>
    %37 = vector.shape_cast %36 : vector<1x16x16x4xf32> to vector<16x16x4xf32>
    %38 = vector.shape_cast %37 : vector<16x16x4xf32> to vector<256x4xf32>
    %c0_46 = arith.constant 0 : index
    %c0_47 = arith.constant 0 : index
    %39 = vector.load %arg6[%c0_46, %c0_47] : memref<4x8xf32, #tpu.memory_space<vmem>>, vector<4x8xf32>
    %cst_48 = arith.constant dense<0.000000e+00> : vector<256x8xf32>
    %40 = tpu.matmul %38, %39, %cst_48 {dimension_numbers = #tpu.dot_dimension_numbers<[1], [0], [0], [1], [0, 0, 1, 1], [], []>} : vector<256x4xf32>, vector<4x8xf32>, vector<256x8xf32> -> vector<256x8xf32>
    %41 = arith.addf %35, %40 : vector<256x8xf32>
    %42 = vector.shape_cast %41 : vector<256x8xf32> to vector<16x16x8xf32>
    %c0_49 = arith.constant 0 : index
    %c0_50 = arith.constant 0 : index
    %c0_51 = arith.constant 0 : index
    %c0_52 = arith.constant 0 : index
    %43 = vector.load %arg7[%c0_49, %c0_50, %c0_51, %c0_52] : memref<1x16x16x8xf32, #tpu.memory_space<vmem>>, vector<1x16x16x8xf32>
    %44 = vector.shape_cast %43 : vector<1x16x16x8xf32> to vector<16x16x8xf32>
    %45 = vector.shape_cast %42 : vector<16x16x8xf32> to vector<1x16x16x8xf32>
    tpu.vector_store %arg7[%c0_49, %c0_50, %c0_51, %c0_52], %45 {strides = array<i32>} : memref<1x16x16x8xf32, #tpu.memory_space<vmem>>, vector<1x16x16x8xf32>,
    return
  }
  func.func @transform_0(%arg0: i32) -> (i32, i32, i32, i32) {
    %c0_i32 = arith.constant 0 : i32
    %c0_i32_0 = arith.constant 0 : i32
    %c0_i32_1 = arith.constant 0 : i32
    %c0_i32_2 = arith.constant 0 : i32
    return %arg0, %c0_i32, %c0_i32_0, %c0_i32_1 : i32, i32, i32, i32
  }
  func.func @transform_1(%arg0: i32) -> (i32, i32) {
    %c0_i32 = arith.constant 0 : i32
    %c0_i32_0 = arith.constant 0 : i32
    %c0_i32_1 = arith.constant 0 : i32
    return %c0_i32, %c0_i32_0 : i32, i32
  }
  func.func @transform_2(%arg0: i32) -> (i32, i32) {
    %c0_i32 = arith.constant 0 : i32
    %c0_i32_0 = arith.constant 0 : i32
    %c0_i32_1 = arith.constant 0 : i32
    return %c0_i32, %c0_i32_0 : i32, i32
  }
  func.func @transform_3(%arg0: i32) -> (i32, i32) {
    %c0_i32 = arith.constant 0 : i32
    %c0_i32_0 = arith.constant 0 : i32
    %c0_i32_1 = arith.constant 0 : i32
    return %c0_i32, %c0_i32_0 : i32, i32
  }
  func.func @transform_4(%arg0: i32) -> (i32, i32, i32, i32) {
    %c0_i32 = arith.constant 0 : i32
    %c0_i32_0 = arith.constant 0 : i32
    %c0_i32_1 = arith.constant 0 : i32
    %c0_i32_2 = arith.constant 0 : i32
    return %arg0, %c0_i32, %c0_i32_0, %c0_i32_1 : i32, i32, i32, i32
  }
  func.func @transform_5(%arg0: i32) -> (i32, i32) {
    %c0_i32 = arith.constant 0 : i32
    %c0_i32_0 = arith.constant 0 : i32
    %c0_i32_1 = arith.constant 0 : i32
    return %c0_i32, %c0_i32_0 : i32, i32
  }
  func.func @transform_6(%arg0: i32) -> (i32, i32, i32, i32) {
    %c0_i32 = arith.constant 0 : i32
    %c0_i32_0 = arith.constant 0 : i32
    %c0_i32_1 = arith.constant 0 : i32
    %c0_i32_2 = arith.constant 0 : i32
    return %arg0, %c0_i32, %c0_i32_0, %c0_i32_1 : i32, i32, i32, i32
  }
}

</mosaic_0001>

<llo_original>
// kernel: preact_block.3
$region0: #{preact_block.3}
  #allocation0 [shape = 'u32[]', space=smem, size = 0x4, offset = 0x4, fixed_abs, tag = 'smem constant byte address 0x4 - core index']
  #allocation1 [shape = 'u32[144,128]{1,0:T(1,128)}', space=vmem, size = 0x12000, scoped, tag = 'internal scratch']
  %s0 = inlined_call_operand.vmem [shape: f32[16,128], index: 0, kind: input, shape index: {}]
  %s1 = inlined_call_operand.vmem [shape: f32[1,1,128], index: 1, kind: output, shape index: {0}]
  %s2 = inlined_call_operand.vmem [shape: f32[1,1,128], index: 2, kind: output, shape index: {1}]
  %3 = xla_tuple %s1, %s2
  %s4 = sld [smem:[#allocation0]]
  $region22: #{preact_block.3} parent=0
    _
  %s6 = ssub.s32 1, %s4
  %s7 = scalar_select 0, %s6, %s4
  // Predicated region
  $region2: #{preact_block.3} parent=0 // pred_check
    _
  $region3: #{preact_block.3} parent=0 // pred_check_branch
    %9 = sbr.rel (0) target = $region5
  $region4: #{preact_block.3} parent=0 // pred_region
    _
  $region5: #{preact_block.3} parent=0 // pred_fallthru
    _
  %v10 = vld [vmem:[%s0] sm:$0xff]
  %v11 = vld [vmem:[%s0 + $0x8] sm:$0xff]
  %v12 = vadd.f32 %v10, %v11
  %v13 = vrot.slane %v12, 4
  %v14 = vadd.f32 %v12, %v13
  %v15 = vrot.slane %v14, 2
  %v16 = vadd.f32 %v14, %v15
  %v17 = vrot.slane %v16, 1
  %v18 = vadd.f32 %v16, %v17
  %19 = vst [vmem:[%s1] sm:$0x1] %v18
  %v20 = vmul.f32 %v10, %v10
  %v21 = vmul.f32 %v11, %v11
  %v22 = vadd.f32 %v20, %v21
  %v23 = vrot.slane %v22, 4
  %v24 = vadd.f32 %v22, %v23
  %v25 = vrot.slane %v24, 2
  %v26 = vadd.f32 %v24, %v25
  %v27 = vrot.slane %v26, 1
  %v28 = vadd.f32 %v26, %v27
  %29 = vst [vmem:[%s2] sm:$0x1] %v28
  // Predicated region
  $region6: #{preact_block.3} parent=0 // pred_check
    _
  $region7: #{preact_block.3} parent=0 // pred_check_branch
    %31 = sbr.rel (0) target = $region9
  $region8: #{preact_block.3} parent=0 // pred_region
    _
  $region9: #{preact_block.3} parent=0 // pred_fallthru
    _
  // Predicated region
  $region10: #{preact_block.3} parent=0 // pred_check
    _
  $region11: #{preact_block.3} parent=0 // pred_check_branch
    %33 = sbr.rel (0) target = $region13
  $region12: #{preact_block.3} parent=0 // pred_region
    _
  $region13: #{preact_block.3} parent=0 // pred_fallthru
    _
  // Predicated region
  $region14: #{preact_block.3} parent=0 // pred_check
    _
  $region15: #{preact_block.3} parent=0 // pred_check_branch
    %35 = sbr.rel (0) target = $region17
  $region16: #{preact_block.3} parent=0 // pred_region
    _
  $region17: #{preact_block.3} parent=0 // pred_fallthru
    _
  // Predicated region
  $region18: #{preact_block.3} parent=0 // pred_check
    _
  $region19: #{preact_block.3} parent=0 // pred_check_branch
    %37 = sbr.rel (0) target = $region21
  $region20: #{preact_block.3} parent=0 // pred_region
    _
  $region21: #{preact_block.3} parent=0 // pred_fallthru
    _

// kernel: preact_block.4
$region0: #{preact_block.4}
  #allocation0 [shape = 'u32[]', space=smem, size = 0x4, offset = 0x4, fixed_abs, tag = 'smem constant byte address 0x4 - core index']
  #allocation1 [shape = 'u32[144,128]{1,0:T(1,128)}', space=vmem, size = 0x12000, scoped, tag = 'internal scratch']
  #allocation2 [shape = 'f32[18,18,4]{2,1,0:T(8,128)}', space=vmem, size = 0x36000, scoped, tag = 'scratch operand']
  %s0 = inlined_call_operand.vmem [shape: f32[2,16,16,4], index: 0, kind: input, shape index: {}]
  %s1 = inlined_call_operand.vmem [shape: f32[1,4], index: 1, kind: input, shape index: {}]
  %s2 = inlined_call_operand.vmem [shape: f32[1,4], index: 2, kind: input, shape index: {}]
  %s3 = inlined_call_operand.vmem [shape: f32[36,8], index: 3, kind: input, shape index: {}]
  %s4 = inlined_call_operand.vmem [shape: f32[2,16,16,8], index: 4, kind: output, shape index: {0}]
  %s5 = inlined_call_operand.vmem [shape: f32[2,1,8], index: 5, kind: output, shape index: {1}]
  %s6 = inlined_call_operand.vmem [shape: f32[2,1,8], index: 6, kind: output, shape index: {2}]
  %7 = xla_tuple %s4, %s5, %s6
  %s8 = sld [smem:[#allocation0]]
  $region65: #{preact_block.4} parent=0
    _
  %s10 = ssub.s32 1, %s8
  %s11 = scalar_select 0, %s10, %s8
  loop: start=0, step=1, limit=4
  $region2: #{preact_block.4} parent=0 // loop_pre_header
    _
  $region3: #{preact_block.4} parent=0 // loop_header
    %s13 = sphi 0, %s17
    %p14 = scmp.ge.s32.totalorder %s13, 4
    %s23 = sphi 0, %s25
    %s26 = sphi 0, %s23
    %s27 = sphi 0, %s26
    %s43 = sphi 0, %s27
    %s47 = sphi 0, %s47
    %s49 = sphi 0, %s47
    %s50 = sphi 0, %s49
    %s64 = sphi 0, %s50
    %s68 = sphi 0, %s68
    %s70 = sphi 0, %s68
    %s71 = sphi 0, %s70
    %s85 = sphi 0, %s71
    %s89 = sphi 0, %s89
    %s91 = sphi 0, %s89
    %s92 = sphi 0, %s91
    %s106 = sphi 0, %s92
    %s112 = sphi 0, %s114
    %s115 = sphi 0, %s112
    %s116 = sphi 0, %s115
    %s132 = sphi 0, %s116
    %s138 = sphi 0, %s140
    %s141 = sphi 0, %s138
    %s142 = sphi 0, %s141
    %s158 = sphi 0, %s142
    %s164 = sphi 0, %s166
    %s167 = sphi 0, %s164
    %s168 = sphi 0, %s167
    %s184 = sphi 0, %s168
  $region4: #{preact_block.4} parent=0 // loop_header_branch
    %16 = sbr.rel (%p14) target = $region8
  $region5: #{preact_block.4} parent=0 // loop_body
    %s18 = ssub.s32 %s13, 1
    %s19 = ssub.s32 %s13, 2
    %s20 = sadd.s32 %s13, 1
    %s21 = ssub.s32 %s13, %s20
    %p22 = scmp.eq.s32.totalorder %s21, 0
    %s24 = sadd.s32 %s23, 1
    %s25 = scalar_select %p22, %s23, %s24
    %p28 = pneg %p22
    %p29 = scmp.eq.s32.totalorder %s13, 1
    %p30 = por %p28, %p29
    %p31 = scmp.ne.s32.totalorder %s23, %s26
    %p32 = scmp.eq.s32.totalorder %s13, 0
    %p33 = por %p31, %p32
    %p34 = scmp.ne.s32.totalorder %s23, %s26
    %p35 = scmp.eq.s32.totalorder %s18, 1
    %p36 = por %p34, %p35
    %p37 = scmp.ne.s32.totalorder %s26, %s27
    %p38 = scmp.eq.s32.totalorder %s18, 0
    %p39 = por %p37, %p38
    %p40 = scmp.ne.s32.totalorder %s26, %s27
    %p41 = scmp.eq.s32.totalorder %s19, 1
    %p42 = por %p40, %p41
    %p44 = scmp.ne.s32.totalorder %s27, %s43
    %p45 = scmp.eq.s32.totalorder %s19, 0
    %p46 = por %p44, %p45
    %s48 = sadd.s32 %s47, 1
    %p51 = scmp.eq.s32.totalorder %s13, 1
    %p52 = scmp.ne.s32.totalorder %s47, %s49
    %p53 = scmp.eq.s32.totalorder %s13, 0
    %p54 = por %p52, %p53
    %p55 = scmp.ne.s32.totalorder %s47, %s49
    %p56 = scmp.eq.s32.totalorder %s18, 1
    %p57 = por %p55, %p56
    %p58 = scmp.ne.s32.totalorder %s49, %s50
    %p59 = scmp.eq.s32.totalorder %s18, 0
    %p60 = por %p58, %p59
    %p61 = scmp.ne.s32.totalorder %s49, %s50
    %p62 = scmp.eq.s32.totalorder %s19, 1
    %p63 = por %p61, %p62
    %p65 = scmp.ne.s32.totalorder %s50, %s64
    %p66 = scmp.eq.s32.totalorder %s19, 0
    %p67 = por %p65, %p66
    %s69 = sadd.s32 %s68, 1
    %p72 = scmp.eq.s32.totalorder %s13, 1
    %p73 = scmp.ne.s32.totalorder %s68, %s70
    %p74 = scmp.eq.s32.totalorder %s13, 0
    %p75 = por %p73, %p74
    %p76 = scmp.ne.s32.totalorder %s68, %s70
    %p77 = scmp.eq.s32.totalorder %s18, 1
    %p78 = por %p76, %p77
    %p79 = scmp.ne.s32.totalorder %s70, %s71
    %p80 = scmp.eq.s32.totalorder %s18, 0
    %p81 = por %p79, %p80
    %p82 = scmp.ne.s32.totalorder %s70, %s71
    %p83 = scmp.eq.s32.totalorder %s19, 1
    %p84 = por %p82, %p83
    %p86 = scmp.ne.s32.totalorder %s71, %s85
    %p87 = scmp.eq.s32.totalorder %s19, 0
    %p88 = por %p86, %p87
    %s90 = sadd.s32 %s89, 1
    %p93 = scmp.eq.s32.totalorder %s13, 1
    %p94 = scmp.ne.s32.totalorder %s89, %s91
    %p95 = scmp.eq.s32.totalorder %s13, 0
    %p96 = por %p94, %p95
    %p97 = scmp.ne.s32.totalorder %s89, %s91
    %p98 = scmp.eq.s32.totalorder %s18, 1
    %p99 = por %p97, %p98
    %p100 = scmp.ne.s32.totalorder %s91, %s92
    %p101 = scmp.eq.s32.totalorder %s18, 0
    %p102 = por %p100, %p101
    %p103 = scmp.ne.s32.totalorder %s91, %s92
    %p104 = scmp.eq.s32.totalorder %s19, 1
    %p105 = por %p103, %p104
    %p107 = scmp.ne.s32.totalorder %s92, %s106
    %p108 = scmp.eq.s32.totalorder %s19, 0
    %p109 = por %p107, %p108
    %s110 = ssub.s32 %s13, %s20
    %p111 = scmp.eq.s32.totalorder %s110, 0
    %s113 = sadd.s32 %s112, 1
    %s114 = scalar_select %p111, %s112, %s113
    %p117 = pneg %p111
    %p118 = scmp.eq.s32.totalorder %s13, 1
    %p119 = por %p117, %p118
    %p120 = scmp.ne.s32.totalorder %s112, %s115
    %p121 = scmp.eq.s32.totalorder %s13, 0
    %p122 = por %p120, %p121
    %p123 = scmp.ne.s32.totalorder %s112, %s115
    %p124 = scmp.eq.s32.totalorder %s18, 1
    %p125 = por %p123, %p124
    %p126 = scmp.ne.s32.totalorder %s115, %s116
    %p127 = scmp.eq.s32.totalorder %s18, 0
    %p128 = por %p126, %p127
    %p129 = scmp.ne.s32.totalorder %s115, %s116
    %p130 = scmp.eq.s32.totalorder %s19, 1
    %p131 = por %p129, %p130
    %p133 = scmp.ne.s32.totalorder %s116, %s132
    %p134 = scmp.eq.s32.totalorder %s19, 0
    %p135 = por %p133, %p134
    %s136 = ssub.s32 %s13, %s20
    %p137 = scmp.eq.s32.totalorder %s136, 0
    %s139 = sadd.s32 %s138, 1
    %s140 = scalar_select %p137, %s138, %s139
    %p143 = pneg %p137
    %p144 = scmp.eq.s32.totalorder %s13, 1
    %p145 = por %p143, %p144
    %p146 = scmp.ne.s32.totalorder %s138, %s141
    %p147 = scmp.eq.s32.totalorder %s13, 0
    %p148 = por %p146, %p147
    %p149 = scmp.ne.s32.totalorder %s138, %s141
    %p150 = scmp.eq.s32.totalorder %s18, 1
    %p151 = por %p149, %p150
    %p152 = scmp.ne.s32.totalorder %s141, %s142
    %p153 = scmp.eq.s32.totalorder %s18, 0
    %p154 = por %p152, %p153
    %p155 = scmp.ne.s32.totalorder %s141, %s142
    %p156 = scmp.eq.s32.totalorder %s19, 1
    %p157 = por %p155, %p156
    %p159 = scmp.ne.s32.totalorder %s142, %s158
    %p160 = scmp.eq.s32.totalorder %s19, 0
    %p161 = por %p159, %p160
    %s162 = ssub.s32 %s13, %s20
    %p163 = scmp.eq.s32.totalorder %s162, 0
    %s165 = sadd.s32 %s164, 1
    %s166 = scalar_select %p163, %s164, %s165
    %p169 = pneg %p163
    %p170 = scmp.eq.s32.totalorder %s13, 1
    %p171 = por %p169, %p170
    %p172 = scmp.ne.s32.totalorder %s164, %s167
    %p173 = scmp.eq.s32.totalorder %s13, 0
    %p174 = por %p172, %p173
    %p175 = scmp.ne.s32.totalorder %s164, %s167
    %p176 = scmp.eq.s32.totalorder %s18, 1
    %p177 = por %p175, %p176
    %p178 = scmp.ne.s32.totalorder %s167, %s168
    %p179 = scmp.eq.s32.totalorder %s18, 0
    %p180 = por %p178, %p179
    %p181 = scmp.ne.s32.totalorder %s167, %s168
    %p182 = scmp.eq.s32.totalorder %s19, 1
    %p183 = por %p181, %p182
    %p185 = scmp.ne.s32.totalorder %s168, %s184
    %p186 = scmp.eq.s32.totalorder %s19, 0
    %p187 = por %p185, %p186
    %p188 = scmp.le.s32.totalorder 1, %s13
    %p189 = scmp.lt.s32.totalorder %s13, 3
    %p190 = pnand %p188, %p189
    %p191 = pneg %p190
    // Predicated region
    $region9: #{preact_block.4} parent=5 // pred_check
      _
    $region10: #{preact_block.4} parent=5 // pred_check_branch
      %193 = sbr.rel (%p190) target = $region12
    $region11: #{preact_block.4} parent=5 // pred_region
      %s194 = ssub.s32 %s13, 1
      // Predicated region
      $region13: #{preact_block.4} parent=11 // pred_check
        %p195 = pneg %p60
      $region14: #{preact_block.4} parent=11 // pred_check_branch
        %197 = sbr.rel (%p195) target = $region16
      $region15: #{preact_block.4} parent=11 // pred_region
        _
      $region16: #{preact_block.4} parent=11 // pred_fallthru
        _
      // Predicated region
      $region17: #{preact_block.4} parent=11 // pred_check
        %p198 = pneg %p81
      $region18: #{preact_block.4} parent=11 // pred_check_branch
        %200 = sbr.rel (%p198) target = $region20
      $region19: #{preact_block.4} parent=11 // pred_region
        _
      $region20: #{preact_block.4} parent=11 // pred_fallthru
        _
      // Predicated region
      $region21: #{preact_block.4} parent=11 // pred_check
        %p201 = pneg %p102
      $region22: #{preact_block.4} parent=11 // pred_check_branch
        %203 = sbr.rel (%p201) target = $region24
      $region23: #{preact_block.4} parent=11 // pred_region
        _
      $region24: #{preact_block.4} parent=11 // pred_fallthru
        _
    $region12: #{preact_block.4} parent=5 // pred_fallthru
      _
    %p204 = scmp.lt.s32.totalorder %s13, 2
    // Predicated region
    $region25: #{preact_block.4} parent=5 // pred_check
      %p205 = pneg %p204
    $region26: #{preact_block.4} parent=5 // pred_check_branch
      %207 = sbr.rel (%p205) target = $region28
    $region27: #{preact_block.4} parent=5 // pred_region
      // Predicated region
      $region29: #{preact_block.4} parent=27 // pred_check
        %p208 = pneg %p33
      $region30: #{preact_block.4} parent=27 // pred_check_branch
        %210 = sbr.rel (%p208) target = $region32
      $region31: #{preact_block.4} parent=27 // pred_region
        %p211 = scmp.lt.s32.totalorder %s13, 1
        %s212 = scalar_select %p211, %s13, 1
        %s213 = smul.addr %s212, 32
        %s214 = smul.addr %s213, 8
        %s215 = scalar_lea.vmem %s0, %s214
      $region32: #{preact_block.4} parent=27 // pred_fallthru
        _
    $region28: #{preact_block.4} parent=5 // pred_fallthru
      _
    %p216 = scmp.le.s32.totalorder 1, %s13
    %p217 = scmp.lt.s32.totalorder %s13, 3
    %p218 = pnand %p216, %p217
    %p219 = pneg %p218
    // Predicated region
    $region33: #{preact_block.4} parent=5 // pred_check
      _
    $region34: #{preact_block.4} parent=5 // pred_check_branch
      %221 = sbr.rel (%p218) target = $region36
    $region35: #{preact_block.4} parent=5 // pred_region
      %s222 = ssub.s32 %s13, 1
      %p223 = scmp.lt.s32.totalorder %s18, 1
      %s224 = scalar_select %p223, %s18, 1
      %s225 = smul.addr %s224, 32
      %s226 = smul.addr %s225, 8
      %s227 = scalar_lea.vmem %s0, %s226
      %p228 = pneg %p39
      %p229 = pneg %p36
      %p230 = pneg %p60
      %p231 = pneg %p57
      %p232 = pneg %p81
      %p233 = pneg %p78
      %p234 = pneg %p102
      %p235 = pneg %p99
      %p236 = pneg %p128
      %p237 = pneg %p125
      %p238 = scmp.lt.s32.totalorder %s18, 1
      %s239 = scalar_select %p238, %s18, 1
      %s240 = smul.addr %s239, 32
      %s241 = smul.addr %s240, 8
      %s242 = scalar_lea.vmem %s4, %s241
      %p243 = pneg %p154
      %p244 = pneg %p151
      %p245 = scmp.lt.s32.totalorder %s18, 1
      %s246 = scalar_select %p245, %s18, 1
      %s247 = scalar_lea.vmem %s5, %s246
      %p248 = pneg %p180
      %p249 = pneg %p177
      %p250 = scmp.lt.s32.totalorder %s18, 1
      %s251 = scalar_select %p250, %s18, 1
      %s252 = scalar_lea.vmem %s6, %s251
      %p253 = scmp.lt.s32.totalorder %s18, 1
      %s254 = scalar_select %p253, %s18, 1
      %s255 = smul.addr %s254, 32
      %s256 = smul.addr %s255, 8
      %s257 = scalar_lea.vmem %s0, %s256
      %p258 = scmp.lt.s32.totalorder %s18, 1
      %s259 = scalar_select %p258, %s18, 1
      %s260 = smul.addr %s259, 32
      %s261 = smul.addr %s260, 8
      %s262 = scalar_lea.vmem %s4, %s261
      %p263 = scmp.lt.s32.totalorder %s18, 1
      %s264 = scalar_select %p263, %s18, 1
      %s265 = scalar_lea.vmem %s5, %s264
      %p266 = scmp.lt.s32.totalorder %s18, 1
      %s267 = scalar_select %p266, %s18, 1
      %s268 = scalar_lea.vmem %s6, %s267
      %v269 = vld [vmem:[%s257] sm:$0xff]
      %v270 = vld [vmem:[%s257 + $0x8] sm:$0xff]
      %v271 = vld [vmem:[%s257 + $0x10] sm:$0xff]
      %v272 = vld [vmem:[%s257 + $0x18] sm:$0xff]
      %v273 = vld [vmem:[%s257 + $0x20] sm:$0xff]
      %v274 = vld [vmem:[%s257 + $0x28] sm:$0xff]
      %v275 = vld [vmem:[%s257 + $0x30] sm:$0xff]
      %v276 = vld [vmem:[%s257 + $0x38] sm:$0xff]
      %v277 = vld [vmem:[%s257 + $0x40] sm:$0xff]
      %v278 = vld [vmem:[%s257 + $0x48] sm:$0xff]
      %v279 = vld [vmem:[%s257 + $0x50] sm:$0xff]
      %v280 = vld [vmem:[%s257 + $0x58] sm:$0xff]
      %v281 = vld [vmem:[%s257 + $0x60] sm:$0xff]
      %v282 = vld [vmem:[%s257 + $0x68] sm:$0xff]
      %v283 = vld [vmem:[%s257 + $0x70] sm:$0xff]
      %v284 = vld [vmem:[%s257 + $0x78] sm:$0xff]
      %v285 = vld [vmem:[%s257 + $0x80] sm:$0xff]
      %v286 = vld [vmem:[%s257 + $0x88] sm:$0xff]
      %v287 = vld [vmem:[%s257 + $0x90] sm:$0xff]
      %v288 = vld [vmem:[%s257 + $0x98] sm:$0xff]
      %v289 = vld [vmem:[%s257 + $0xa0] sm:$0xff]
      %v290 = vld [vmem:[%s257 + $0xa8] sm:$0xff]
      %v291 = vld [vmem:[%s257 + $0xb0] sm:$0xff]
      %v292 = vld [vmem:[%s257 + $0xb8] sm:$0xff]
      %v293 = vld [vmem:[%s257 + $0xc0] sm:$0xff]
      %v294 = vld [vmem:[%s257 + $0xc8] sm:$0xff]
      %v295 = vld [vmem:[%s257 + $0xd0] sm:$0xff]
      %v296 = vld [vmem:[%s257 + $0xd8] sm:$0xff]
      %v297 = vld [vmem:[%s257 + $0xe0] sm:$0xff]
      %v298 = vld [vmem:[%s257 + $0xe8] sm:$0xff]
      %v299 = vld [vmem:[%s257 + $0xf0] sm:$0xff]
      %v300 = vld [vmem:[%s257 + $0xf8] sm:$0xff]
      %v301 = vld [vmem:[%s1] sm:$0x1]
      %v303 = vlaneseq
      %v304 = vshrl.u32 %v303, 7
      %v305 = vsub.s32 0, %v304
      %v306 = vrot.slane %v301, %v305
      %v308 = vmul.f32 %v269, %v306
      %v309 = vmul.f32 %v270, %v306
      %v310 = vmul.f32 %v271, %v306
      %v311 = vmul.f32 %v272, %v306
      %v312 = vmul.f32 %v273, %v306
      %v313 = vmul.f32 %v274, %v306
      %v314 = vmul.f32 %v275, %v306
      %v315 = vmul.f32 %v276, %v306
      %v316 = vmul.f32 %v277, %v306
      %v317 = vmul.f32 %v278, %v306
      %v318 = vmul.f32 %v279, %v306
      %v319 = vmul.f32 %v280, %v306
      %v320 = vmul.f32 %v281, %v306
      %v321 = vmul.f32 %v282, %v306
      %v322 = vmul.f32 %v283, %v306
      %v323 = vmul.f32 %v284, %v306
      %v324 = vmul.f32 %v285, %v306
      %v325 = vmul.f32 %v286, %v306
      %v326 = vmul.f32 %v287, %v306
      %v327 = vmul.f32 %v288, %v306
      %v328 = vmul.f32 %v289, %v306
      %v329 = vmul.f32 %v290, %v306
      %v330 = vmul.f32 %v291, %v306
      %v331 = vmul.f32 %v292, %v306
      %v332 = vmul.f32 %v293, %v306
      %v333 = vmul.f32 %v294, %v306
      %v334 = vmul.f32 %v295, %v306
      %v335 = vmul.f32 %v296, %v306
      %v336 = vmul.f32 %v297, %v306
      %v337 = vmul.f32 %v298, %v306
      %v338 = vmul.f32 %v299, %v306
      %v339 = vmul.f32 %v300, %v306
      %v340 = vld [vmem:[%s2] sm:$0x1]
      %v342 = vlaneseq
      %v343 = vshrl.u32 %v342, 7
      %v344 = vsub.s32 0, %v343
      %v345 = vrot.slane %v340, %v344
      %v347 = vadd.f32 %v308, %v345
      %v348 = vadd.f32 %v309, %v345
      %v349 = vadd.f32 %v310, %v345
      %v350 = vadd.f32 %v311, %v345
      %v351 = vadd.f32 %v312, %v345
      %v352 = vadd.f32 %v313, %v345
      %v353 = vadd.f32 %v314, %v345
      %v354 = vadd.f32 %v315, %v345
      %v355 = vadd.f32 %v316, %v345
      %v356 = vadd.f32 %v317, %v345
      %v357 = vadd.f32 %v318, %v345
      %v358 = vadd.f32 %v319, %v345
      %v359 = vadd.f32 %v320, %v345
      %v360 = vadd.f32 %v321, %v345
      %v361 = vadd.f32 %v322, %v345
      %v362 = vadd.f32 %v323, %v345
      %v363 = vadd.f32 %v324, %v345
      %v364 = vadd.f32 %v325, %v345
      %v365 = vadd.f32 %v326, %v345
      %v366 = vadd.f32 %v327, %v345
      %v367 = vadd.f32 %v328, %v345
      %v368 = vadd.f32 %v329, %v345
      %v369 = vadd.f32 %v330, %v345
      %v370 = vadd.f32 %v331, %v345
      %v371 = vadd.f32 %v332, %v345
      %v372 = vadd.f32 %v333, %v345
      %v373 = vadd.f32 %v334, %v345
      %v374 = vadd.f32 %v335, %v345
      %v375 = vadd.f32 %v336, %v345
      %v376 = vadd.f32 %v337, %v345
      %v377 = vadd.f32 %v338, %v345
      %v378 = vadd.f32 %v339, %v345
      %v379 = vmax.f32 %v347, 0.0
      %v380 = vmax.f32 %v348, 0.0
      %v381 = vmax.f32 %v349, 0.0
      %v382 = vmax.f32 %v350, 0.0
      %v383 = vmax.f32 %v351, 0.0
      %v384 = vmax.f32 %v352, 0.0
      %v385 = vmax.f32 %v353, 0.0
      %v386 = vmax.f32 %v354, 0.0
      %v387 = vmax.f32 %v355, 0.0
      %v388 = vmax.f32 %v356, 0.0
      %v389 = vmax.f32 %v357, 0.0
      %v390 = vmax.f32 %v358, 0.0
      %v391 = vmax.f32 %v359, 0.0
      %v392 = vmax.f32 %v360, 0.0
      %v393 = vmax.f32 %v361, 0.0
      %v394 = vmax.f32 %v362, 0.0
      %v395 = vmax.f32 %v363, 0.0
      %v396 = vmax.f32 %v364, 0.0
      %v397 = vmax.f32 %v365, 0.0
      %v398 = vmax.f32 %v366, 0.0
      %v399 = vmax.f32 %v367, 0.0
      %v400 = vmax.f32 %v368, 0.0
      %v401 = vmax.f32 %v369, 0.0
      %v402 = vmax.f32 %v370, 0.0
      %v403 = vmax.f32 %v371, 0.0
      %v404 = vmax.f32 %v372, 0.0
      %v405 = vmax.f32 %v373, 0.0
      %v406 = vmax.f32 %v374, 0.0
      %v407 = vmax.f32 %v375, 0.0
      %v408 = vmax.f32 %v376, 0.0
      %v409 = vmax.f32 %v377, 0.0
      %v410 = vmax.f32 %v378, 0.0
      %vm411 = vcmask 31744
      %412 = vst.msk [vmem:[#allocation2] sm:$0xff] %vm411, 0.0
      %413 = vst.msk [vmem:[#allocation2 + $0x8] sm:$0xff] %vm411, 0.0
      %vm414 = vcmask 25600
      %415 = vst.msk [vmem:[#allocation2 + $0x10] sm:$0x3] %vm414, 0.0
      %416 = vst.msk [vmem:[#allocation2 + $0x18] sm:$0xff] %vm411, 0.0
      %417 = vst.msk [vmem:[#allocation2 + $0x20] sm:$0xff] %vm411, 0.0
      %418 = vst.msk [vmem:[#allocation2 + $0x28] sm:$0x3] %vm414, 0.0
      %419 = vst.msk [vmem:[#allocation2 + $0x30] sm:$0xff] %vm411, 0.0
      %420 = vst.msk [vmem:[#allocation2 + $0x38] sm:$0xff] %vm411, 0.0
      %421 = vst.msk [vmem:[#allocation2 + $0x40] sm:$0x3] %vm414, 0.0
      %422 = vst.msk [vmem:[#allocation2 + $0x48] sm:$0xff] %vm411, 0.0
      %423 = vst.msk [vmem:[#allocation2 + $0x50] sm:$0xff] %vm411, 0.0
      %424 = vst.msk [vmem:[#allocation2 + $0x58] sm:$0x3] %vm414, 0.0
      %425 = vst.msk [vmem:[#allocation2 + $0x60] sm:$0xff] %vm411, 0.0
      %426 = vst.msk [vmem:[#allocation2 + $0x68] sm:$0xff] %vm411, 0.0
      %427 = vst.msk [vmem:[#allocation2 + $0x70] sm:$0x3] %vm414, 0.0
      %428 = vst.msk [vmem:[#allocation2 + $0x78] sm:$0xff] %vm411, 0.0
      %429 = vst.msk [vmem:[#allocation2 + $0x80] sm:$0xff] %vm411, 0.0
      %430 = vst.msk [vmem:[#allocation2 + $0x88] sm:$0x3] %vm414, 0.0
      %431 = vst.msk [vmem:[#allocation2 + $0x90] sm:$0xff] %vm411, 0.0
      %432 = vst.msk [vmem:[#allocation2 + $0x98] sm:$0xff] %vm411, 0.0
      %433 = vst.msk [vmem:[#allocation2 + $0xa0] sm:$0x3] %vm414, 0.0
      %434 = vst.msk [vmem:[#allocation2 + $0xa8] sm:$0xff] %vm411, 0.0
      %435 = vst.msk [vmem:[#allocation2 + $0xb0] sm:$0xff] %vm411, 0.0
      %436 = vst.msk [vmem:[#allocation2 + $0xb8] sm:$0x3] %vm414, 0.0
      %437 = vst.msk [vmem:[#allocation2 + $0xc0] sm:$0xff] %vm411, 0.0
      %438 = vst.msk [vmem:[#allocation2 + $0xc8] sm:$0xff] %vm411, 0.0
      %439 = vst.msk [vmem:[#allocation2 + $0xd0] sm:$0x3] %vm414, 0.0
      %440 = vst.msk [vmem:[#allocation2 + $0xd8] sm:$0xff] %vm411, 0.0
      %441 = vst.msk [vmem:[#allocation2 + $0xe0] sm:$0xff] %vm411, 0.0
      %442 = vst.msk [vmem:[#allocation2 + $0xe8] sm:$0x3] %vm414, 0.0
      %443 = vst.msk [vmem:[#allocation2 + $0xf0] sm:$0xff] %vm411, 0.0
      %444 = vst.msk [vmem:[#allocation2 + $0xf8] sm:$0xff] %vm411, 0.0
      %445 = vst.msk [vmem:[#allocation2 + $0x100] sm:$0x3] %vm414, 0.0
      %446 = vst.msk [vmem:[#allocation2 + $0x108] sm:$0xff] %vm411, 0.0
      %447 = vst.msk [vmem:[#allocation2 + $0x110] sm:$0xff] %vm411, 0.0
      %448 = vst.msk [vmem:[#allocation2 + $0x118] sm:$0x3] %vm414, 0.0
      %449 = vst.msk [vmem:[#allocation2 + $0x120] sm:$0xff] %vm411, 0.0
      %450 = vst.msk [vmem:[#allocation2 + $0x128] sm:$0xff] %vm411, 0.0
      %451 = vst.msk [vmem:[#allocation2 + $0x130] sm:$0x3] %vm414, 0.0
      %452 = vst.msk [vmem:[#allocation2 + $0x138] sm:$0xff] %vm411, 0.0
      %453 = vst.msk [vmem:[#allocation2 + $0x140] sm:$0xff] %vm411, 0.0
      %454 = vst.msk [vmem:[#allocation2 + $0x148] sm:$0x3] %vm414, 0.0
      %455 = vst.msk [vmem:[#allocation2 + $0x150] sm:$0xff] %vm411, 0.0
      %456 = vst.msk [vmem:[#allocation2 + $0x158] sm:$0xff] %vm411, 0.0
      %457 = vst.msk [vmem:[#allocation2 + $0x160] sm:$0x3] %vm414, 0.0
      %458 = vst.msk [vmem:[#allocation2 + $0x168] sm:$0xff] %vm411, 0.0
      %459 = vst.msk [vmem:[#allocation2 + $0x170] sm:$0xff] %vm411, 0.0
      %460 = vst.msk [vmem:[#allocation2 + $0x178] sm:$0x3] %vm414, 0.0
      %461 = vst.msk [vmem:[#allocation2 + $0x180] sm:$0xff] %vm411, 0.0
      %462 = vst.msk [vmem:[#allocation2 + $0x188] sm:$0xff] %vm411, 0.0
      %463 = vst.msk [vmem:[#allocation2 + $0x190] sm:$0x3] %vm414, 0.0
      %464 = vst.msk [vmem:[#allocation2 + $0x198] sm:$0xff] %vm411, 0.0
      %465 = vst.msk [vmem:[#allocation2 + $0x1a0] sm:$0xff] %vm411, 0.0
      %466 = vst.msk [vmem:[#allocation2 + $0x1a8] sm:$0x3] %vm414, 0.0
      %s467 = scalar_lea.vmem [#allocation2], 24
      %468 = vst.msk [vmem:[%s467 + $0x1] sm:$0xff] %vm411, %v379
      %469 = vst.msk [vmem:[%s467 + $0x9] sm:$0xff] %vm411, %v380
      %470 = vst.msk [vmem:[%s467 + $0x19] sm:$0xff] %vm411, %v381
      %471 = vst.msk [vmem:[%s467 + $0x21] sm:$0xff] %vm411, %v382
      %472 = vst.msk [vmem:[%s467 + $0x31] sm:$0xff] %vm411, %v383
      %473 = vst.msk [vmem:[%s467 + $0x39] sm:$0xff] %vm411, %v384
      %474 = vst.msk [vmem:[%s467 + $0x49] sm:$0xff] %vm411, %v385
      %475 = vst.msk [vmem:[%s467 + $0x51] sm:$0xff] %vm411, %v386
      %476 = vst.msk [vmem:[%s467 + $0x61] sm:$0xff] %vm411, %v387
      %477 = vst.msk [vmem:[%s467 + $0x69] sm:$0xff] %vm411, %v388
      %478 = vst.msk [vmem:[%s467 + $0x79] sm:$0xff] %vm411, %v389
      %479 = vst.msk [vmem:[%s467 + $0x81] sm:$0xff] %vm411, %v390
      %480 = vst.msk [vmem:[%s467 + $0x91] sm:$0xff] %vm411, %v391
      %481 = vst.msk [vmem:[%s467 + $0x99] sm:$0xff] %vm411, %v392
      %482 = vst.msk [vmem:[%s467 + $0xa9] sm:$0xff] %vm411, %v393
      %483 = vst.msk [vmem:[%s467 + $0xb1] sm:$0xff] %vm411, %v394
      %484 = vst.msk [vmem:[%s467 + $0xc1] sm:$0xff] %vm411, %v395
      %485 = vst.msk [vmem:[%s467 + $0xc9] sm:$0xff] %vm411, %v396
      %486 = vst.msk [vmem:[%s467 + $0xd9] sm:$0xff] %vm411, %v397
      %487 = vst.msk [vmem:[%s467 + $0xe1] sm:$0xff] %vm411, %v398
      %488 = vst.msk [vmem:[%s467 + $0xf1] sm:$0xff] %vm411, %v399
      %489 = vst.msk [vmem:[%s467 + $0xf9] sm:$0xff] %vm411, %v400
      %490 = vst.msk [vmem:[%s467 + $0x109] sm:$0xff] %vm411, %v401
      %491 = vst.msk [vmem:[%s467 + $0x111] sm:$0xff] %vm411, %v402
      %492 = vst.msk [vmem:[%s467 + $0x121] sm:$0xff] %vm411, %v403
      %493 = vst.msk [vmem:[%s467 + $0x129] sm:$0xff] %vm411, %v404
      %494 = vst.msk [vmem:[%s467 + $0x139] sm:$0xff] %vm411, %v405
      %495 = vst.msk [vmem:[%s467 + $0x141] sm:$0xff] %vm411, %v406
      %496 = vst.msk [vmem:[%s467 + $0x151] sm:$0xff] %vm411, %v407
      %497 = vst.msk [vmem:[%s467 + $0x159] sm:$0xff] %vm411, %v408
      %498 = vst.msk [vmem:[%s467 + $0x169] sm:$0xff] %vm411, %v409
      %499 = vst.msk [vmem:[%s467 + $0x171] sm:$0xff] %vm411, %v410
      %v500 = vld [vmem:[#allocation2] sm:$0xff]
      %v501 = vld [vmem:[#allocation2 + $0x8] sm:$0xff]
      %v502 = vld [vmem:[#allocation2 + $0x18] sm:$0xff]
      %v503 = vld [vmem:[#allocation2 + $0x20] sm:$0xff]
      %v504 = vld [vmem:[#allocation2 + $0x30] sm:$0xff]
      %v505 = vld [vmem:[#allocation2 + $0x38] sm:$0xff]
      %v506 = vld [vmem:[#allocation2 + $0x48] sm:$0xff]
      %v507 = vld [vmem:[#allocation2 + $0x50] sm:$0xff]
      %v508 = vld [vmem:[#allocation2 + $0x60] sm:$0xff]
      %v509 = vld [vmem:[#allocation2 + $0x68] sm:$0xff]
      %v510 = vld [vmem:[#allocation2 + $0x78] sm:$0xff]
      %v511 = vld [vmem:[#allocation2 + $0x80] sm:$0xff]
      %v512 = vld [vmem:[#allocation2 + $0x90] sm:$0xff]
      %v513 = vld [vmem:[#allocation2 + $0x98] sm:$0xff]
      %v514 = vld [vmem:[#allocation2 + $0xa8] sm:$0xff]
      %v515 = vld [vmem:[#allocation2 + $0xb0] sm:$0xff]
      %v516 = vld [vmem:[#allocation2 + $0xc0] sm:$0xff]
      %v517 = vld [vmem:[#allocation2 + $0xc8] sm:$0xff]
      %v518 = vld [vmem:[#allocation2 + $0xd8] sm:$0xff]
      %v519 = vld [vmem:[#allocation2 + $0xe0] sm:$0xff]
      %v520 = vld [vmem:[#allocation2 + $0xf0] sm:$0xff]
      %v521 = vld [vmem:[#allocation2 + $0xf8] sm:$0xff]
      %v522 = vld [vmem:[#allocation2 + $0x108] sm:$0xff]
      %v523 = vld [vmem:[#allocation2 + $0x110] sm:$0xff]
      %v524 = vld [vmem:[#allocation2 + $0x120] sm:$0xff]
      %v525 = vld [vmem:[#allocation2 + $0x128] sm:$0xff]
      %v526 = vld [vmem:[#allocation2 + $0x138] sm:$0xff]
      %v527 = vld [vmem:[#allocation2 + $0x140] sm:$0xff]
      %v528 = vld [vmem:[#allocation2 + $0x150] sm:$0xff]
      %v529 = vld [vmem:[#allocation2 + $0x158] sm:$0xff]
      %v530 = vld [vmem:[#allocation2 + $0x168] sm:$0xff]
      %v531 = vld [vmem:[#allocation2 + $0x170] sm:$0xff]
      %v532 = vld [vmem:[#allocation2 + $0x1] sm:$0xff]
      %v533 = vld [vmem:[#allocation2 + $0x9] sm:$0xff]
      %v534 = vld [vmem:[#allocation2 + $0x19] sm:$0xff]
      %v535 = vld [vmem:[#allocation2 + $0x21] sm:$0xff]
      %v536 = vld [vmem:[#allocation2 + $0x31] sm:$0xff]
      %v537 = vld [vmem:[#allocation2 + $0x39] sm:$0xff]
      %v538 = vld [vmem:[#allocation2 + $0x49] sm:$0xff]
      %v539 = vld [vmem:[#allocation2 + $0x51] sm:$0xff]
      %v540 = vld [vmem:[#allocation2 + $0x61] sm:$0xff]
      %v541 = vld [vmem:[#allocation2 + $0x69] sm:$0xff]
      %v542 = vld [vmem:[#allocation2 + $0x79] sm:$0xff]
      %v543 = vld [vmem:[#allocation2 + $0x81] sm:$0xff]
      %v544 = vld [vmem:[#allocation2 + $0x91] sm:$0xff]
      %v545 = vld [vmem:[#allocation2 + $0x99] sm:$0xff]
      %v546 = vld [vmem:[#allocation2 + $0xa9] sm:$0xff]
      %v547 = vld [vmem:[#allocation2 + $0xb1] sm:$0xff]
      %v548 = vld [vmem:[#allocation2 + $0xc1] sm:$0xff]
      %v549 = vld [vmem:[#allocation2 + $0xc9] sm:$0xff]
      %v550 = vld [vmem:[#allocation2 + $0xd9] sm:$0xff]
      %v551 = vld [vmem:[#allocation2 + $0xe1] sm:$0xff]
      %v552 = vld [vmem:[#allocation2 + $0xf1] sm:$0xff]
      %v553 = vld [vmem:[#allocation2 + $0xf9] sm:$0xff]
      %v554 = vld [vmem:[#allocation2 + $0x109] sm:$0xff]
      %v555 = vld [vmem:[#allocation2 + $0x111] sm:$0xff]
      %v556 = vld [vmem:[#allocation2 + $0x121] sm:$0xff]
      %v557 = vld [vmem:[#allocation2 + $0x129] sm:$0xff]
      %v558 = vld [vmem:[#allocation2 + $0x139] sm:$0xff]
      %v559 = vld [vmem:[#allocation2 + $0x141] sm:$0xff]
      %v560 = vld [vmem:[#allocation2 + $0x151] sm:$0xff]
      %v561 = vld [vmem:[#allocation2 + $0x159] sm:$0xff]
      %v562 = vld [vmem:[#allocation2 + $0x169] sm:$0xff]
      %v563 = vld [vmem:[#allocation2 + $0x171] sm:$0xff]
      %v564 = vld [vmem:[#allocation2 + $0x2] sm:$0xff]
      %v565 = vld [vmem:[#allocation2 + $0xa] sm:$0xff]
      %v566 = vld [vmem:[#allocation2 + $0x1a] sm:$0xff]
      %v567 = vld [vmem:[#allocation2 + $0x22] sm:$0xff]
      %v568 = vld [vmem:[#allocation2 + $0x32] sm:$0xff]
      %v569 = vld [vmem:[#allocation2 + $0x3a] sm:$0xff]
      %v570 = vld [vmem:[#allocation2 + $0x4a] sm:$0xff]
      %v571 = vld [vmem:[#allocation2 + $0x52] sm:$0xff]
      %v572 = vld [vmem:[#allocation2 + $0x62] sm:$0xff]
      %v573 = vld [vmem:[#allocation2 + $0x6a] sm:$0xff]
      %v574 = vld [vmem:[#allocation2 + $0x7a] sm:$0xff]
      %v575 = vld [vmem:[#allocation2 + $0x82] sm:$0xff]
      %v576 = vld [vmem:[#allocation2 + $0x92] sm:$0xff]
      %v577 = vld [vmem:[#allocation2 + $0x9a] sm:$0xff]
      %v578 = vld [vmem:[#allocation2 + $0xaa] sm:$0xff]
      %v579 = vld [vmem:[#allocation2 + $0xb2] sm:$0xff]
      %v580 = vld [vmem:[#allocation2 + $0xc2] sm:$0xff]
      %v581 = vld [vmem:[#allocation2 + $0xca] sm:$0xff]
      %v582 = vld [vmem:[#allocation2 + $0xda] sm:$0xff]
      %v583 = vld [vmem:[#allocation2 + $0xe2] sm:$0xff]
      %v584 = vld [vmem:[#allocation2 + $0xf2] sm:$0xff]
      %v585 = vld [vmem:[#allocation2 + $0xfa] sm:$0xff]
      %v586 = vld [vmem:[#allocation2 + $0x10a] sm:$0xff]
      %v587 = vld [vmem:[#allocation2 + $0x112] sm:$0xff]
      %v588 = vld [vmem:[#allocation2 + $0x122] sm:$0xff]
      %v589 = vld [vmem:[#allocation2 + $0x12a] sm:$0xff]
      %v590 = vld [vmem:[#allocation2 + $0x13a] sm:$0xff]
      %v591 = vld [vmem:[#allocation2 + $0x142] sm:$0xff]
      %v592 = vld [vmem:[#allocation2 + $0x152] sm:$0xff]
      %v593 = vld [vmem:[#allocation2 + $0x15a] sm:$0xff]
      %v594 = vld [vmem:[#allocation2 + $0x16a] sm:$0xff]
      %v595 = vld [vmem:[#allocation2 + $0x172] sm:$0xff]
      %v596 = vld [vmem:[%s467] sm:$0xff]
      %v597 = vld [vmem:[%s467 + $0x8] sm:$0xff]
      %v598 = vld [vmem:[%s467 + $0x18] sm:$0xff]
      %v599 = vld [vmem:[%s467 + $0x20] sm:$0xff]
      %v600 = vld [vmem:[%s467 + $0x30] sm:$0xff]
      %v601 = vld [vmem:[%s467 + $0x38] sm:$0xff]
      %v602 = vld [vmem:[%s467 + $0x48] sm:$0xff]
      %v603 = vld [vmem:[%s467 + $0x50] sm:$0xff]
      %v604 = vld [vmem:[%s467 + $0x60] sm:$0xff]
      %v605 = vld [vmem:[%s467 + $0x68] sm:$0xff]
      %v606 = vld [vmem:[%s467 + $0x78] sm:$0xff]
      %v607 = vld [vmem:[%s467 + $0x80] sm:$0xff]
      %v608 = vld [vmem:[%s467 + $0x90] sm:$0xff]
      %v609 = vld [vmem:[%s467 + $0x98] sm:$0xff]
      %v610 = vld [vmem:[%s467 + $0xa8] sm:$0xff]
      %v611 = vld [vmem:[%s467 + $0xb0] sm:$0xff]
      %v612 = vld [vmem:[%s467 + $0xc0] sm:$0xff]
      %v613 = vld [vmem:[%s467 + $0xc8] sm:$0xff]
      %v614 = vld [vmem:[%s467 + $0xd8] sm:$0xff]
      %v615 = vld [vmem:[%s467 + $0xe0] sm:$0xff]
      %v616 = vld [vmem:[%s467 + $0xf0] sm:$0xff]
      %v617 = vld [vmem:[%s467 + $0xf8] sm:$0xff]
      %v618 = vld [vmem:[%s467 + $0x108] sm:$0xff]
      %v619 = vld [vmem:[%s467 + $0x110] sm:$0xff]
      %v620 = vld [vmem:[%s467 + $0x120] sm:$0xff]
      %v621 = vld [vmem:[%s467 + $0x128] sm:$0xff]
      %v622 = vld [vmem:[%s467 + $0x138] sm:$0xff]
      %v623 = vld [vmem:[%s467 + $0x140] sm:$0xff]
      %v624 = vld [vmem:[%s467 + $0x150] sm:$0xff]
      %v625 = vld [vmem:[%s467 + $0x158] sm:$0xff]
      %v626 = vld [vmem:[%s467 + $0x168] sm:$0xff]
      %v627 = vld [vmem:[%s467 + $0x170] sm:$0xff]
      %v628 = vld [vmem:[%s467 + $0x1] sm:$0xff]
      %v629 = vld [vmem:[%s467 + $0x9] sm:$0xff]
      %v630 = vld [vmem:[%s467 + $0x19] sm:$0xff]
      %v631 = vld [vmem:[%s467 + $0x21] sm:$0xff]
      %v632 = vld [vmem:[%s467 + $0x31] sm:$0xff]
      %v633 = vld [vmem:[%s467 + $0x39] sm:$0xff]
      %v634 = vld [vmem:[%s467 + $0x49] sm:$0xff]
      %v635 = vld [vmem:[%s467 + $0x51] sm:$0xff]
      %v636 = vld [vmem:[%s467 + $0x61] sm:$0xff]
      %v637 = vld [vmem:[%s467 + $0x69] sm:$0xff]
      %v638 = vld [vmem:[%s467 + $0x79] sm:$0xff]
      %v639 = vld [vmem:[%s467 + $0x81] sm:$0xff]
      %v640 = vld [vmem:[%s467 + $0x91] sm:$0xff]
      %v641 = vld [vmem:[%s467 + $0x99] sm:$0xff]
      %v642 = vld [vmem:[%s467 + $0xa9] sm:$0xff]
      %v643 = vld [vmem:[%s467 + $0xb1] sm:$0xff]
      %v644 = vld [vmem:[%s467 + $0xc1] sm:$0xff]
      %v645 = vld [vmem:[%s467 + $0xc9] sm:$0xff]
      %v646 = vld [vmem:[%s467 + $0xd9] sm:$0xff]
      %v647 = vld [vmem:[%s467 + $0xe1] sm:$0xff]
      %v648 = vld [vmem:[%s467 + $0xf1] sm:$0xff]
      %v649 = vld [vmem:[%s467 + $0xf9] sm:$0xff]
      %v650 = vld [vmem:[%s467 + $0x109] sm:$0xff]
      %v651 = vld [vmem:[%s467 + $0x111] sm:$0xff]
      %v652 = vld [vmem:[%s467 + $0x121] sm:$0xff]
      %v653 = vld [vmem:[%s467 + $0x129] sm:$0xff]
      %v654 = vld [vmem:[%s467 + $0x139] sm:$0xff]
      %v655 = vld [vmem:[%s467 + $0x141] sm:$0xff]
      %v656 = vld [vmem:[%s467 + $0x151] sm:$0xff]
      %v657 = vld [vmem:[%s467 + $0x159] sm:$0xff]
      %v658 = vld [vmem:[%s467 + $0x169] sm:$0xff]
      %v659 = vld [vmem:[%s467 + $0x171] sm:$0xff]
      %v660 = vld [vmem:[%s467 + $0x2] sm:$0xff]
      %v661 = vld [vmem:[%s467 + $0xa] sm:$0xff]
      %v662 = vld [vmem:[%s467 + $0x1a] sm:$0xff]
      %v663 = vld [vmem:[%s467 + $0x22] sm:$0xff]
      %v664 = vld [vmem:[%s467 + $0x32] sm:$0xff]
      %v665 = vld [vmem:[%s467 + $0x3a] sm:$0xff]
      %v666 = vld [vmem:[%s467 + $0x4a] sm:$0xff]
      %v667 = vld [vmem:[%s467 + $0x52] sm:$0xff]
      %v668 = vld [vmem:[%s467 + $0x62] sm:$0xff]
      %v669 = vld [vmem:[%s467 + $0x6a] sm:$0xff]
      %v670 = vld [vmem:[%s467 + $0x7a] sm:$0xff]
      %v671 = vld [vmem:[%s467 + $0x82] sm:$0xff]
      %v672 = vld [vmem:[%s467 + $0x92] sm:$0xff]
      %v673 = vld [vmem:[%s467 + $0x9a] sm:$0xff]
      %v674 = vld [vmem:[%s467 + $0xaa] sm:$0xff]
      %v675 = vld [vmem:[%s467 + $0xb2] sm:$0xff]
      %v676 = vld [vmem:[%s467 + $0xc2] sm:$0xff]
      %v677 = vld [vmem:[%s467 + $0xca] sm:$0xff]
      %v678 = vld [vmem:[%s467 + $0xda] sm:$0xff]
      %v679 = vld [vmem:[%s467 + $0xe2] sm:$0xff]
      %v680 = vld [vmem:[%s467 + $0xf2] sm:$0xff]
      %v681 = vld [vmem:[%s467 + $0xfa] sm:$0xff]
      %v682 = vld [vmem:[%s467 + $0x10a] sm:$0xff]
      %v683 = vld [vmem:[%s467 + $0x112] sm:$0xff]
      %v684 = vld [vmem:[%s467 + $0x122] sm:$0xff]
      %v685 = vld [vmem:[%s467 + $0x12a] sm:$0xff]
      %v686 = vld [vmem:[%s467 + $0x13a] sm:$0xff]
      %v687 = vld [vmem:[%s467 + $0x142] sm:$0xff]
      %v688 = vld [vmem:[%s467 + $0x152] sm:$0xff]
      %v689 = vld [vmem:[%s467 + $0x15a] sm:$0xff]
      %v690 = vld [vmem:[%s467 + $0x16a] sm:$0xff]
      %v691 = vld [vmem:[%s467 + $0x172] sm:$0xff]
      %s692 = scalar_lea.vmem [#allocation2], 48
      %v693 = vld [vmem:[%s692] sm:$0xff]
      %v694 = vld [vmem:[%s692 + $0x8] sm:$0xff]
      %v695 = vld [vmem:[%s692 + $0x18] sm:$0xff]
      %v696 = vld [vmem:[%s692 + $0x20] sm:$0xff]
      %v697 = vld [vmem:[%s692 + $0x30] sm:$0xff]
      %v698 = vld [vmem:[%s692 + $0x38] sm:$0xff]
      %v699 = vld [vmem:[%s692 + $0x48] sm:$0xff]
      %v700 = vld [vmem:[%s692 + $0x50] sm:$0xff]
      %v701 = vld [vmem:[%s692 + $0x60] sm:$0xff]
      %v702 = vld [vmem:[%s692 + $0x68] sm:$0xff]
      %v703 = vld [vmem:[%s692 + $0x78] sm:$0xff]
      %v704 = vld [vmem:[%s692 + $0x80] sm:$0xff]
      %v705 = vld [vmem:[%s692 + $0x90] sm:$0xff]
      %v706 = vld [vmem:[%s692 + $0x98] sm:$0xff]
      %v707 = vld [vmem:[%s692 + $0xa8] sm:$0xff]
      %v708 = vld [vmem:[%s692 + $0xb0] sm:$0xff]
      %v709 = vld [vmem:[%s692 + $0xc0] sm:$0xff]
      %v710 = vld [vmem:[%s692 + $0xc8] sm:$0xff]
      %v711 = vld [vmem:[%s692 + $0xd8] sm:$0xff]
      %v712 = vld [vmem:[%s692 + $0xe0] sm:$0xff]
      %v713 = vld [vmem:[%s692 + $0xf0] sm:$0xff]
      %v714 = vld [vmem:[%s692 + $0xf8] sm:$0xff]
      %v715 = vld [vmem:[%s692 + $0x108] sm:$0xff]
      %v716 = vld [vmem:[%s692 + $0x110] sm:$0xff]
      %v717 = vld [vmem:[%s692 + $0x120] sm:$0xff]
      %v718 = vld [vmem:[%s692 + $0x128] sm:$0xff]
      %v719 = vld [vmem:[%s692 + $0x138] sm:$0xff]
      %v720 = vld [vmem:[%s692 + $0x140] sm:$0xff]
      %v721 = vld [vmem:[%s692 + $0x150] sm:$0xff]
      %v722 = vld [vmem:[%s692 + $0x158] sm:$0xff]
      %v723 = vld [vmem:[%s692 + $0x168] sm:$0xff]
      %v724 = vld [vmem:[%s692 + $0x170] sm:$0xff]
      %v725 = vld [vmem:[%s692 + $0x1] sm:$0xff]
      %v726 = vld [vmem:[%s692 + $0x9] sm:$0xff]
      %v727 = vld [vmem:[%s692 + $0x19] sm:$0xff]
      %v728 = vld [vmem:[%s692 + $0x21] sm:$0xff]
      %v729 = vld [vmem:[%s692 + $0x31] sm:$0xff]
      %v730 = vld [vmem:[%s692 + $0x39] sm:$0xff]
      %v731 = vld [vmem:[%s692 + $0x49] sm:$0xff]
      %v732 = vld [vmem:[%s692 + $0x51] sm:$0xff]
      %v733 = vld [vmem:[%s692 + $0x61] sm:$0xff]
      %v734 = vld [vmem:[%s692 + $0x69] sm:$0xff]
      %v735 = vld [vmem:[%s692 + $0x79] sm:$0xff]
      %v736 = vld [vmem:[%s692 + $0x81] sm:$0xff]
      %v737 = vld [vmem:[%s692 + $0x91] sm:$0xff]
      %v738 = vld [vmem:[%s692 + $0x99] sm:$0xff]
      %v739 = vld [vmem:[%s692 + $0xa9] sm:$0xff]
      %v740 = vld [vmem:[%s692 + $0xb1] sm:$0xff]
      %v741 = vld [vmem:[%s692 + $0xc1] sm:$0xff]
      %v742 = vld [vmem:[%s692 + $0xc9] sm:$0xff]
      %v743 = vld [vmem:[%s692 + $0xd9] sm:$0xff]
      %v744 = vld [vmem:[%s692 + $0xe1] sm:$0xff]
      %v745 = vld [vmem:[%s692 + $0xf1] sm:$0xff]
      %v746 = vld [vmem:[%s692 + $0xf9] sm:$0xff]
      %v747 = vld [vmem:[%s692 + $0x109] sm:$0xff]
      %v748 = vld [vmem:[%s692 + $0x111] sm:$0xff]
      %v749 = vld [vmem:[%s692 + $0x121] sm:$0xff]
      %v750 = vld [vmem:[%s692 + $0x129] sm:$0xff]
      %v751 = vld [vmem:[%s692 + $0x139] sm:$0xff]
      %v752 = vld [vmem:[%s692 + $0x141] sm:$0xff]
      %v753 = vld [vmem:[%s692 + $0x151] sm:$0xff]
      %v754 = vld [vmem:[%s692 + $0x159] sm:$0xff]
      %v755 = vld [vmem:[%s692 + $0x169] sm:$0xff]
      %v756 = vld [vmem:[%s692 + $0x171] sm:$0xff]
      %v757 = vld [vmem:[%s692 + $0x2] sm:$0xff]
      %v758 = vld [vmem:[%s692 + $0xa] sm:$0xff]
      %v759 = vld [vmem:[%s692 + $0x1a] sm:$0xff]
      %v760 = vld [vmem:[%s692 + $0x22] sm:$0xff]
      %v761 = vld [vmem:[%s692 + $0x32] sm:$0xff]
      %v762 = vld [vmem:[%s692 + $0x3a] sm:$0xff]
      %v763 = vld [vmem:[%s692 + $0x4a] sm:$0xff]
      %v764 = vld [vmem:[%s692 + $0x52] sm:$0xff]
      %v765 = vld [vmem:[%s692 + $0x62] sm:$0xff]
      %v766 = vld [vmem:[%s692 + $0x6a] sm:$0xff]
      %v767 = vld [vmem:[%s692 + $0x7a] sm:$0xff]
      %v768 = vld [vmem:[%s692 + $0x82] sm:$0xff]
      %v769 = vld [vmem:[%s692 + $0x92] sm:$0xff]
      %v770 = vld [vmem:[%s692 + $0x9a] sm:$0xff]
      %v771 = vld [vmem:[%s692 + $0xaa] sm:$0xff]
      %v772 = vld [vmem:[%s692 + $0xb2] sm:$0xff]
      %v773 = vld [vmem:[%s692 + $0xc2] sm:$0xff]
      %v774 = vld [vmem:[%s692 + $0xca] sm:$0xff]
      %v775 = vld [vmem:[%s692 + $0xda] sm:$0xff]
      %v776 = vld [vmem:[%s692 + $0xe2] sm:$0xff]
      %v777 = vld [vmem:[%s692 + $0xf2] sm:$0xff]
      %v778 = vld [vmem:[%s692 + $0xfa] sm:$0xff]
      %v779 = vld [vmem:[%s692 + $0x10a] sm:$0xff]
      %v780 = vld [vmem:[%s692 + $0x112] sm:$0xff]
      %v781 = vld [vmem:[%s692 + $0x122] sm:$0xff]
      %v782 = vld [vmem:[%s692 + $0x12a] sm:$0xff]
      %v783 = vld [vmem:[%s692 + $0x13a] sm:$0xff]
      %v784 = vld [vmem:[%s692 + $0x142] sm:$0xff]
      %v785 = vld [vmem:[%s692 + $0x152] sm:$0xff]
      %v786 = vld [vmem:[%s692 + $0x15a] sm:$0xff]
      %v787 = vld [vmem:[%s692 + $0x16a] sm:$0xff]
      %v788 = vld [vmem:[%s692 + $0x172] sm:$0xff]
      %821 = vrot.lane.b32.xlu0 %v532, 4
      %v822 = vpop.permute.xlu0 %821
      %823 = vrot.lane.b32.xlu0 %v533, 4
      %v824 = vpop.permute.xlu0 %823
      %825 = vrot.lane.b32.xlu0 %v534, 4
      %v826 = vpop.permute.xlu0 %825
      %827 = vrot.lane.b32.xlu0 %v535, 4
      %v828 = vpop.permute.xlu0 %827
      %829 = vrot.lane.b32.xlu0 %v536, 4
      %v830 = vpop.permute.xlu0 %829
      %831 = vrot.lane.b32.xlu0 %v537, 4
      %v832 = vpop.permute.xlu0 %831
      %833 = vrot.lane.b32.xlu0 %v538, 4
      %v834 = vpop.permute.xlu0 %833
      %835 = vrot.lane.b32.xlu0 %v539, 4
      %v836 = vpop.permute.xlu0 %835
      %837 = vrot.lane.b32.xlu0 %v540, 4
      %v838 = vpop.permute.xlu0 %837
      %839 = vrot.lane.b32.xlu0 %v541, 4
      %v840 = vpop.permute.xlu0 %839
      %841 = vrot.lane.b32.xlu0 %v542, 4
      %v842 = vpop.permute.xlu0 %841
      %843 = vrot.lane.b32.xlu0 %v543, 4
      %v844 = vpop.permute.xlu0 %843
      %845 = vrot.lane.b32.xlu0 %v544, 4
      %v846 = vpop.permute.xlu0 %845
      %847 = vrot.lane.b32.xlu0 %v545, 4
      %v848 = vpop.permute.xlu0 %847
      %849 = vrot.lane.b32.xlu0 %v546, 4
      %v850 = vpop.permute.xlu0 %849
      %851 = vrot.lane.b32.xlu0 %v547, 4
      %v852 = vpop.permute.xlu0 %851
      %853 = vrot.lane.b32.xlu0 %v548, 4
      %v854 = vpop.permute.xlu0 %853
      %855 = vrot.lane.b32.xlu0 %v549, 4
      %v856 = vpop.permute.xlu0 %855
      %857 = vrot.lane.b32.xlu0 %v550, 4
      %v858 = vpop.permute.xlu0 %857
      %859 = vrot.lane.b32.xlu0 %v551, 4
      %v860 = vpop.permute.xlu0 %859
      %861 = vrot.lane.b32.xlu0 %v552, 4
      %v862 = vpop.permute.xlu0 %861
      %863 = vrot.lane.b32.xlu0 %v553, 4
      %v864 = vpop.permute.xlu0 %863
      %865 = vrot.lane.b32.xlu0 %v554, 4
      %v866 = vpop.permute.xlu0 %865
      %867 = vrot.lane.b32.xlu0 %v555, 4
      %v868 = vpop.permute.xlu0 %867
      %869 = vrot.lane.b32.xlu0 %v556, 4
      %v870 = vpop.permute.xlu0 %869
      %871 = vrot.lane.b32.xlu0 %v557, 4
      %v872 = vpop.permute.xlu0 %871
      %873 = vrot.lane.b32.xlu0 %v558, 4
      %v874 = vpop.permute.xlu0 %873
      %875 = vrot.lane.b32.xlu0 %v559, 4
      %v876 = vpop.permute.xlu0 %875
      %877 = vrot.lane.b32.xlu0 %v560, 4
      %v878 = vpop.permute.xlu0 %877
      %879 = vrot.lane.b32.xlu0 %v561, 4
      %v880 = vpop.permute.xlu0 %879
      %881 = vrot.lane.b32.xlu0 %v562, 4
      %v882 = vpop.permute.xlu0 %881
      %883 = vrot.lane.b32.xlu0 %v563, 4
      %v884 = vpop.permute.xlu0 %883
      %949 = vrot.lane.b32.xlu0 %v564, 8
      %v950 = vpop.permute.xlu0 %949
      %951 = vrot.lane.b32.xlu0 %v565, 8
      %v952 = vpop.permute.xlu0 %951
      %953 = vrot.lane.b32.xlu0 %v566, 8
      %v954 = vpop.permute.xlu0 %953
      %955 = vrot.lane.b32.xlu0 %v567, 8
      %v956 = vpop.permute.xlu0 %955
      %957 = vrot.lane.b32.xlu0 %v568, 8
      %v958 = vpop.permute.xlu0 %957
      %959 = vrot.lane.b32.xlu0 %v569, 8
      %v960 = vpop.permute.xlu0 %959
      %961 = vrot.lane.b32.xlu0 %v570, 8
      %v962 = vpop.permute.xlu0 %961
      %963 = vrot.lane.b32.xlu0 %v571, 8
      %v964 = vpop.permute.xlu0 %963
      %965 = vrot.lane.b32.xlu0 %v572, 8
      %v966 = vpop.permute.xlu0 %965
      %967 = vrot.lane.b32.xlu0 %v573, 8
      %v968 = vpop.permute.xlu0 %967
      %969 = vrot.lane.b32.xlu0 %v574, 8
      %v970 = vpop.permute.xlu0 %969
      %971 = vrot.lane.b32.xlu0 %v575, 8
      %v972 = vpop.permute.xlu0 %971
      %973 = vrot.lane.b32.xlu0 %v576, 8
      %v974 = vpop.permute.xlu0 %973
      %975 = vrot.lane.b32.xlu0 %v577, 8
      %v976 = vpop.permute.xlu0 %975
      %977 = vrot.lane.b32.xlu0 %v578, 8
      %v978 = vpop.permute.xlu0 %977
      %979 = vrot.lane.b32.xlu0 %v579, 8
      %v980 = vpop.permute.xlu0 %979
      %981 = vrot.lane.b32.xlu0 %v580, 8
      %v982 = vpop.permute.xlu0 %981
      %983 = vrot.lane.b32.xlu0 %v581, 8
      %v984 = vpop.permute.xlu0 %983
      %985 = vrot.lane.b32.xlu0 %v582, 8
      %v986 = vpop.permute.xlu0 %985
      %987 = vrot.lane.b32.xlu0 %v583, 8
      %v988 = vpop.permute.xlu0 %987
      %989 = vrot.lane.b32.xlu0 %v584, 8
      %v990 = vpop.permute.xlu0 %989
      %991 = vrot.lane.b32.xlu0 %v585, 8
      %v992 = vpop.permute.xlu0 %991
      %993 = vrot.lane.b32.xlu0 %v586, 8
      %v994 = vpop.permute.xlu0 %993
      %995 = vrot.lane.b32.xlu0 %v587, 8
      %v996 = vpop.permute.xlu0 %995
      %997 = vrot.lane.b32.xlu0 %v588, 8
      %v998 = vpop.permute.xlu0 %997
      %999 = vrot.lane.b32.xlu0 %v589, 8
      %v1000 = vpop.permute.xlu0 %999
      %1001 = vrot.lane.b32.xlu0 %v590, 8
      %v1002 = vpop.permute.xlu0 %1001
      %1003 = vrot.lane.b32.xlu0 %v591, 8
      %v1004 = vpop.permute.xlu0 %1003
      %1005 = vrot.lane.b32.xlu0 %v592, 8
      %v1006 = vpop.permute.xlu0 %1005
      %1007 = vrot.lane.b32.xlu0 %v593, 8
      %v1008 = vpop.permute.xlu0 %1007
      %1009 = vrot.lane.b32.xlu0 %v594, 8
      %v1010 = vpop.permute.xlu0 %1009
      %1011 = vrot.lane.b32.xlu0 %v595, 8
      %v1012 = vpop.permute.xlu0 %1011
      %1077 = vrot.lane.b32.xlu0 %v596, 12
      %v1078 = vpop.permute.xlu0 %1077
      %1079 = vrot.lane.b32.xlu0 %v597, 12
      %v1080 = vpop.permute.xlu0 %1079
      %1081 = vrot.lane.b32.xlu0 %v598, 12
      %v1082 = vpop.permute.xlu0 %1081
      %1083 = vrot.lane.b32.xlu0 %v599, 12
      %v1084 = vpop.permute.xlu0 %1083
      %1085 = vrot.lane.b32.xlu0 %v600, 12
      %v1086 = vpop.permute.xlu0 %1085
      %1087 = vrot.lane.b32.xlu0 %v601, 12
      %v1088 = vpop.permute.xlu0 %1087
      %1089 = vrot.lane.b32.xlu0 %v602, 12
      %v1090 = vpop.permute.xlu0 %1089
      %1091 = vrot.lane.b32.xlu0 %v603, 12
      %v1092 = vpop.permute.xlu0 %1091
      %1093 = vrot.lane.b32.xlu0 %v604, 12
      %v1094 = vpop.permute.xlu0 %1093
      %1095 = vrot.lane.b32.xlu0 %v605, 12
      %v1096 = vpop.permute.xlu0 %1095
      %1097 = vrot.lane.b32.xlu0 %v606, 12
      %v1098 = vpop.permute.xlu0 %1097
      %1099 = vrot.lane.b32.xlu0 %v607, 12
      %v1100 = vpop.permute.xlu0 %1099
      %1101 = vrot.lane.b32.xlu0 %v608, 12
      %v1102 = vpop.permute.xlu0 %1101
      %1103 = vrot.lane.b32.xlu0 %v609, 12
      %v1104 = vpop.permute.xlu0 %1103
      %1105 = vrot.lane.b32.xlu0 %v610, 12
      %v1106 = vpop.permute.xlu0 %1105
      %1107 = vrot.lane.b32.xlu0 %v611, 12
      %v1108 = vpop.permute.xlu0 %1107
      %1109 = vrot.lane.b32.xlu0 %v612, 12
      %v1110 = vpop.permute.xlu0 %1109
      %1111 = vrot.lane.b32.xlu0 %v613, 12
      %v1112 = vpop.permute.xlu0 %1111
      %1113 = vrot.lane.b32.xlu0 %v614, 12
      %v1114 = vpop.permute.xlu0 %1113
      %1115 = vrot.lane.b32.xlu0 %v615, 12
      %v1116 = vpop.permute.xlu0 %1115
      %1117 = vrot.lane.b32.xlu0 %v616, 12
      %v1118 = vpop.permute.xlu0 %1117
      %1119 = vrot.lane.b32.xlu0 %v617, 12
      %v1120 = vpop.permute.xlu0 %1119
      %1121 = vrot.lane.b32.xlu0 %v618, 12
      %v1122 = vpop.permute.xlu0 %1121
      %1123 = vrot.lane.b32.xlu0 %v619, 12
      %v1124 = vpop.permute.xlu0 %1123
      %1125 = vrot.lane.b32.xlu0 %v620, 12
      %v1126 = vpop.permute.xlu0 %1125
      %1127 = vrot.lane.b32.xlu0 %v621, 12
      %v1128 = vpop.permute.xlu0 %1127
      %1129 = vrot.lane.b32.xlu0 %v622, 12
      %v1130 = vpop.permute.xlu0 %1129
      %1131 = vrot.lane.b32.xlu0 %v623, 12
      %v1132 = vpop.permute.xlu0 %1131
      %1133 = vrot.lane.b32.xlu0 %v624, 12
      %v1134 = vpop.permute.xlu0 %1133
      %1135 = vrot.lane.b32.xlu0 %v625, 12
      %v1136 = vpop.permute.xlu0 %1135
      %1137 = vrot.lane.b32.xlu0 %v626, 12
      %v1138 = vpop.permute.xlu0 %1137
      %1139 = vrot.lane.b32.xlu0 %v627, 12
      %v1140 = vpop.permute.xlu0 %1139
      %1205 = vrot.lane.b32.xlu0 %v628, 16
      %v1206 = vpop.permute.xlu0 %1205
      %1207 = vrot.lane.b32.xlu0 %v629, 16
      %v1208 = vpop.permute.xlu0 %1207
      %1209 = vrot.lane.b32.xlu0 %v630, 16
      %v1210 = vpop.permute.xlu0 %1209
      %1211 = vrot.lane.b32.xlu0 %v631, 16
      %v1212 = vpop.permute.xlu0 %1211
      %1213 = vrot.lane.b32.xlu0 %v632, 16
      %v1214 = vpop.permute.xlu0 %1213
      %1215 = vrot.lane.b32.xlu0 %v633, 16
      %v1216 = vpop.permute.xlu0 %1215
      %1217 = vrot.lane.b32.xlu0 %v634, 16
      %v1218 = vpop.permute.xlu0 %1217
      %1219 = vrot.lane.b32.xlu0 %v635, 16
      %v1220 = vpop.permute.xlu0 %1219
      %1221 = vrot.lane.b32.xlu0 %v636, 16
      %v1222 = vpop.permute.xlu0 %1221
      %1223 = vrot.lane.b32.xlu0 %v637, 16
      %v1224 = vpop.permute.xlu0 %1223
      %1225 = vrot.lane.b32.xlu0 %v638, 16
      %v1226 = vpop.permute.xlu0 %1225
      %1227 = vrot.lane.b32.xlu0 %v639, 16
      %v1228 = vpop.permute.xlu0 %1227
      %1229 = vrot.lane.b32.xlu0 %v640, 16
      %v1230 = vpop.permute.xlu0 %1229
      %1231 = vrot.lane.b32.xlu0 %v641, 16
      %v1232 = vpop.permute.xlu0 %1231
      %1233 = vrot.lane.b32.xlu0 %v642, 16
      %v1234 = vpop.permute.xlu0 %1233
      %1235 = vrot.lane.b32.xlu0 %v643, 16
      %v1236 = vpop.permute.xlu0 %1235
      %1237 = vrot.lane.b32.xlu0 %v644, 16
      %v1238 = vpop.permute.xlu0 %1237
      %1239 = vrot.lane.b32.xlu0 %v645, 16
      %v1240 = vpop.permute.xlu0 %1239
      %1241 = vrot.lane.b32.xlu0 %v646, 16
      %v1242 = vpop.permute.xlu0 %1241
      %1243 = vrot.lane.b32.xlu0 %v647, 16
      %v1244 = vpop.permute.xlu0 %1243
      %1245 = vrot.lane.b32.xlu0 %v648, 16
      %v1246 = vpop.permute.xlu0 %1245
      %1247 = vrot.lane.b32.xlu0 %v649, 16
      %v1248 = vpop.permute.xlu0 %1247
      %1249 = vrot.lane.b32.xlu0 %v650, 16
      %v1250 = vpop.permute.xlu0 %1249
      %1251 = vrot.lane.b32.xlu0 %v651, 16
      %v1252 = vpop.permute.xlu0 %1251
      %1253 = vrot.lane.b32.xlu0 %v652, 16
      %v1254 = vpop.permute.xlu0 %1253
      %1255 = vrot.lane.b32.xlu0 %v653, 16
      %v1256 = vpop.permute.xlu0 %1255
      %1257 = vrot.lane.b32.xlu0 %v654, 16
      %v1258 = vpop.permute.xlu0 %1257
      %1259 = vrot.lane.b32.xlu0 %v655, 16
      %v1260 = vpop.permute.xlu0 %1259
      %1261 = vrot.lane.b32.xlu0 %v656, 16
      %v1262 = vpop.permute.xlu0 %1261
      %1263 = vrot.lane.b32.xlu0 %v657, 16
      %v1264 = vpop.permute.xlu0 %1263
      %1265 = vrot.lane.b32.xlu0 %v658, 16
      %v1266 = vpop.permute.xlu0 %1265
      %1267 = vrot.lane.b32.xlu0 %v659, 16
      %v1268 = vpop.permute.xlu0 %1267
      %1333 = vrot.lane.b32.xlu0 %v660, 20
      %v1334 = vpop.permute.xlu0 %1333
      %1335 = vrot.lane.b32.xlu0 %v661, 20
      %v1336 = vpop.permute.xlu0 %1335
      %1337 = vrot.lane.b32.xlu0 %v662, 20
      %v1338 = vpop.permute.xlu0 %1337
      %1339 = vrot.lane.b32.xlu0 %v663, 20
      %v1340 = vpop.permute.xlu0 %1339
      %1341 = vrot.lane.b32.xlu0 %v664, 20
      %v1342 = vpop.permute.xlu0 %1341
      %1343 = vrot.lane.b32.xlu0 %v665, 20
      %v1344 = vpop.permute.xlu0 %1343
      %1345 = vrot.lane.b32.xlu0 %v666, 20
      %v1346 = vpop.permute.xlu0 %1345
      %1347 = vrot.lane.b32.xlu0 %v667, 20
      %v1348 = vpop.permute.xlu0 %1347
      %1349 = vrot.lane.b32.xlu0 %v668, 20
      %v1350 = vpop.permute.xlu0 %1349
      %1351 = vrot.lane.b32.xlu0 %v669, 20
      %v1352 = vpop.permute.xlu0 %1351
      %1353 = vrot.lane.b32.xlu0 %v670, 20
      %v1354 = vpop.permute.xlu0 %1353
      %1355 = vrot.lane.b32.xlu0 %v671, 20
      %v1356 = vpop.permute.xlu0 %1355
      %1357 = vrot.lane.b32.xlu0 %v672, 20
      %v1358 = vpop.permute.xlu0 %1357
      %1359 = vrot.lane.b32.xlu0 %v673, 20
      %v1360 = vpop.permute.xlu0 %1359
      %1361 = vrot.lane.b32.xlu0 %v674, 20
      %v1362 = vpop.permute.xlu0 %1361
      %1363 = vrot.lane.b32.xlu0 %v675, 20
      %v1364 = vpop.permute.xlu0 %1363
      %1365 = vrot.lane.b32.xlu0 %v676, 20
      %v1366 = vpop.permute.xlu0 %1365
      %1367 = vrot.lane.b32.xlu0 %v677, 20
      %v1368 = vpop.permute.xlu0 %1367
      %1369 = vrot.lane.b32.xlu0 %v678, 20
      %v1370 = vpop.permute.xlu0 %1369
      %1371 = vrot.lane.b32.xlu0 %v679, 20
      %v1372 = vpop.permute.xlu0 %1371
      %1373 = vrot.lane.b32.xlu0 %v680, 20
      %v1374 = vpop.permute.xlu0 %1373
      %1375 = vrot.lane.b32.xlu0 %v681, 20
      %v1376 = vpop.permute.xlu0 %1375
      %1377 = vrot.lane.b32.xlu0 %v682, 20
      %v1378 = vpop.permute.xlu0 %1377
      %1379 = vrot.lane.b32.xlu0 %v683, 20
      %v1380 = vpop.permute.xlu0 %1379
      %1381 = vrot.lane.b32.xlu0 %v684, 20
      %v1382 = vpop.permute.xlu0 %1381
      %1383 = vrot.lane.b32.xlu0 %v685, 20
      %v1384 = vpop.permute.xlu0 %1383
      %1385 = vrot.lane.b32.xlu0 %v686, 20
      %v1386 = vpop.permute.xlu0 %1385
      %1387 = vrot.lane.b32.xlu0 %v687, 20
      %v1388 = vpop.permute.xlu0 %1387
      %1389 = vrot.lane.b32.xlu0 %v688, 20
      %v1390 = vpop.permute.xlu0 %1389
      %1391 = vrot.lane.b32.xlu0 %v689, 20
      %v1392 = vpop.permute.xlu0 %1391
      %1393 = vrot.lane.b32.xlu0 %v690, 20
      %v1394 = vpop.permute.xlu0 %1393
      %1395 = vrot.lane.b32.xlu0 %v691, 20
      %v1396 = vpop.permute.xlu0 %1395
      %1461 = vrot.lane.b32.xlu0 %v693, 24
      %v1462 = vpop.permute.xlu0 %1461
      %1463 = vrot.lane.b32.xlu0 %v694, 24
      %v1464 = vpop.permute.xlu0 %1463
      %1465 = vrot.lane.b32.xlu0 %v695, 24
      %v1466 = vpop.permute.xlu0 %1465
      %1467 = vrot.lane.b32.xlu0 %v696, 24
      %v1468 = vpop.permute.xlu0 %1467
      %1469 = vrot.lane.b32.xlu0 %v697, 24
      %v1470 = vpop.permute.xlu0 %1469
      %1471 = vrot.lane.b32.xlu0 %v698, 24
      %v1472 = vpop.permute.xlu0 %1471
      %1473 = vrot.lane.b32.xlu0 %v699, 24
      %v1474 = vpop.permute.xlu0 %1473
      %1475 = vrot.lane.b32.xlu0 %v700, 24
      %v1476 = vpop.permute.xlu0 %1475
      %1477 = vrot.lane.b32.xlu0 %v701, 24
      %v1478 = vpop.permute.xlu0 %1477
      %1479 = vrot.lane.b32.xlu0 %v702, 24
      %v1480 = vpop.permute.xlu0 %1479
      %1481 = vrot.lane.b32.xlu0 %v703, 24
      %v1482 = vpop.permute.xlu0 %1481
      %1483 = vrot.lane.b32.xlu0 %v704, 24
      %v1484 = vpop.permute.xlu0 %1483
      %1485 = vrot.lane.b32.xlu0 %v705, 24
      %v1486 = vpop.permute.xlu0 %1485
      %1487 = vrot.lane.b32.xlu0 %v706, 24
      %v1488 = vpop.permute.xlu0 %1487
      %1489 = vrot.lane.b32.xlu0 %v707, 24
      %v1490 = vpop.permute.xlu0 %1489
      %1491 = vrot.lane.b32.xlu0 %v708, 24
      %v1492 = vpop.permute.xlu0 %1491
      %1493 = vrot.lane.b32.xlu0 %v709, 24
      %v1494 = vpop.permute.xlu0 %1493
      %1495 = vrot.lane.b32.xlu0 %v710, 24
      %v1496 = vpop.permute.xlu0 %1495
      %1497 = vrot.lane.b32.xlu0 %v711, 24
      %v1498 = vpop.permute.xlu0 %1497
      %1499 = vrot.lane.b32.xlu0 %v712, 24
      %v1500 = vpop.permute.xlu0 %1499
      %1501 = vrot.lane.b32.xlu0 %v713, 24
      %v1502 = vpop.permute.xlu0 %1501
      %1503 = vrot.lane.b32.xlu0 %v714, 24
      %v1504 = vpop.permute.xlu0 %1503
      %1505 = vrot.lane.b32.xlu0 %v715, 24
      %v1506 = vpop.permute.xlu0 %1505
      %1507 = vrot.lane.b32.xlu0 %v716, 24
      %v1508 = vpop.permute.xlu0 %1507
      %1509 = vrot.lane.b32.xlu0 %v717, 24
      %v1510 = vpop.permute.xlu0 %1509
      %1511 = vrot.lane.b32.xlu0 %v718, 24
      %v1512 = vpop.permute.xlu0 %1511
      %1513 = vrot.lane.b32.xlu0 %v719, 24
      %v1514 = vpop.permute.xlu0 %1513
      %1515 = vrot.lane.b32.xlu0 %v720, 24
      %v1516 = vpop.permute.xlu0 %1515
      %1517 = vrot.lane.b32.xlu0 %v721, 24
      %v1518 = vpop.permute.xlu0 %1517
      %1519 = vrot.lane.b32.xlu0 %v722, 24
      %v1520 = vpop.permute.xlu0 %1519
      %1521 = vrot.lane.b32.xlu0 %v723, 24
      %v1522 = vpop.permute.xlu0 %1521
      %1523 = vrot.lane.b32.xlu0 %v724, 24
      %v1524 = vpop.permute.xlu0 %1523
      %1589 = vrot.lane.b32.xlu0 %v725, 28
      %v1590 = vpop.permute.xlu0 %1589
      %1591 = vrot.lane.b32.xlu0 %v726, 28
      %v1592 = vpop.permute.xlu0 %1591
      %1593 = vrot.lane.b32.xlu0 %v727, 28
      %v1594 = vpop.permute.xlu0 %1593
      %1595 = vrot.lane.b32.xlu0 %v728, 28
      %v1596 = vpop.permute.xlu0 %1595
      %1597 = vrot.lane.b32.xlu0 %v729, 28
      %v1598 = vpop.permute.xlu0 %1597
      %1599 = vrot.lane.b32.xlu0 %v730, 28
      %v1600 = vpop.permute.xlu0 %1599
      %1601 = vrot.lane.b32.xlu0 %v731, 28
      %v1602 = vpop.permute.xlu0 %1601
      %1603 = vrot.lane.b32.xlu0 %v732, 28
      %v1604 = vpop.permute.xlu0 %1603
      %1605 = vrot.lane.b32.xlu0 %v733, 28
      %v1606 = vpop.permute.xlu0 %1605
      %1607 = vrot.lane.b32.xlu0 %v734, 28
      %v1608 = vpop.permute.xlu0 %1607
      %1609 = vrot.lane.b32.xlu0 %v735, 28
      %v1610 = vpop.permute.xlu0 %1609
      %1611 = vrot.lane.b32.xlu0 %v736, 28
      %v1612 = vpop.permute.xlu0 %1611
      %1613 = vrot.lane.b32.xlu0 %v737, 28
      %v1614 = vpop.permute.xlu0 %1613
      %1615 = vrot.lane.b32.xlu0 %v738, 28
      %v1616 = vpop.permute.xlu0 %1615
      %1617 = vrot.lane.b32.xlu0 %v739, 28
      %v1618 = vpop.permute.xlu0 %1617
      %1619 = vrot.lane.b32.xlu0 %v740, 28
      %v1620 = vpop.permute.xlu0 %1619
      %1621 = vrot.lane.b32.xlu0 %v741, 28
      %v1622 = vpop.permute.xlu0 %1621
      %1623 = vrot.lane.b32.xlu0 %v742, 28
      %v1624 = vpop.permute.xlu0 %1623
      %1625 = vrot.lane.b32.xlu0 %v743, 28
      %v1626 = vpop.permute.xlu0 %1625
      %1627 = vrot.lane.b32.xlu0 %v744, 28
      %v1628 = vpop.permute.xlu0 %1627
      %1629 = vrot.lane.b32.xlu0 %v745, 28
      %v1630 = vpop.permute.xlu0 %1629
      %1631 = vrot.lane.b32.xlu0 %v746, 28
      %v1632 = vpop.permute.xlu0 %1631
      %1633 = vrot.lane.b32.xlu0 %v747, 28
      %v1634 = vpop.permute.xlu0 %1633
      %1635 = vrot.lane.b32.xlu0 %v748, 28
      %v1636 = vpop.permute.xlu0 %1635
      %1637 = vrot.lane.b32.xlu0 %v749, 28
      %v1638 = vpop.permute.xlu0 %1637
      %1639 = vrot.lane.b32.xlu0 %v750, 28
      %v1640 = vpop.permute.xlu0 %1639
      %1641 = vrot.lane.b32.xlu0 %v751, 28
      %v1642 = vpop.permute.xlu0 %1641
      %1643 = vrot.lane.b32.xlu0 %v752, 28
      %v1644 = vpop.permute.xlu0 %1643
      %1645 = vrot.lane.b32.xlu0 %v753, 28
      %v1646 = vpop.permute.xlu0 %1645
      %1647 = vrot.lane.b32.xlu0 %v754, 28
      %v1648 = vpop.permute.xlu0 %1647
      %1649 = vrot.lane.b32.xlu0 %v755, 28
      %v1650 = vpop.permute.xlu0 %1649
      %1651 = vrot.lane.b32.xlu0 %v756, 28
      %v1652 = vpop.permute.xlu0 %1651
      %1717 = vrot.lane.b32.xlu0 %v757, 32
      %v1718 = vpop.permute.xlu0 %1717
      %1719 = vrot.lane.b32.xlu0 %v758, 32
      %v1720 = vpop.permute.xlu0 %1719
      %1721 = vrot.lane.b32.xlu0 %v759, 32
      %v1722 = vpop.permute.xlu0 %1721
      %1723 = vrot.lane.b32.xlu0 %v760, 32
      %v1724 = vpop.permute.xlu0 %1723
      %1725 = vrot.lane.b32.xlu0 %v761, 32
      %v1726 = vpop.permute.xlu0 %1725
      %1727 = vrot.lane.b32.xlu0 %v762, 32
      %v1728 = vpop.permute.xlu0 %1727
      %1729 = vrot.lane.b32.xlu0 %v763, 32
      %v1730 = vpop.permute.xlu0 %1729
      %1731 = vrot.lane.b32.xlu0 %v764, 32
      %v1732 = vpop.permute.xlu0 %1731
      %1733 = vrot.lane.b32.xlu0 %v765, 32
      %v1734 = vpop.permute.xlu0 %1733
      %1735 = vrot.lane.b32.xlu0 %v766, 32
      %v1736 = vpop.permute.xlu0 %1735
      %1737 = vrot.lane.b32.xlu0 %v767, 32
      %v1738 = vpop.permute.xlu0 %1737
      %1739 = vrot.lane.b32.xlu0 %v768, 32
      %v1740 = vpop.permute.xlu0 %1739
      %1741 = vrot.lane.b32.xlu0 %v769, 32
      %v1742 = vpop.permute.xlu0 %1741
      %1743 = vrot.lane.b32.xlu0 %v770, 32
      %v1744 = vpop.permute.xlu0 %1743
      %1745 = vrot.lane.b32.xlu0 %v771, 32
      %v1746 = vpop.permute.xlu0 %1745
      %1747 = vrot.lane.b32.xlu0 %v772, 32
      %v1748 = vpop.permute.xlu0 %1747
      %1749 = vrot.lane.b32.xlu0 %v773, 32
      %v1750 = vpop.permute.xlu0 %1749
      %1751 = vrot.lane.b32.xlu0 %v774, 32
      %v1752 = vpop.permute.xlu0 %1751
      %1753 = vrot.lane.b32.xlu0 %v775, 32
      %v1754 = vpop.permute.xlu0 %1753
      %1755 = vrot.lane.b32.xlu0 %v776, 32
      %v1756 = vpop.permute.xlu0 %1755
      %1757 = vrot.lane.b32.xlu0 %v777, 32
      %v1758 = vpop.permute.xlu0 %1757
      %1759 = vrot.lane.b32.xlu0 %v778, 32
      %v1760 = vpop.permute.xlu0 %1759
      %1761 = vrot.lane.b32.xlu0 %v779, 32
      %v1762 = vpop.permute.xlu0 %1761
      %1763 = vrot.lane.b32.xlu0 %v780, 32
      %v1764 = vpop.permute.xlu0 %1763
      %1765 = vrot.lane.b32.xlu0 %v781, 32
      %v1766 = vpop.permute.xlu0 %1765
      %1767 = vrot.lane.b32.xlu0 %v782, 32
      %v1768 = vpop.permute.xlu0 %1767
      %1769 = vrot.lane.b32.xlu0 %v783, 32
      %v1770 = vpop.permute.xlu0 %1769
      %1771 = vrot.lane.b32.xlu0 %v784, 32
      %v1772 = vpop.permute.xlu0 %1771
      %1773 = vrot.lane.b32.xlu0 %v785, 32
      %v1774 = vpop.permute.xlu0 %1773
      %1775 = vrot.lane.b32.xlu0 %v786, 32
      %v1776 = vpop.permute.xlu0 %1775
      %1777 = vrot.lane.b32.xlu0 %v787, 32
      %v1778 = vpop.permute.xlu0 %1777
      %1779 = vrot.lane.b32.xlu0 %v788, 32
      %v1780 = vpop.permute.xlu0 %1779
      %v1813 = vsel %vm411, %v500, %v822
      %v1814 = vsel %vm411, %v501, %v824
      %v1815 = vsel %vm411, %v502, %v826
      %v1816 = vsel %vm411, %v503, %v828
      %v1817 = vsel %vm411, %v504, %v830
      %v1818 = vsel %vm411, %v505, %v832
      %v1819 = vsel %vm411, %v506, %v834
      %v1820 = vsel %vm411, %v507, %v836
      %v1821 = vsel %vm411, %v508, %v838
      %v1822 = vsel %vm411, %v509, %v840
      %v1823 = vsel %vm411, %v510, %v842
      %v1824 = vsel %vm411, %v511, %v844
      %v1825 = vsel %vm411, %v512, %v846
      %v1826 = vsel %vm411, %v513, %v848
      %v1827 = vsel %vm411, %v514, %v850
      %v1828 = vsel %vm411, %v515, %v852
      %v1829 = vsel %vm411, %v516, %v854
      %v1830 = vsel %vm411, %v517, %v856
      %v1831 = vsel %vm411, %v518, %v858
      %v1832 = vsel %vm411, %v519, %v860
      %v1833 = vsel %vm411, %v520, %v862
      %v1834 = vsel %vm411, %v521, %v864
      %v1835 = vsel %vm411, %v522, %v866
      %v1836 = vsel %vm411, %v523, %v868
      %v1837 = vsel %vm411, %v524, %v870
      %v1838 = vsel %vm411, %v525, %v872
      %v1839 = vsel %vm411, %v526, %v874
      %v1840 = vsel %vm411, %v527, %v876
      %v1841 = vsel %vm411, %v528, %v878
      %v1842 = vsel %vm411, %v529, %v880
      %v1843 = vsel %vm411, %v530, %v882
      %v1844 = vsel %vm411, %v531, %v884
      %vm1845 = vcmask 64512
      %v1846 = vsel %vm1845, %v1813, %v950
      %v1847 = vsel %vm1845, %v1814, %v952
      %v1848 = vsel %vm1845, %v1815, %v954
      %v1849 = vsel %vm1845, %v1816, %v956
      %v1850 = vsel %vm1845, %v1817, %v958
      %v1851 = vsel %vm1845, %v1818, %v960
      %v1852 = vsel %vm1845, %v1819, %v962
      %v1853 = vsel %vm1845, %v1820, %v964
      %v1854 = vsel %vm1845, %v1821, %v966
      %v1855 = vsel %vm1845, %v1822, %v968
      %v1856 = vsel %vm1845, %v1823, %v970
      %v1857 = vsel %vm1845, %v1824, %v972
      %v1858 = vsel %vm1845, %v1825, %v974
      %v1859 = vsel %vm1845, %v1826, %v976
      %v1860 = vsel %vm1845, %v1827, %v978
      %v1861 = vsel %vm1845, %v1828, %v980
      %v1862 = vsel %vm1845, %v1829, %v982
      %v1863 = vsel %vm1845, %v1830, %v984
      %v1864 = vsel %vm1845, %v1831, %v986
      %v1865 = vsel %vm1845, %v1832, %v988
      %v1866 = vsel %vm1845, %v1833, %v990
      %v1867 = vsel %vm1845, %v1834, %v992
      %v1868 = vsel %vm1845, %v1835, %v994
      %v1869 = vsel %vm1845, %v1836, %v996
      %v1870 = vsel %vm1845, %v1837, %v998
      %v1871 = vsel %vm1845, %v1838, %v1000
      %v1872 = vsel %vm1845, %v1839, %v1002
      %v1873 = vsel %vm1845, %v1840, %v1004
      %v1874 = vsel %vm1845, %v1841, %v1006
      %v1875 = vsel %vm1845, %v1842, %v1008
      %v1876 = vsel %vm1845, %v1843, %v1010
      %v1877 = vsel %vm1845, %v1844, %v1012
      %vm1878 = vcmask 97280
      %v1879 = vsel %vm1878, %v1846, %v1078
      %v1880 = vsel %vm1878, %v1847, %v1080
      %v1881 = vsel %vm1878, %v1848, %v1082
      %v1882 = vsel %vm1878, %v1849, %v1084
      %v1883 = vsel %vm1878, %v1850, %v1086
      %v1884 = vsel %vm1878, %v1851, %v1088
      %v1885 = vsel %vm1878, %v1852, %v1090
      %v1886 = vsel %vm1878, %v1853, %v1092
      %v1887 = vsel %vm1878, %v1854, %v1094
      %v1888 = vsel %vm1878, %v1855, %v1096
      %v1889 = vsel %vm1878, %v1856, %v1098
      %v1890 = vsel %vm1878, %v1857, %v1100
      %v1891 = vsel %vm1878, %v1858, %v1102
      %v1892 = vsel %vm1878, %v1859, %v1104
      %v1893 = vsel %vm1878, %v1860, %v1106
      %v1894 = vsel %vm1878, %v1861, %v1108
      %v1895 = vsel %vm1878, %v1862, %v1110
      %v1896 = vsel %vm1878, %v1863, %v1112
      %v1897 = vsel %vm1878, %v1864, %v1114
      %v1898 = vsel %vm1878, %v1865, %v1116
      %v1899 = vsel %vm1878, %v1866, %v1118
      %v1900 = vsel %vm1878, %v1867, %v1120
      %v1901 = vsel %vm1878, %v1868, %v1122
      %v1902 = vsel %vm1878, %v1869, %v1124
      %v1903 = vsel %vm1878, %v1870, %v1126
      %v1904 = vsel %vm1878, %v1871, %v1128
      %v1905 = vsel %vm1878, %v1872, %v1130
      %v1906 = vsel %vm1878, %v1873, %v1132
      %v1907 = vsel %vm1878, %v1874, %v1134
      %v1908 = vsel %vm1878, %v1875, %v1136
      %v1909 = vsel %vm1878, %v1876, %v1138
      %v1910 = vsel %vm1878, %v1877, %v1140
      %vm1911 = vcmask 130048
      %v1912 = vsel %vm1911, %v1879, %v1206
      %v1913 = vsel %vm1911, %v1880, %v1208
      %v1914 = vsel %vm1911, %v1881, %v1210
      %v1915 = vsel %vm1911, %v1882, %v1212
      %v1916 = vsel %vm1911, %v1883, %v1214
      %v1917 = vsel %vm1911, %v1884, %v1216
      %v1918 = vsel %vm1911, %v1885, %v1218
      %v1919 = vsel %vm1911, %v1886, %v1220
      %v1920 = vsel %vm1911, %v1887, %v1222
      %v1921 = vsel %vm1911, %v1888, %v1224
      %v1922 = vsel %vm1911, %v1889, %v1226
      %v1923 = vsel %vm1911, %v1890, %v1228
      %v1924 = vsel %vm1911, %v1891, %v1230
      %v1925 = vsel %vm1911, %v1892, %v1232
      %v1926 = vsel %vm1911, %v1893, %v1234
      %v1927 = vsel %vm1911, %v1894, %v1236
      %v1928 = vsel %vm1911, %v1895, %v1238
      %v1929 = vsel %vm1911, %v1896, %v1240
      %v1930 = vsel %vm1911, %v1897, %v1242
      %v1931 = vsel %vm1911, %v1898, %v1244
      %v1932 = vsel %vm1911, %v1899, %v1246
      %v1933 = vsel %vm1911, %v1900, %v1248
      %v1934 = vsel %vm1911, %v1901, %v1250
      %v1935 = vsel %vm1911, %v1902, %v1252
      %v1936 = vsel %vm1911, %v1903, %v1254
      %v1937 = vsel %vm1911, %v1904, %v1256
      %v1938 = vsel %vm1911, %v1905, %v1258
      %v1939 = vsel %vm1911, %v1906, %v1260
      %v1940 = vsel %vm1911, %v1907, %v1262
      %v1941 = vsel %vm1911, %v1908, %v1264
      %v1942 = vsel %vm1911, %v1909, %v1266
      %v1943 = vsel %vm1911, %v1910, %v1268
      %vm1944 = vcmask 162816
      %v1945 = vsel %vm1944, %v1912, %v1334
      %v1946 = vsel %vm1944, %v1913, %v1336
      %v1947 = vsel %vm1944, %v1914, %v1338
      %v1948 = vsel %vm1944, %v1915, %v1340
      %v1949 = vsel %vm1944, %v1916, %v1342
      %v1950 = vsel %vm1944, %v1917, %v1344
      %v1951 = vsel %vm1944, %v1918, %v1346
      %v1952 = vsel %vm1944, %v1919, %v1348
      %v1953 = vsel %vm1944, %v1920, %v1350
      %v1954 = vsel %vm1944, %v1921, %v1352
      %v1955 = vsel %vm1944, %v1922, %v1354
      %v1956 = vsel %vm1944, %v1923, %v1356
      %v1957 = vsel %vm1944, %v1924, %v1358
      %v1958 = vsel %vm1944, %v1925, %v1360
      %v1959 = vsel %vm1944, %v1926, %v1362
      %v1960 = vsel %vm1944, %v1927, %v1364
      %v1961 = vsel %vm1944, %v1928, %v1366
      %v1962 = vsel %vm1944, %v1929, %v1368
      %v1963 = vsel %vm1944, %v1930, %v1370
      %v1964 = vsel %vm1944, %v1931, %v1372
      %v1965 = vsel %vm1944, %v1932, %v1374
      %v1966 = vsel %vm1944, %v1933, %v1376
      %v1967 = vsel %vm1944, %v1934, %v1378
      %v1968 = vsel %vm1944, %v1935, %v1380
      %v1969 = vsel %vm1944, %v1936, %v1382
      %v1970 = vsel %vm1944, %v1937, %v1384
      %v1971 = vsel %vm1944, %v1938, %v1386
      %v1972 = vsel %vm1944, %v1939, %v1388
      %v1973 = vsel %vm1944, %v1940, %v1390
      %v1974 = vsel %vm1944, %v1941, %v1392
      %v1975 = vsel %vm1944, %v1942, %v1394
      %v1976 = vsel %vm1944, %v1943, %v1396
      %vm1977 = vcmask 195584
      %v1978 = vsel %vm1977, %v1945, %v1462
      %v1979 = vsel %vm1977, %v1946, %v1464
      %v1980 = vsel %vm1977, %v1947, %v1466
      %v1981 = vsel %vm1977, %v1948, %v1468
      %v1982 = vsel %vm1977, %v1949, %v1470
      %v1983 = vsel %vm1977, %v1950, %v1472
      %v1984 = vsel %vm1977, %v1951, %v1474
      %v1985 = vsel %vm1977, %v1952, %v1476
      %v1986 = vsel %vm1977, %v1953, %v1478
      %v1987 = vsel %vm1977, %v1954, %v1480
      %v1988 = vsel %vm1977, %v1955, %v1482
      %v1989 = vsel %vm1977, %v1956, %v1484
      %v1990 = vsel %vm1977, %v1957, %v1486
      %v1991 = vsel %vm1977, %v1958, %v1488
      %v1992 = vsel %vm1977, %v1959, %v1490
      %v1993 = vsel %vm1977, %v1960, %v1492
      %v1994 = vsel %vm1977, %v1961, %v1494
      %v1995 = vsel %vm1977, %v1962, %v1496
      %v1996 = vsel %vm1977, %v1963, %v1498
      %v1997 = vsel %vm1977, %v1964, %v1500
      %v1998 = vsel %vm1977, %v1965, %v1502
      %v1999 = vsel %vm1977, %v1966, %v1504
      %v2000 = vsel %vm1977, %v1967, %v1506
      %v2001 = vsel %vm1977, %v1968, %v1508
      %v2002 = vsel %vm1977, %v1969, %v1510
      %v2003 = vsel %vm1977, %v1970, %v1512
      %v2004 = vsel %vm1977, %v1971, %v1514
      %v2005 = vsel %vm1977, %v1972, %v1516
      %v2006 = vsel %vm1977, %v1973, %v1518
      %v2007 = vsel %vm1977, %v1974, %v1520
      %v2008 = vsel %vm1977, %v1975, %v1522
      %v2009 = vsel %vm1977, %v1976, %v1524
      %vm2010 = vcmask 228352
      %v2011 = vsel %vm2010, %v1978, %v1590
      %v2012 = vsel %vm2010, %v1979, %v1592
      %v2013 = vsel %vm2010, %v1980, %v1594
      %v2014 = vsel %vm2010, %v1981, %v1596
      %v2015 = vsel %vm2010, %v1982, %v1598
      %v2016 = vsel %vm2010, %v1983, %v1600
      %v2017 = vsel %vm2010, %v1984, %v1602
      %v2018 = vsel %vm2010, %v1985, %v1604
      %v2019 = vsel %vm2010, %v1986, %v1606
      %v2020 = vsel %vm2010, %v1987, %v1608
      %v2021 = vsel %vm2010, %v1988, %v1610
      %v2022 = vsel %vm2010, %v1989, %v1612
      %v2023 = vsel %vm2010, %v1990, %v1614
      %v2024 = vsel %vm2010, %v1991, %v1616
      %v2025 = vsel %vm2010, %v1992, %v1618
      %v2026 = vsel %vm2010, %v1993, %v1620
      %v2027 = vsel %vm2010, %v1994, %v1622
      %v2028 = vsel %vm2010, %v1995, %v1624
      %v2029 = vsel %vm2010, %v1996, %v1626
      %v2030 = vsel %vm2010, %v1997, %v1628
      %v2031 = vsel %vm2010, %v1998, %v1630
      %v2032 = vsel %vm2010, %v1999, %v1632
      %v2033 = vsel %vm2010, %v2000, %v1634
      %v2034 = vsel %vm2010, %v2001, %v1636
      %v2035 = vsel %vm2010, %v2002, %v1638
      %v2036 = vsel %vm2010, %v2003, %v1640
      %v2037 = vsel %vm2010, %v2004, %v1642
      %v2038 = vsel %vm2010, %v2005, %v1644
      %v2039 = vsel %vm2010, %v2006, %v1646
      %v2040 = vsel %vm2010, %v2007, %v1648
      %v2041 = vsel %vm2010, %v2008, %v1650
      %v2042 = vsel %vm2010, %v2009, %v1652
      %vm2043 = vcmask 261120
      %v2044 = vsel %vm2043, %v2011, %v1718
      %v2045 = vsel %vm2043, %v2012, %v1720
      %v2046 = vsel %vm2043, %v2013, %v1722
      %v2047 = vsel %vm2043, %v2014, %v1724
      %v2048 = vsel %vm2043, %v2015, %v1726
      %v2049 = vsel %vm2043, %v2016, %v1728
      %v2050 = vsel %vm2043, %v2017, %v1730
      %v2051 = vsel %vm2043, %v2018, %v1732
      %v2052 = vsel %vm2043, %v2019, %v1734
      %v2053 = vsel %vm2043, %v2020, %v1736
      %v2054 = vsel %vm2043, %v2021, %v1738
      %v2055 = vsel %vm2043, %v2022, %v1740
      %v2056 = vsel %vm2043, %v2023, %v1742
      %v2057 = vsel %vm2043, %v2024, %v1744
      %v2058 = vsel %vm2043, %v2025, %v1746
      %v2059 = vsel %vm2043, %v2026, %v1748
      %v2060 = vsel %vm2043, %v2027, %v1750
      %v2061 = vsel %vm2043, %v2028, %v1752
      %v2062 = vsel %vm2043, %v2029, %v1754
      %v2063 = vsel %vm2043, %v2030, %v1756
      %v2064 = vsel %vm2043, %v2031, %v1758
      %v2065 = vsel %vm2043, %v2032, %v1760
      %v2066 = vsel %vm2043, %v2033, %v1762
      %v2067 = vsel %vm2043, %v2034, %v1764
      %v2068 = vsel %vm2043, %v2035, %v1766
      %v2069 = vsel %vm2043, %v2036, %v1768
      %v2070 = vsel %vm2043, %v2037, %v1770
      %v2071 = vsel %vm2043, %v2038, %v1772
      %v2072 = vsel %vm2043, %v2039, %v1774
      %v2073 = vsel %vm2043, %v2040, %v1776
      %v2074 = vsel %vm2043, %v2041, %v1778
      %v2075 = vsel %vm2043, %v2042, %v1780
      %v2076 = vld [vmem:[%s3] sm:$0xff]
      %v2077 = vld [vmem:[%s3 + $0x8] sm:$0xff]
      %v2078 = vld [vmem:[%s3 + $0x10] sm:$0xff]
      %v2079 = vld [vmem:[%s3 + $0x18] sm:$0xff]
      %v2080 = vld [vmem:[%s3 + $0x20] sm:$0xf]
      %vm2081 = vcmask 293888
      %v2083 = vsel %vm2081, %v2044, 0
      %v2086 = vsel %vm2081, %v2045, 0
      %v2089 = vsel %vm2081, %v2046, 0
      %v2092 = vsel %vm2081, %v2047, 0
      %v2095 = vsel %vm2081, %v2048, 0
      %v2098 = vsel %vm2081, %v2049, 0
      %v2101 = vsel %vm2081, %v2050, 0
      %v2104 = vsel %vm2081, %v2051, 0
      %v2107 = vsel %vm2081, %v2052, 0
      %v2110 = vsel %vm2081, %v2053, 0
      %v2113 = vsel %vm2081, %v2054, 0
      %v2116 = vsel %vm2081, %v2055, 0
      %v2119 = vsel %vm2081, %v2056, 0
      %v2122 = vsel %vm2081, %v2057, 0
      %v2125 = vsel %vm2081, %v2058, 0
      %v2128 = vsel %vm2081, %v2059, 0
      %v2131 = vsel %vm2081, %v2060, 0
      %v2134 = vsel %vm2081, %v2061, 0
      %v2137 = vsel %vm2081, %v2062, 0
      %v2140 = vsel %vm2081, %v2063, 0
      %v2143 = vsel %vm2081, %v2064, 0
      %v2146 = vsel %vm2081, %v2065, 0
      %v2149 = vsel %vm2081, %v2066, 0
      %v2152 = vsel %vm2081, %v2067, 0
      %v2155 = vsel %vm2081, %v2068, 0
      %v2158 = vsel %vm2081, %v2069, 0
      %v2161 = vsel %vm2081, %v2070, 0
      %v2164 = vsel %vm2081, %v2071, 0
      %v2167 = vsel %vm2081, %v2072, 0
      %v2170 = vsel %vm2081, %v2073, 0
      %v2173 = vsel %vm2081, %v2074, 0
      %v2176 = vsel %vm2081, %v2075, 0
      %vm2178 = vcmask 1043456
      %v2180 = vsel %vm2178, %v2080, 0
      %2182 = vmatprep.subr.mxu0 0.0
      %2183 = vmatpush1.msra.mxu0 0.0
      %2184 = vmatprep.subr.mxu0 0.0
      %2185 = vmatpush1.msra.mxu0 0.0
      %2186 = vmatprep.subr.mxu0 0.0
      %2187 = vmatpush1.msra.mxu0 0.0
      %2188 = vmatprep.subr.mxu0 0.0
      %2189 = vmatpush1.msra.mxu0 0.0
      %2190 = vmatprep.subr.mxu0 0.0
      %2191 = vmatpush1.msra.mxu0 0.0
      %2192 = vmatprep.subr.mxu0 0.0
      %2193 = vmatpush1.msra.mxu0 0.0
      %2194 = vmatprep.subr.mxu0 0.0
      %2195 = vmatpush1.msra.mxu0 0.0
      %2196 = vmatprep.subr.mxu0 0.0
      %2197 = vmatpush1.msra.mxu0 0.0
      %2198 = vmatprep.subr.mxu0 0.0
      %2199 = vmatpush1.msra.mxu0 0.0
      %2200 = vmatprep.subr.mxu0 0.0
      %2201 = vmatpush1.msra.mxu0 0.0
      %2202 = vmatprep.subr.mxu0 0.0
      %2203 = vmatpush1.msra.mxu0 0.0
      %2204 = vmatprep.subr.mxu0 0.0
      %2205 = vmatpush1.msra.mxu0 %v2180
      %2206 = vmatprep.subr.mxu0 0.0
      %2207 = vmatpush1.msra.mxu0 %v2079
      %2208 = vmatprep.subr.mxu0 0.0
      %2209 = vmatpush1.msra.mxu0 %v2078
      %2210 = vmatprep.subr.mxu0 0.0
      %2211 = vmatpush1.msra.mxu0 %v2077
      %2212 = vmatprep.subr.mxu0 0.0
      %2213 = vmatpush1.msra.mxu0 %v2076
      %2214 = vmatprep.subr.mxu0 0.0
      %2215 = vmatpush2.msra.mxu0 0.0
      %2216 = vmatprep.subr.mxu0 0.0
      %2217 = vmatpush2.msra.mxu0 0.0
      %2218 = vmatprep.subr.mxu0 0.0
      %2219 = vmatpush2.msra.mxu0 0.0
      %2220 = vmatprep.subr.mxu0 0.0
      %2221 = vmatpush2.msra.mxu0 0.0
      %2222 = vmatprep.subr.mxu0 0.0
      %2223 = vmatpush2.msra.mxu0 0.0
      %2224 = vmatprep.subr.mxu0 0.0
      %2225 = vmatpush2.msra.mxu0 0.0
      %2226 = vmatprep.subr.mxu0 0.0
      %2227 = vmatpush2.msra.mxu0 0.0
      %2228 = vmatprep.subr.mxu0 0.0
      %2229 = vmatpush2.msra.mxu0 0.0
      %2230 = vmatprep.subr.mxu0 0.0
      %2231 = vmatpush2.msra.mxu0 0.0
      %2232 = vmatprep.subr.mxu0 0.0
      %2233 = vmatpush2.msra.mxu0 0.0
      %2234 = vmatprep.subr.mxu0 0.0
      %2235 = vmatpush2.msra.mxu0 0.0
      %2236 = vmatprep.subr.mxu0 0.0
      %2237 = vmatpush2.msra.mxu0 0.0
      %2238 = vmatprep.subr.mxu0 0.0
      %2239 = vmatpush2.msra.mxu0 0.0
      %2240 = vmatprep.subr.mxu0 0.0
      %2241 = vmatpush2.msra.mxu0 0.0
      %2242 = vmatprep.subr.mxu0 0.0
      %2243 = vmatpush2.msra.mxu0 0.0
      %2244 = vmatprep.subr.mxu0 0.0
      %2245 = vmatpush2.msra.mxu0 0.0
      %2246 = vmatprep.mubr.f32.mxu0 0.0
      %2247 = vmatmul.mubr.f32.gmra.mxu0 %v2083
      %v2248 = vpop.f32.mrf.mxu0
      %v2249 = vadd.f32 0.0, %v2248
      %v2250 = vpop.f32.mrf.mxu0
      %2251 = vmatprep.mubr.f32.mxu0 0.0
      %2252 = vmatmul.mubr.f32.gmra.mxu0 %v2086
      %v2253 = vpop.f32.mrf.mxu0
      %v2254 = vadd.f32 0.0, %v2253
      %v2255 = vpop.f32.mrf.mxu0
      %2256 = vmatprep.mubr.f32.mxu0 0.0
      %2257 = vmatmul.mubr.f32.gmra.mxu0 %v2089
      %v2258 = vpop.f32.mrf.mxu0
      %v2259 = vadd.f32 0.0, %v2258
      %v2260 = vpop.f32.mrf.mxu0
      %2261 = vmatprep.mubr.f32.mxu0 0.0
      %2262 = vmatmul.mubr.f32.gmra.mxu0 %v2092
      %v2263 = vpop.f32.mrf.mxu0
      %v2264 = vadd.f32 0.0, %v2263
      %v2265 = vpop.f32.mrf.mxu0
      %2266 = vmatprep.mubr.f32.mxu0 0.0
      %2267 = vmatmul.mubr.f32.gmra.mxu0 %v2095
      %v2268 = vpop.f32.mrf.mxu0
      %v2269 = vadd.f32 0.0, %v2268
      %v2270 = vpop.f32.mrf.mxu0
      %2271 = vmatprep.mubr.f32.mxu0 0.0
      %2272 = vmatmul.mubr.f32.gmra.mxu0 %v2098
      %v2273 = vpop.f32.mrf.mxu0
      %v2274 = vadd.f32 0.0, %v2273
      %v2275 = vpop.f32.mrf.mxu0
      %2276 = vmatprep.mubr.f32.mxu0 0.0
      %2277 = vmatmul.mubr.f32.gmra.mxu0 %v2101
      %v2278 = vpop.f32.mrf.mxu0
      %v2279 = vadd.f32 0.0, %v2278
      %v2280 = vpop.f32.mrf.mxu0
      %2281 = vmatprep.mubr.f32.mxu0 0.0
      %2282 = vmatmul.mubr.f32.gmra.mxu0 %v2104
      %v2283 = vpop.f32.mrf.mxu0
      %v2284 = vadd.f32 0.0, %v2283
      %v2285 = vpop.f32.mrf.mxu0
      %2286 = vmatprep.mubr.f32.mxu0 0.0
      %2287 = vmatmul.mubr.f32.gmra.mxu0 %v2107
      %v2288 = vpop.f32.mrf.mxu0
      %v2289 = vadd.f32 0.0, %v2288
      %v2290 = vpop.f32.mrf.mxu0
      %2291 = vmatprep.mubr.f32.mxu0 0.0
      %2292 = vmatmul.mubr.f32.gmra.mxu0 %v2110
      %v2293 = vpop.f32.mrf.mxu0
      %v2294 = vadd.f32 0.0, %v2293
      %v2295 = vpop.f32.mrf.mxu0
      %2296 = vmatprep.mubr.f32.mxu0 0.0
      %2297 = vmatmul.mubr.f32.gmra.mxu0 %v2113
      %v2298 = vpop.f32.mrf.mxu0
      %v2299 = vadd.f32 0.0, %v2298
      %v2300 = vpop.f32.mrf.mxu0
      %2301 = vmatprep.mubr.f32.mxu0 0.0
      %2302 = vmatmul.mubr.f32.gmra.mxu0 %v2116
      %v2303 = vpop.f32.mrf.mxu0
      %v2304 = vadd.f32 0.0, %v2303
      %v2305 = vpop.f32.mrf.mxu0
      %2306 = vmatprep.mubr.f32.mxu0 0.0
      %2307 = vmatmul.mubr.f32.gmra.mxu0 %v2119
      %v2308 = vpop.f32.mrf.mxu0
      %v2309 = vadd.f32 0.0, %v2308
      %v2310 = vpop.f32.mrf.mxu0
      %2311 = vmatprep.mubr.f32.mxu0 0.0
      %2312 = vmatmul.mubr.f32.gmra.mxu0 %v2122
      %v2313 = vpop.f32.mrf.mxu0
      %v2314 = vadd.f32 0.0, %v2313
      %v2315 = vpop.f32.mrf.mxu0
      %2316 = vmatprep.mubr.f32.mxu0 0.0
      %2317 = vmatmul.mubr.f32.gmra.mxu0 %v2125
      %v2318 = vpop.f32.mrf.mxu0
      %v2319 = vadd.f32 0.0, %v2318
      %v2320 = vpop.f32.mrf.mxu0
      %2321 = vmatprep.mubr.f32.mxu0 0.0
      %2322 = vmatmul.mubr.f32.gmra.mxu0 %v2128
      %v2323 = vpop.f32.mrf.mxu0
      %v2324 = vadd.f32 0.0, %v2323
      %v2325 = vpop.f32.mrf.mxu0
      %2326 = vmatprep.mubr.f32.mxu0 0.0
      %2327 = vmatmul.mubr.f32.gmra.mxu0 %v2131
      %v2328 = vpop.f32.mrf.mxu0
      %v2329 = vadd.f32 0.0, %v2328
      %v2330 = vpop.f32.mrf.mxu0
      %2331 = vmatprep.mubr.f32.mxu0 0.0
      %2332 = vmatmul.mubr.f32.gmra.mxu0 %v2134
      %v2333 = vpop.f32.mrf.mxu0
      %v2334 = vadd.f32 0.0, %v2333
      %v2335 = vpop.f32.mrf.mxu0
      %2336 = vmatprep.mubr.f32.mxu0 0.0
      %2337 = vmatmul.mubr.f32.gmra.mxu0 %v2137
      %v2338 = vpop.f32.mrf.mxu0
      %v2339 = vadd.f32 0.0, %v2338
      %v2340 = vpop.f32.mrf.mxu0
      %2341 = vmatprep.mubr.f32.mxu0 0.0
      %2342 = vmatmul.mubr.f32.gmra.mxu0 %v2140
      %v2343 = vpop.f32.mrf.mxu0
      %v2344 = vadd.f32 0.0, %v2343
      %v2345 = vpop.f32.mrf.mxu0
      %2346 = vmatprep.mubr.f32.mxu0 0.0
      %2347 = vmatmul.mubr.f32.gmra.mxu0 %v2143
      %v2348 = vpop.f32.mrf.mxu0
      %v2349 = vadd.f32 0.0, %v2348
      %v2350 = vpop.f32.mrf.mxu0
      %2351 = vmatprep.mubr.f32.mxu0 0.0
      %2352 = vmatmul.mubr.f32.gmra.mxu0 %v2146
      %v2353 = vpop.f32.mrf.mxu0
      %v2354 = vadd.f32 0.0, %v2353
      %v2355 = vpop.f32.mrf.mxu0
      %2356 = vmatprep.mubr.f32.mxu0 0.0
      %2357 = vmatmul.mubr.f32.gmra.mxu0 %v2149
      %v2358 = vpop.f32.mrf.mxu0
      %v2359 = vadd.f32 0.0, %v2358
      %v2360 = vpop.f32.mrf.mxu0
      %2361 = vmatprep.mubr.f32.mxu0 0.0
      %2362 = vmatmul.mubr.f32.gmra.mxu0 %v2152
      %v2363 = vpop.f32.mrf.mxu0
      %v2364 = vadd.f32 0.0, %v2363
      %v2365 = vpop.f32.mrf.mxu0
      %2366 = vmatprep.mubr.f32.mxu0 0.0
      %2367 = vmatmul.mubr.f32.gmra.mxu0 %v2155
      %v2368 = vpop.f32.mrf.mxu0
      %v2369 = vadd.f32 0.0, %v2368
      %v2370 = vpop.f32.mrf.mxu0
      %2371 = vmatprep.mubr.f32.mxu0 0.0
      %2372 = vmatmul.mubr.f32.gmra.mxu0 %v2158
      %v2373 = vpop.f32.mrf.mxu0
      %v2374 = vadd.f32 0.0, %v2373
      %v2375 = vpop.f32.mrf.mxu0
      %2376 = vmatprep.mubr.f32.mxu0 0.0
      %2377 = vmatmul.mubr.f32.gmra.mxu0 %v2161
      %v2378 = vpop.f32.mrf.mxu0
      %v2379 = vadd.f32 0.0, %v2378
      %v2380 = vpop.f32.mrf.mxu0
      %2381 = vmatprep.mubr.f32.mxu0 0.0
      %2382 = vmatmul.mubr.f32.gmra.mxu0 %v2164
      %v2383 = vpop.f32.mrf.mxu0
      %v2384 = vadd.f32 0.0, %v2383
      %v2385 = vpop.f32.mrf.mxu0
      %2386 = vmatprep.mubr.f32.mxu0 0.0
      %2387 = vmatmul.mubr.f32.gmra.mxu0 %v2167
      %v2388 = vpop.f32.mrf.mxu0
      %v2389 = vadd.f32 0.0, %v2388
      %v2390 = vpop.f32.mrf.mxu0
      %2391 = vmatprep.mubr.f32.mxu0 0.0
      %2392 = vmatmul.mubr.f32.gmra.mxu0 %v2170
      %v2393 = vpop.f32.mrf.mxu0
      %v2394 = vadd.f32 0.0, %v2393
      %v2395 = vpop.f32.mrf.mxu0
      %2396 = vmatprep.mubr.f32.mxu0 0.0
      %2397 = vmatmul.mubr.f32.gmra.mxu0 %v2173
      %v2398 = vpop.f32.mrf.mxu0
      %v2399 = vadd.f32 0.0, %v2398
      %v2400 = vpop.f32.mrf.mxu0
      %2401 = vmatprep.mubr.f32.mxu0 0.0
      %2402 = vmatmul.mubr.f32.gmra.mxu0 %v2176
      %v2403 = vpop.f32.mrf.mxu0
      %v2404 = vadd.f32 0.0, %v2403
      %v2405 = vpop.f32.mrf.mxu0
      %2406 = vdwg.mxu0
      %v2407 = vsel %vm1845, %v2249, 0.0
      %v2408 = vsel %vm1845, %v2254, 0.0
      %v2409 = vadd.f32 %v2407, %v2408
      %v2410 = vsel %vm1845, %v2259, 0.0
      %v2411 = vadd.f32 %v2409, %v2410
      %v2412 = vsel %vm1845, %v2264, 0.0
      %v2413 = vadd.f32 %v2411, %v2412
      %v2414 = vsel %vm1845, %v2269, 0.0
      %v2415 = vadd.f32 %v2413, %v2414
      %v2416 = vsel %vm1845, %v2274, 0.0
      %v2417 = vadd.f32 %v2415, %v2416
      %v2418 = vsel %vm1845, %v2279, 0.0
      %v2419 = vadd.f32 %v2417, %v2418
      %v2420 = vsel %vm1845, %v2284, 0.0
      %v2421 = vadd.f32 %v2419, %v2420
      %v2422 = vsel %vm1845, %v2289, 0.0
      %v2423 = vadd.f32 %v2421, %v2422
      %v2424 = vsel %vm1845, %v2294, 0.0
      %v2425 = vadd.f32 %v2423, %v2424
      %v2426 = vsel %vm1845, %v2299, 0.0
      %v2427 = vadd.f32 %v2425, %v2426
      %v2428 = vsel %vm1845, %v2304, 0.0
      %v2429 = vadd.f32 %v2427, %v2428
      %v2430 = vsel %vm1845, %v2309, 0.0
      %v2431 = vadd.f32 %v2429, %v2430
      %v2432 = vsel %vm1845, %v2314, 0.0
      %v2433 = vadd.f32 %v2431, %v2432
      %v2434 = vsel %vm1845, %v2319, 0.0
      %v2435 = vadd.f32 %v2433, %v2434
      %v2436 = vsel %vm1845, %v2324, 0.0
      %v2437 = vadd.f32 %v2435, %v2436
      %v2438 = vsel %vm1845, %v2329, 0.0
      %v2439 = vadd.f32 %v2437, %v2438
      %v2440 = vsel %vm1845, %v2334, 0.0
      %v2441 = vadd.f32 %v2439, %v2440
      %v2442 = vsel %vm1845, %v2339, 0.0
      %v2443 = vadd.f32 %v2441, %v2442
      %v2444 = vsel %vm1845, %v2344, 0.0
      %v2445 = vadd.f32 %v2443, %v2444
      %v2446 = vsel %vm1845, %v2349, 0.0
      %v2447 = vadd.f32 %v2445, %v2446
      %v2448 = vsel %vm1845, %v2354, 0.0
      %v2449 = vadd.f32 %v2447, %v2448
      %v2450 = vsel %vm1845, %v2359, 0.0
      %v2451 = vadd.f32 %v2449, %v2450
      %v2452 = vsel %vm1845, %v2364, 0.0
      %v2453 = vadd.f32 %v2451, %v2452
      %v2454 = vsel %vm1845, %v2369, 0.0
      %v2455 = vadd.f32 %v2453, %v2454
      %v2456 = vsel %vm1845, %v2374, 0.0
      %v2457 = vadd.f32 %v2455, %v2456
      %v2458 = vsel %vm1845, %v2379, 0.0
      %v2459 = vadd.f32 %v2457, %v2458
      %v2460 = vsel %vm1845, %v2384, 0.0
      %v2461 = vadd.f32 %v2459, %v2460
      %v2462 = vsel %vm1845, %v2389, 0.0
      %v2463 = vadd.f32 %v2461, %v2462
      %v2464 = vsel %vm1845, %v2394, 0.0
      %v2465 = vadd.f32 %v2463, %v2464
      %v2466 = vsel %vm1845, %v2399, 0.0
      %v2467 = vadd.f32 %v2465, %v2466
      %v2468 = vsel %vm1845, %v2404, 0.0
      %v2469 = vadd.f32 %v2467, %v2468
      %v2470 = vrot.slane %v2469, 4
      %v2471 = vadd.f32 %v2469, %v2470
      %v2472 = vrot.slane %v2471, 2
      %v2473 = vadd.f32 %v2471, %v2472
      %v2474 = vrot.slane %v2473, 1
      %v2475 = vadd.f32 %v2473, %v2474
      %vm2476 = vcmask 57344
      %2477 = vst.msk [vmem:[%s265] sm:$0x1] %vm2476, %v2475
      %v2478 = vmul.f32 %v2249, %v2249
      %v2479 = vmul.f32 %v2254, %v2254
      %v2480 = vmul.f32 %v2259, %v2259
      %v2481 = vmul.f32 %v2264, %v2264
      %v2482 = vmul.f32 %v2269, %v2269
      %v2483 = vmul.f32 %v2274, %v2274
      %v2484 = vmul.f32 %v2279, %v2279
      %v2485 = vmul.f32 %v2284, %v2284
      %v2486 = vmul.f32 %v2289, %v2289
      %v2487 = vmul.f32 %v2294, %v2294
      %v2488 = vmul.f32 %v2299, %v2299
      %v2489 = vmul.f32 %v2304, %v2304
      %v2490 = vmul.f32 %v2309, %v2309
      %v2491 = vmul.f32 %v2314, %v2314
      %v2492 = vmul.f32 %v2319, %v2319
      %v2493 = vmul.f32 %v2324, %v2324
      %v2494 = vmul.f32 %v2329, %v2329
      %v2495 = vmul.f32 %v2334, %v2334
      %v2496 = vmul.f32 %v2339, %v2339
      %v2497 = vmul.f32 %v2344, %v2344
      %v2498 = vmul.f32 %v2349, %v2349
      %v2499 = vmul.f32 %v2354, %v2354
      %v2500 = vmul.f32 %v2359, %v2359
      %v2501 = vmul.f32 %v2364, %v2364
      %v2502 = vmul.f32 %v2369, %v2369
      %v2503 = vmul.f32 %v2374, %v2374
      %v2504 = vmul.f32 %v2379, %v2379
      %v2505 = vmul.f32 %v2384, %v2384
      %v2506 = vmul.f32 %v2389, %v2389
      %v2507 = vmul.f32 %v2394, %v2394
      %v2508 = vmul.f32 %v2399, %v2399
      %v2509 = vmul.f32 %v2404, %v2404
      %v2510 = vsel %vm1845, %v2478, 0.0
      %v2511 = vsel %vm1845, %v2479, 0.0
      %v2512 = vadd.f32 %v2510, %v2511
      %v2513 = vsel %vm1845, %v2480, 0.0
      %v2514 = vadd.f32 %v2512, %v2513
      %v2515 = vsel %vm1845, %v2481, 0.0
      %v2516 = vadd.f32 %v2514, %v2515
      %v2517 = vsel %vm1845, %v2482, 0.0
      %v2518 = vadd.f32 %v2516, %v2517
      %v2519 = vsel %vm1845, %v2483, 0.0
      %v2520 = vadd.f32 %v2518, %v2519
      %v2521 = vsel %vm1845, %v2484, 0.0
      %v2522 = vadd.f32 %v2520, %v2521
      %v2523 = vsel %vm1845, %v2485, 0.0
      %v2524 = vadd.f32 %v2522, %v2523
      %v2525 = vsel %vm1845, %v2486, 0.0
      %v2526 = vadd.f32 %v2524, %v2525
      %v2527 = vsel %vm1845, %v2487, 0.0
      %v2528 = vadd.f32 %v2526, %v2527
      %v2529 = vsel %vm1845, %v2488, 0.0
      %v2530 = vadd.f32 %v2528, %v2529
      %v2531 = vsel %vm1845, %v2489, 0.0
      %v2532 = vadd.f32 %v2530, %v2531
      %v2533 = vsel %vm1845, %v2490, 0.0
      %v2534 = vadd.f32 %v2532, %v2533
      %v2535 = vsel %vm1845, %v2491, 0.0
      %v2536 = vadd.f32 %v2534, %v2535
      %v2537 = vsel %vm1845, %v2492, 0.0
      %v2538 = vadd.f32 %v2536, %v2537
      %v2539 = vsel %vm1845, %v2493, 0.0
      %v2540 = vadd.f32 %v2538, %v2539
      %v2541 = vsel %vm1845, %v2494, 0.0
      %v2542 = vadd.f32 %v2540, %v2541
      %v2543 = vsel %vm1845, %v2495, 0.0
      %v2544 = vadd.f32 %v2542, %v2543
      %v2545 = vsel %vm1845, %v2496, 0.0
      %v2546 = vadd.f32 %v2544, %v2545
      %v2547 = vsel %vm1845, %v2497, 0.0
      %v2548 = vadd.f32 %v2546, %v2547
      %v2549 = vsel %vm1845, %v2498, 0.0
      %v2550 = vadd.f32 %v2548, %v2549
      %v2551 = vsel %vm1845, %v2499, 0.0
      %v2552 = vadd.f32 %v2550, %v2551
      %v2553 = vsel %vm1845, %v2500, 0.0
      %v2554 = vadd.f32 %v2552, %v2553
      %v2555 = vsel %vm1845, %v2501, 0.0
      %v2556 = vadd.f32 %v2554, %v2555
      %v2557 = vsel %vm1845, %v2502, 0.0
      %v2558 = vadd.f32 %v2556, %v2557
      %v2559 = vsel %vm1845, %v2503, 0.0
      %v2560 = vadd.f32 %v2558, %v2559
      %v2561 = vsel %vm1845, %v2504, 0.0
      %v2562 = vadd.f32 %v2560, %v2561
      %v2563 = vsel %vm1845, %v2505, 0.0
      %v2564 = vadd.f32 %v2562, %v2563
      %v2565 = vsel %vm1845, %v2506, 0.0
      %v2566 = vadd.f32 %v2564, %v2565
      %v2567 = vsel %vm1845, %v2507, 0.0
      %v2568 = vadd.f32 %v2566, %v2567
      %v2569 = vsel %vm1845, %v2508, 0.0
      %v2570 = vadd.f32 %v2568, %v2569
      %v2571 = vsel %vm1845, %v2509, 0.0
      %v2572 = vadd.f32 %v2570, %v2571
      %v2573 = vrot.slane %v2572, 4
      %v2574 = vadd.f32 %v2572, %v2573
      %v2575 = vrot.slane %v2574, 2
      %v2576 = vadd.f32 %v2574, %v2575
      %v2577 = vrot.slane %v2576, 1
      %v2578 = vadd.f32 %v2576, %v2577
      %2579 = vst.msk [vmem:[%s268] sm:$0x1] %vm2476, %v2578
      %2580 = vst.msk [vmem:[%s262] sm:$0xff] %vm1845, %v2249
      %2581 = vst.msk [vmem:[%s262 + $0x8] sm:$0xff] %vm1845, %v2254
      %2582 = vst.msk [vmem:[%s262 + $0x10] sm:$0xff] %vm1845, %v2259
      %2583 = vst.msk [vmem:[%s262 + $0x18] sm:$0xff] %vm1845, %v2264
      %2584 = vst.msk [vmem:[%s262 + $0x20] sm:$0xff] %vm1845, %v2269
      %2585 = vst.msk [vmem:[%s262 + $0x28] sm:$0xff] %vm1845, %v2274
      %2586 = vst.msk [vmem:[%s262 + $0x30] sm:$0xff] %vm1845, %v2279
      %2587 = vst.msk [vmem:[%s262 + $0x38] sm:$0xff] %vm1845, %v2284
      %2588 = vst.msk [vmem:[%s262 + $0x40] sm:$0xff] %vm1845, %v2289
      %2589 = vst.msk [vmem:[%s262 + $0x48] sm:$0xff] %vm1845, %v2294
      %2590 = vst.msk [vmem:[%s262 + $0x50] sm:$0xff] %vm1845, %v2299
      %2591 = vst.msk [vmem:[%s262 + $0x58] sm:$0xff] %vm1845, %v2304
      %2592 = vst.msk [vmem:[%s262 + $0x60] sm:$0xff] %vm1845, %v2309
      %2593 = vst.msk [vmem:[%s262 + $0x68] sm:$0xff] %vm1845, %v2314
      %2594 = vst.msk [vmem:[%s262 + $0x70] sm:$0xff] %vm1845, %v2319
      %2595 = vst.msk [vmem:[%s262 + $0x78] sm:$0xff] %vm1845, %v2324
      %2596 = vst.msk [vmem:[%s262 + $0x80] sm:$0xff] %vm1845, %v2329
      %2597 = vst.msk [vmem:[%s262 + $0x88] sm:$0xff] %vm1845, %v2334
      %2598 = vst.msk [vmem:[%s262 + $0x90] sm:$0xff] %vm1845, %v2339
      %2599 = vst.msk [vmem:[%s262 + $0x98] sm:$0xff] %vm1845, %v2344
      %2600 = vst.msk [vmem:[%s262 + $0xa0] sm:$0xff] %vm1845, %v2349
      %2601 = vst.msk [vmem:[%s262 + $0xa8] sm:$0xff] %vm1845, %v2354
      %2602 = vst.msk [vmem:[%s262 + $0xb0] sm:$0xff] %vm1845, %v2359
      %2603 = vst.msk [vmem:[%s262 + $0xb8] sm:$0xff] %vm1845, %v2364
      %2604 = vst.msk [vmem:[%s262 + $0xc0] sm:$0xff] %vm1845, %v2369
      %2605 = vst.msk [vmem:[%s262 + $0xc8] sm:$0xff] %vm1845, %v2374
      %2606 = vst.msk [vmem:[%s262 + $0xd0] sm:$0xff] %vm1845, %v2379
      %2607 = vst.msk [vmem:[%s262 + $0xd8] sm:$0xff] %vm1845, %v2384
      %2608 = vst.msk [vmem:[%s262 + $0xe0] sm:$0xff] %vm1845, %v2389
      %2609 = vst.msk [vmem:[%s262 + $0xe8] sm:$0xff] %vm1845, %v2394
      %2610 = vst.msk [vmem:[%s262 + $0xf0] sm:$0xff] %vm1845, %v2399
      %2611 = vst.msk [vmem:[%s262 + $0xf8] sm:$0xff] %vm1845, %v2404
      %p2612 = scmp.lt.s32.totalorder %s18, 1
      %s2613 = scalar_select %p2612, %s18, 1
      %s2614 = smul.addr %s2613, 32
      %s2615 = smul.addr %s2614, 8
      %s2616 = scalar_lea.vmem %s4, %s2615
      %p2617 = scmp.lt.s32.totalorder %s18, 1
      %s2618 = scalar_select %p2617, %s18, 1
      %s2619 = scalar_lea.vmem %s5, %s2618
      %p2620 = scmp.lt.s32.totalorder %s18, 1
      %s2621 = scalar_select %p2620, %s18, 1
      %s2622 = scalar_lea.vmem %s6, %s2621
      // Predicated region
      $region37: #{preact_block.4} parent=35 // pred_check
        %p2623 = pneg %p125
      $region38: #{preact_block.4} parent=35 // pred_check_branch
        %2625 = sbr.rel (%p2623) target = $region40
      $region39: #{preact_block.4} parent=35 // pred_region
        _
      $region40: #{preact_block.4} parent=35 // pred_fallthru
        _
      // Predicated region
      $region41: #{preact_block.4} parent=35 // pred_check
        %p2626 = pneg %p151
      $region42: #{preact_block.4} parent=35 // pred_check_branch
        %2628 = sbr.rel (%p2626) target = $region44
      $region43: #{preact_block.4} parent=35 // pred_region
        _
      $region44: #{preact_block.4} parent=35 // pred_fallthru
        _
      // Predicated region
      $region45: #{preact_block.4} parent=35 // pred_check
        %p2629 = pneg %p177
      $region46: #{preact_block.4} parent=35 // pred_check_branch
        %2631 = sbr.rel (%p2629) target = $region48
      $region47: #{preact_block.4} parent=35 // pred_region
        _
      $region48: #{preact_block.4} parent=35 // pred_fallthru
        _
    $region36: #{preact_block.4} parent=5 // pred_fallthru
      _
    %p2632 = scmp.le.s32.totalorder 2, %s13
    // Predicated region
    $region49: #{preact_block.4} parent=5 // pred_check
      %p2633 = pneg %p2632
    $region50: #{preact_block.4} parent=5 // pred_check_branch
      %2635 = sbr.rel (%p2633) target = $region52
    $region51: #{preact_block.4} parent=5 // pred_region
      %s2636 = ssub.s32 %s13, 2
      // Predicated region
      $region53: #{preact_block.4} parent=51 // pred_check
        %p2637 = pneg %p131
      $region54: #{preact_block.4} parent=51 // pred_check_branch
        %2639 = sbr.rel (%p2637) target = $region56
      $region55: #{preact_block.4} parent=51 // pred_region
        %p2640 = scmp.lt.s32.totalorder %s19, 1
        %s2641 = scalar_select %p2640, %s19, 1
        %s2642 = smul.addr %s2641, 32
        %s2643 = smul.addr %s2642, 8
        %s2644 = scalar_lea.vmem %s4, %s2643
      $region56: #{preact_block.4} parent=51 // pred_fallthru
        _
      // Predicated region
      $region57: #{preact_block.4} parent=51 // pred_check
        %p2645 = pneg %p157
      $region58: #{preact_block.4} parent=51 // pred_check_branch
        %2647 = sbr.rel (%p2645) target = $region60
      $region59: #{preact_block.4} parent=51 // pred_region
        %p2648 = scmp.lt.s32.totalorder %s19, 1
        %s2649 = scalar_select %p2648, %s19, 1
        %s2650 = scalar_lea.vmem %s5, %s2649
      $region60: #{preact_block.4} parent=51 // pred_fallthru
        _
      // Predicated region
      $region61: #{preact_block.4} parent=51 // pred_check
        %p2651 = pneg %p183
      $region62: #{preact_block.4} parent=51 // pred_check_branch
        %2653 = sbr.rel (%p2651) target = $region64
      $region63: #{preact_block.4} parent=51 // pred_region
        %p2654 = scmp.lt.s32.totalorder %s19, 1
        %s2655 = scalar_select %p2654, %s19, 1
        %s2656 = scalar_lea.vmem %s6, %s2655
      $region64: #{preact_block.4} parent=51 // pred_fallthru
        _
    $region52: #{preact_block.4} parent=5 // pred_fallthru
      _
  $region6: #{preact_block.4} parent=0 // loop_footer
    %s17 = sadd.s32 1, %s13
  $region7: #{preact_block.4} parent=0 // loop_footer_branch
    %12 = sbr.rel target = $region3
  $region8: #{preact_block.4} parent=0 // loop_exit
    _

// kernel: preact_block.5
$region0: #{preact_block.5}
  #allocation0 [shape = 'u32[]', space=smem, size = 0x4, offset = 0x4, fixed_abs, tag = 'smem constant byte address 0x4 - core index']
  #allocation1 [shape = 'u32[144,128]{1,0:T(1,128)}', space=vmem, size = 0x12000, scoped, tag = 'internal scratch']
  #allocation2 [shape = 'f32[18,18,8]{2,1,0:T(8,128)}', space=vmem, size = 0x36000, scoped, tag = 'scratch operand']
  %s0 = inlined_call_operand.vmem [shape: f32[2,16,16,8], index: 0, kind: input, shape index: {}]
  %s1 = inlined_call_operand.vmem [shape: f32[1,8], index: 1, kind: input, shape index: {}]
  %s2 = inlined_call_operand.vmem [shape: f32[1,8], index: 2, kind: input, shape index: {}]
  %s3 = inlined_call_operand.vmem [shape: f32[72,8], index: 3, kind: input, shape index: {}]
  %s4 = inlined_call_operand.vmem [shape: f32[2,16,16,4], index: 4, kind: input, shape index: {}]
  %s5 = inlined_call_operand.vmem [shape: f32[4,8], index: 5, kind: input, shape index: {}]
  %s6 = inlined_call_operand.vmem [shape: f32[2,16,16,8], index: 6, kind: output, shape index: {}]
  %s7 = sld [smem:[#allocation0]]
  $region57: #{preact_block.5} parent=0
    _
  %s9 = ssub.s32 1, %s7
  %s10 = scalar_select 0, %s9, %s7
  loop: start=0, step=1, limit=4
  $region2: #{preact_block.5} parent=0 // loop_pre_header
    _
  $region3: #{preact_block.5} parent=0 // loop_header
    %s12 = sphi 0, %s16
    %p13 = scmp.ge.s32.totalorder %s12, 4
    %s22 = sphi 0, %s24
    %s25 = sphi 0, %s22
    %s26 = sphi 0, %s25
    %s42 = sphi 0, %s26
    %s46 = sphi 0, %s46
    %s48 = sphi 0, %s46
    %s49 = sphi 0, %s48
    %s63 = sphi 0, %s49
    %s67 = sphi 0, %s67
    %s69 = sphi 0, %s67
    %s70 = sphi 0, %s69
    %s84 = sphi 0, %s70
    %s88 = sphi 0, %s88
    %s90 = sphi 0, %s88
    %s91 = sphi 0, %s90
    %s105 = sphi 0, %s91
    %s111 = sphi 0, %s113
    %s114 = sphi 0, %s111
    %s115 = sphi 0, %s114
    %s131 = sphi 0, %s115
    %s135 = sphi 0, %s135
    %s137 = sphi 0, %s135
    %s138 = sphi 0, %s137
    %s152 = sphi 0, %s138
    %s158 = sphi 0, %s160
    %s161 = sphi 0, %s158
    %s162 = sphi 0, %s161
    %s178 = sphi 0, %s162
  $region4: #{preact_block.5} parent=0 // loop_header_branch
    %15 = sbr.rel (%p13) target = $region8
  $region5: #{preact_block.5} parent=0 // loop_body
    %s17 = ssub.s32 %s12, 1
    %s18 = ssub.s32 %s12, 2
    %s19 = sadd.s32 %s12, 1
    %s20 = ssub.s32 %s12, %s19
    %p21 = scmp.eq.s32.totalorder %s20, 0
    %s23 = sadd.s32 %s22, 1
    %s24 = scalar_select %p21, %s22, %s23
    %p27 = pneg %p21
    %p28 = scmp.eq.s32.totalorder %s12, 1
    %p29 = por %p27, %p28
    %p30 = scmp.ne.s32.totalorder %s22, %s25
    %p31 = scmp.eq.s32.totalorder %s12, 0
    %p32 = por %p30, %p31
    %p33 = scmp.ne.s32.totalorder %s22, %s25
    %p34 = scmp.eq.s32.totalorder %s17, 1
    %p35 = por %p33, %p34
    %p36 = scmp.ne.s32.totalorder %s25, %s26
    %p37 = scmp.eq.s32.totalorder %s17, 0
    %p38 = por %p36, %p37
    %p39 = scmp.ne.s32.totalorder %s25, %s26
    %p40 = scmp.eq.s32.totalorder %s18, 1
    %p41 = por %p39, %p40
    %p43 = scmp.ne.s32.totalorder %s26, %s42
    %p44 = scmp.eq.s32.totalorder %s18, 0
    %p45 = por %p43, %p44
    %s47 = sadd.s32 %s46, 1
    %p50 = scmp.eq.s32.totalorder %s12, 1
    %p51 = scmp.ne.s32.totalorder %s46, %s48
    %p52 = scmp.eq.s32.totalorder %s12, 0
    %p53 = por %p51, %p52
    %p54 = scmp.ne.s32.totalorder %s46, %s48
    %p55 = scmp.eq.s32.totalorder %s17, 1
    %p56 = por %p54, %p55
    %p57 = scmp.ne.s32.totalorder %s48, %s49
    %p58 = scmp.eq.s32.totalorder %s17, 0
    %p59 = por %p57, %p58
    %p60 = scmp.ne.s32.totalorder %s48, %s49
    %p61 = scmp.eq.s32.totalorder %s18, 1
    %p62 = por %p60, %p61
    %p64 = scmp.ne.s32.totalorder %s49, %s63
    %p65 = scmp.eq.s32.totalorder %s18, 0
    %p66 = por %p64, %p65
    %s68 = sadd.s32 %s67, 1
    %p71 = scmp.eq.s32.totalorder %s12, 1
    %p72 = scmp.ne.s32.totalorder %s67, %s69
    %p73 = scmp.eq.s32.totalorder %s12, 0
    %p74 = por %p72, %p73
    %p75 = scmp.ne.s32.totalorder %s67, %s69
    %p76 = scmp.eq.s32.totalorder %s17, 1
    %p77 = por %p75, %p76
    %p78 = scmp.ne.s32.totalorder %s69, %s70
    %p79 = scmp.eq.s32.totalorder %s17, 0
    %p80 = por %p78, %p79
    %p81 = scmp.ne.s32.totalorder %s69, %s70
    %p82 = scmp.eq.s32.totalorder %s18, 1
    %p83 = por %p81, %p82
    %p85 = scmp.ne.s32.totalorder %s70, %s84
    %p86 = scmp.eq.s32.totalorder %s18, 0
    %p87 = por %p85, %p86
    %s89 = sadd.s32 %s88, 1
    %p92 = scmp.eq.s32.totalorder %s12, 1
    %p93 = scmp.ne.s32.totalorder %s88, %s90
    %p94 = scmp.eq.s32.totalorder %s12, 0
    %p95 = por %p93, %p94
    %p96 = scmp.ne.s32.totalorder %s88, %s90
    %p97 = scmp.eq.s32.totalorder %s17, 1
    %p98 = por %p96, %p97
    %p99 = scmp.ne.s32.totalorder %s90, %s91
    %p100 = scmp.eq.s32.totalorder %s17, 0
    %p101 = por %p99, %p100
    %p102 = scmp.ne.s32.totalorder %s90, %s91
    %p103 = scmp.eq.s32.totalorder %s18, 1
    %p104 = por %p102, %p103
    %p106 = scmp.ne.s32.totalorder %s91, %s105
    %p107 = scmp.eq.s32.totalorder %s18, 0
    %p108 = por %p106, %p107
    %s109 = ssub.s32 %s12, %s19
    %p110 = scmp.eq.s32.totalorder %s109, 0
    %s112 = sadd.s32 %s111, 1
    %s113 = scalar_select %p110, %s111, %s112
    %p116 = pneg %p110
    %p117 = scmp.eq.s32.totalorder %s12, 1
    %p118 = por %p116, %p117
    %p119 = scmp.ne.s32.totalorder %s111, %s114
    %p120 = scmp.eq.s32.totalorder %s12, 0
    %p121 = por %p119, %p120
    %p122 = scmp.ne.s32.totalorder %s111, %s114
    %p123 = scmp.eq.s32.totalorder %s17, 1
    %p124 = por %p122, %p123
    %p125 = scmp.ne.s32.totalorder %s114, %s115
    %p126 = scmp.eq.s32.totalorder %s17, 0
    %p127 = por %p125, %p126
    %p128 = scmp.ne.s32.totalorder %s114, %s115
    %p129 = scmp.eq.s32.totalorder %s18, 1
    %p130 = por %p128, %p129
    %p132 = scmp.ne.s32.totalorder %s115, %s131
    %p133 = scmp.eq.s32.totalorder %s18, 0
    %p134 = por %p132, %p133
    %s136 = sadd.s32 %s135, 1
    %p139 = scmp.eq.s32.totalorder %s12, 1
    %p140 = scmp.ne.s32.totalorder %s135, %s137
    %p141 = scmp.eq.s32.totalorder %s12, 0
    %p142 = por %p140, %p141
    %p143 = scmp.ne.s32.totalorder %s135, %s137
    %p144 = scmp.eq.s32.totalorder %s17, 1
    %p145 = por %p143, %p144
    %p146 = scmp.ne.s32.totalorder %s137, %s138
    %p147 = scmp.eq.s32.totalorder %s17, 0
    %p148 = por %p146, %p147
    %p149 = scmp.ne.s32.totalorder %s137, %s138
    %p150 = scmp.eq.s32.totalorder %s18, 1
    %p151 = por %p149, %p150
    %p153 = scmp.ne.s32.totalorder %s138, %s152
    %p154 = scmp.eq.s32.totalorder %s18, 0
    %p155 = por %p153, %p154
    %s156 = ssub.s32 %s12, %s19
    %p157 = scmp.eq.s32.totalorder %s156, 0
    %s159 = sadd.s32 %s158, 1
    %s160 = scalar_select %p157, %s158, %s159
    %p163 = pneg %p157
    %p164 = scmp.eq.s32.totalorder %s12, 1
    %p165 = por %p163, %p164
    %p166 = scmp.ne.s32.totalorder %s158, %s161
    %p167 = scmp.eq.s32.totalorder %s12, 0
    %p168 = por %p166, %p167
    %p169 = scmp.ne.s32.totalorder %s158, %s161
    %p170 = scmp.eq.s32.totalorder %s17, 1
    %p171 = por %p169, %p170
    %p172 = scmp.ne.s32.totalorder %s161, %s162
    %p173 = scmp.eq.s32.totalorder %s17, 0
    %p174 = por %p172, %p173
    %p175 = scmp.ne.s32.totalorder %s161, %s162
    %p176 = scmp.eq.s32.totalorder %s18, 1
    %p177 = por %p175, %p176
    %p179 = scmp.ne.s32.totalorder %s162, %s178
    %p180 = scmp.eq.s32.totalorder %s18, 0
    %p181 = por %p179, %p180
    %p182 = scmp.le.s32.totalorder 1, %s12
    %p183 = scmp.lt.s32.totalorder %s12, 3
    %p184 = pnand %p182, %p183
    %p185 = pneg %p184
    // Predicated region
    $region9: #{preact_block.5} parent=5 // pred_check
      _
    $region10: #{preact_block.5} parent=5 // pred_check_branch
      %187 = sbr.rel (%p184) target = $region12
    $region11: #{preact_block.5} parent=5 // pred_region
      %s188 = ssub.s32 %s12, 1
      // Predicated region
      $region13: #{preact_block.5} parent=11 // pred_check
        %p189 = pneg %p59
      $region14: #{preact_block.5} parent=11 // pred_check_branch
        %191 = sbr.rel (%p189) target = $region16
      $region15: #{preact_block.5} parent=11 // pred_region
        _
      $region16: #{preact_block.5} parent=11 // pred_fallthru
        _
      // Predicated region
      $region17: #{preact_block.5} parent=11 // pred_check
        %p192 = pneg %p80
      $region18: #{preact_block.5} parent=11 // pred_check_branch
        %194 = sbr.rel (%p192) target = $region20
      $region19: #{preact_block.5} parent=11 // pred_region
        _
      $region20: #{preact_block.5} parent=11 // pred_fallthru
        _
      // Predicated region
      $region21: #{preact_block.5} parent=11 // pred_check
        %p195 = pneg %p101
      $region22: #{preact_block.5} parent=11 // pred_check_branch
        %197 = sbr.rel (%p195) target = $region24
      $region23: #{preact_block.5} parent=11 // pred_region
        _
      $region24: #{preact_block.5} parent=11 // pred_fallthru
        _
      // Predicated region
      $region25: #{preact_block.5} parent=11 // pred_check
        %p198 = pneg %p148
      $region26: #{preact_block.5} parent=11 // pred_check_branch
        %200 = sbr.rel (%p198) target = $region28
      $region27: #{preact_block.5} parent=11 // pred_region
        _
      $region28: #{preact_block.5} parent=11 // pred_fallthru
        _
    $region12: #{preact_block.5} parent=5 // pred_fallthru
      _
    %p201 = scmp.lt.s32.totalorder %s12, 2
    // Predicated region
    $region29: #{preact_block.5} parent=5 // pred_check
      %p202 = pneg %p201
    $region30: #{preact_block.5} parent=5 // pred_check_branch
      %204 = sbr.rel (%p202) target = $region32
    $region31: #{preact_block.5} parent=5 // pred_region
      // Predicated region
      $region33: #{preact_block.5} parent=31 // pred_check
        %p205 = pneg %p32
      $region34: #{preact_block.5} parent=31 // pred_check_branch
        %207 = sbr.rel (%p205) target = $region36
      $region35: #{preact_block.5} parent=31 // pred_region
        %p208 = scmp.lt.s32.totalorder %s12, 1
        %s209 = scalar_select %p208, %s12, 1
        %s210 = smul.addr %s209, 32
        %s211 = smul.addr %s210, 8
        %s212 = scalar_lea.vmem %s0, %s211
      $region36: #{preact_block.5} parent=31 // pred_fallthru
        _
      // Predicated region
      $region37: #{preact_block.5} parent=31 // pred_check
        %p213 = pneg %p121
      $region38: #{preact_block.5} parent=31 // pred_check_branch
        %215 = sbr.rel (%p213) target = $region40
      $region39: #{preact_block.5} parent=31 // pred_region
        %p216 = scmp.lt.s32.totalorder %s12, 1
        %s217 = scalar_select %p216, %s12, 1
        %s218 = smul.addr %s217, 32
        %s219 = smul.addr %s218, 8
        %s220 = scalar_lea.vmem %s4, %s219
      $region40: #{preact_block.5} parent=31 // pred_fallthru
        _
    $region32: #{preact_block.5} parent=5 // pred_fallthru
      _
    %p221 = scmp.le.s32.totalorder 1, %s12
    %p222 = scmp.lt.s32.totalorder %s12, 3
    %p223 = pnand %p221, %p222
    %p224 = pneg %p223
    // Predicated region
    $region41: #{preact_block.5} parent=5 // pred_check
      _
    $region42: #{preact_block.5} parent=5 // pred_check_branch
      %226 = sbr.rel (%p223) target = $region44
    $region43: #{preact_block.5} parent=5 // pred_region
      %s227 = ssub.s32 %s12, 1
      %p228 = scmp.lt.s32.totalorder %s17, 1
      %s229 = scalar_select %p228, %s17, 1
      %s230 = smul.addr %s229, 32
      %s231 = smul.addr %s230, 8
      %s232 = scalar_lea.vmem %s0, %s231
      %p233 = pneg %p38
      %p234 = pneg %p35
      %p235 = pneg %p59
      %p236 = pneg %p56
      %p237 = pneg %p80
      %p238 = pneg %p77
      %p239 = pneg %p101
      %p240 = pneg %p98
      %p241 = scmp.lt.s32.totalorder %s17, 1
      %s242 = scalar_select %p241, %s17, 1
      %s243 = smul.addr %s242, 32
      %s244 = smul.addr %s243, 8
      %s245 = scalar_lea.vmem %s4, %s244
      %p246 = pneg %p127
      %p247 = pneg %p124
      %p248 = pneg %p148
      %p249 = pneg %p145
      %p250 = pneg %p174
      %p251 = pneg %p171
      %p252 = scmp.lt.s32.totalorder %s17, 1
      %s253 = scalar_select %p252, %s17, 1
      %s254 = smul.addr %s253, 32
      %s255 = smul.addr %s254, 8
      %s256 = scalar_lea.vmem %s6, %s255
      %p257 = scmp.lt.s32.totalorder %s17, 1
      %s258 = scalar_select %p257, %s17, 1
      %s259 = smul.addr %s258, 32
      %s260 = smul.addr %s259, 8
      %s261 = scalar_lea.vmem %s0, %s260
      %p262 = scmp.lt.s32.totalorder %s17, 1
      %s263 = scalar_select %p262, %s17, 1
      %s264 = smul.addr %s263, 32
      %s265 = smul.addr %s264, 8
      %s266 = scalar_lea.vmem %s4, %s265
      %p267 = scmp.lt.s32.totalorder %s17, 1
      %s268 = scalar_select %p267, %s17, 1
      %s269 = smul.addr %s268, 32
      %s270 = smul.addr %s269, 8
      %s271 = scalar_lea.vmem %s6, %s270
      %v272 = vld [vmem:[%s261] sm:$0xff]
      %v273 = vld [vmem:[%s261 + $0x8] sm:$0xff]
      %v274 = vld [vmem:[%s261 + $0x10] sm:$0xff]
      %v275 = vld [vmem:[%s261 + $0x18] sm:$0xff]
      %v276 = vld [vmem:[%s261 + $0x20] sm:$0xff]
      %v277 = vld [vmem:[%s261 + $0x28] sm:$0xff]
      %v278 = vld [vmem:[%s261 + $0x30] sm:$0xff]
      %v279 = vld [vmem:[%s261 + $0x38] sm:$0xff]
      %v280 = vld [vmem:[%s261 + $0x40] sm:$0xff]
      %v281 = vld [vmem:[%s261 + $0x48] sm:$0xff]
      %v282 = vld [vmem:[%s261 + $0x50] sm:$0xff]
      %v283 = vld [vmem:[%s261 + $0x58] sm:$0xff]
      %v284 = vld [vmem:[%s261 + $0x60] sm:$0xff]
      %v285 = vld [vmem:[%s261 + $0x68] sm:$0xff]
      %v286 = vld [vmem:[%s261 + $0x70] sm:$0xff]
      %v287 = vld [vmem:[%s261 + $0x78] sm:$0xff]
      %v288 = vld [vmem:[%s261 + $0x80] sm:$0xff]
      %v289 = vld [vmem:[%s261 + $0x88] sm:$0xff]
      %v290 = vld [vmem:[%s261 + $0x90] sm:$0xff]
      %v291 = vld [vmem:[%s261 + $0x98] sm:$0xff]
      %v292 = vld [vmem:[%s261 + $0xa0] sm:$0xff]
      %v293 = vld [vmem:[%s261 + $0xa8] sm:$0xff]
      %v294 = vld [vmem:[%s261 + $0xb0] sm:$0xff]
      %v295 = vld [vmem:[%s261 + $0xb8] sm:$0xff]
      %v296 = vld [vmem:[%s261 + $0xc0] sm:$0xff]
      %v297 = vld [vmem:[%s261 + $0xc8] sm:$0xff]
      %v298 = vld [vmem:[%s261 + $0xd0] sm:$0xff]
      %v299 = vld [vmem:[%s261 + $0xd8] sm:$0xff]
      %v300 = vld [vmem:[%s261 + $0xe0] sm:$0xff]
      %v301 = vld [vmem:[%s261 + $0xe8] sm:$0xff]
      %v302 = vld [vmem:[%s261 + $0xf0] sm:$0xff]
      %v303 = vld [vmem:[%s261 + $0xf8] sm:$0xff]
      %v304 = vld [vmem:[%s1] sm:$0x1]
      %v306 = vlaneseq
      %v307 = vshrl.u32 %v306, 7
      %v308 = vsub.s32 0, %v307
      %v309 = vrot.slane %v304, %v308
      %v311 = vmul.f32 %v272, %v309
      %v312 = vmul.f32 %v273, %v309
      %v313 = vmul.f32 %v274, %v309
      %v314 = vmul.f32 %v275, %v309
      %v315 = vmul.f32 %v276, %v309
      %v316 = vmul.f32 %v277, %v309
      %v317 = vmul.f32 %v278, %v309
      %v318 = vmul.f32 %v279, %v309
      %v319 = vmul.f32 %v280, %v309
      %v320 = vmul.f32 %v281, %v309
      %v321 = vmul.f32 %v282, %v309
      %v322 = vmul.f32 %v283, %v309
      %v323 = vmul.f32 %v284, %v309
      %v324 = vmul.f32 %v285, %v309
      %v325 = vmul.f32 %v286, %v309
      %v326 = vmul.f32 %v287, %v309
      %v327 = vmul.f32 %v288, %v309
      %v328 = vmul.f32 %v289, %v309
      %v329 = vmul.f32 %v290, %v309
      %v330 = vmul.f32 %v291, %v309
      %v331 = vmul.f32 %v292, %v309
      %v332 = vmul.f32 %v293, %v309
      %v333 = vmul.f32 %v294, %v309
      %v334 = vmul.f32 %v295, %v309
      %v335 = vmul.f32 %v296, %v309
      %v336 = vmul.f32 %v297, %v309
      %v337 = vmul.f32 %v298, %v309
      %v338 = vmul.f32 %v299, %v309
      %v339 = vmul.f32 %v300, %v309
      %v340 = vmul.f32 %v301, %v309
      %v341 = vmul.f32 %v302, %v309
      %v342 = vmul.f32 %v303, %v309
      %v343 = vld [vmem:[%s2] sm:$0x1]
      %v345 = vlaneseq
      %v346 = vshrl.u32 %v345, 7
      %v347 = vsub.s32 0, %v346
      %v348 = vrot.slane %v343, %v347
      %v350 = vadd.f32 %v311, %v348
      %v351 = vadd.f32 %v312, %v348
      %v352 = vadd.f32 %v313, %v348
      %v353 = vadd.f32 %v314, %v348
      %v354 = vadd.f32 %v315, %v348
      %v355 = vadd.f32 %v316, %v348
      %v356 = vadd.f32 %v317, %v348
      %v357 = vadd.f32 %v318, %v348
      %v358 = vadd.f32 %v319, %v348
      %v359 = vadd.f32 %v320, %v348
      %v360 = vadd.f32 %v321, %v348
      %v361 = vadd.f32 %v322, %v348
      %v362 = vadd.f32 %v323, %v348
      %v363 = vadd.f32 %v324, %v348
      %v364 = vadd.f32 %v325, %v348
      %v365 = vadd.f32 %v326, %v348
      %v366 = vadd.f32 %v327, %v348
      %v367 = vadd.f32 %v328, %v348
      %v368 = vadd.f32 %v329, %v348
      %v369 = vadd.f32 %v330, %v348
      %v370 = vadd.f32 %v331, %v348
      %v371 = vadd.f32 %v332, %v348
      %v372 = vadd.f32 %v333, %v348
      %v373 = vadd.f32 %v334, %v348
      %v374 = vadd.f32 %v335, %v348
      %v375 = vadd.f32 %v336, %v348
      %v376 = vadd.f32 %v337, %v348
      %v377 = vadd.f32 %v338, %v348
      %v378 = vadd.f32 %v339, %v348
      %v379 = vadd.f32 %v340, %v348
      %v380 = vadd.f32 %v341, %v348
      %v381 = vadd.f32 %v342, %v348
      %v382 = vmax.f32 %v350, 0.0
      %v383 = vmax.f32 %v351, 0.0
      %v384 = vmax.f32 %v352, 0.0
      %v385 = vmax.f32 %v353, 0.0
      %v386 = vmax.f32 %v354, 0.0
      %v387 = vmax.f32 %v355, 0.0
      %v388 = vmax.f32 %v356, 0.0
      %v389 = vmax.f32 %v357, 0.0
      %v390 = vmax.f32 %v358, 0.0
      %v391 = vmax.f32 %v359, 0.0
      %v392 = vmax.f32 %v360, 0.0
      %v393 = vmax.f32 %v361, 0.0
      %v394 = vmax.f32 %v362, 0.0
      %v395 = vmax.f32 %v363, 0.0
      %v396 = vmax.f32 %v364, 0.0
      %v397 = vmax.f32 %v365, 0.0
      %v398 = vmax.f32 %v366, 0.0
      %v399 = vmax.f32 %v367, 0.0
      %v400 = vmax.f32 %v368, 0.0
      %v401 = vmax.f32 %v369, 0.0
      %v402 = vmax.f32 %v370, 0.0
      %v403 = vmax.f32 %v371, 0.0
      %v404 = vmax.f32 %v372, 0.0
      %v405 = vmax.f32 %v373, 0.0
      %v406 = vmax.f32 %v374, 0.0
      %v407 = vmax.f32 %v375, 0.0
      %v408 = vmax.f32 %v376, 0.0
      %v409 = vmax.f32 %v377, 0.0
      %v410 = vmax.f32 %v378, 0.0
      %v411 = vmax.f32 %v379, 0.0
      %v412 = vmax.f32 %v380, 0.0
      %v413 = vmax.f32 %v381, 0.0
      %vm414 = vcmask 64512
      %415 = vst.msk [vmem:[#allocation2] sm:$0xff] %vm414, 0.0
      %416 = vst.msk [vmem:[#allocation2 + $0x8] sm:$0xff] %vm414, 0.0
      %vm417 = vcmask 58368
      %418 = vst.msk [vmem:[#allocation2 + $0x10] sm:$0x3] %vm417, 0.0
      %419 = vst.msk [vmem:[#allocation2 + $0x18] sm:$0xff] %vm414, 0.0
      %420 = vst.msk [vmem:[#allocation2 + $0x20] sm:$0xff] %vm414, 0.0
      %421 = vst.msk [vmem:[#allocation2 + $0x28] sm:$0x3] %vm417, 0.0
      %422 = vst.msk [vmem:[#allocation2 + $0x30] sm:$0xff] %vm414, 0.0
      %423 = vst.msk [vmem:[#allocation2 + $0x38] sm:$0xff] %vm414, 0.0
      %424 = vst.msk [vmem:[#allocation2 + $0x40] sm:$0x3] %vm417, 0.0
      %425 = vst.msk [vmem:[#allocation2 + $0x48] sm:$0xff] %vm414, 0.0
      %426 = vst.msk [vmem:[#allocation2 + $0x50] sm:$0xff] %vm414, 0.0
      %427 = vst.msk [vmem:[#allocation2 + $0x58] sm:$0x3] %vm417, 0.0
      %428 = vst.msk [vmem:[#allocation2 + $0x60] sm:$0xff] %vm414, 0.0
      %429 = vst.msk [vmem:[#allocation2 + $0x68] sm:$0xff] %vm414, 0.0
      %430 = vst.msk [vmem:[#allocation2 + $0x70] sm:$0x3] %vm417, 0.0
      %431 = vst.msk [vmem:[#allocation2 + $0x78] sm:$0xff] %vm414, 0.0
      %432 = vst.msk [vmem:[#allocation2 + $0x80] sm:$0xff] %vm414, 0.0
      %433 = vst.msk [vmem:[#allocation2 + $0x88] sm:$0x3] %vm417, 0.0
      %434 = vst.msk [vmem:[#allocation2 + $0x90] sm:$0xff] %vm414, 0.0
      %435 = vst.msk [vmem:[#allocation2 + $0x98] sm:$0xff] %vm414, 0.0
      %436 = vst.msk [vmem:[#allocation2 + $0xa0] sm:$0x3] %vm417, 0.0
      %437 = vst.msk [vmem:[#allocation2 + $0xa8] sm:$0xff] %vm414, 0.0
      %438 = vst.msk [vmem:[#allocation2 + $0xb0] sm:$0xff] %vm414, 0.0
      %439 = vst.msk [vmem:[#allocation2 + $0xb8] sm:$0x3] %vm417, 0.0
      %440 = vst.msk [vmem:[#allocation2 + $0xc0] sm:$0xff] %vm414, 0.0
      %441 = vst.msk [vmem:[#allocation2 + $0xc8] sm:$0xff] %vm414, 0.0
      %442 = vst.msk [vmem:[#allocation2 + $0xd0] sm:$0x3] %vm417, 0.0
      %443 = vst.msk [vmem:[#allocation2 + $0xd8] sm:$0xff] %vm414, 0.0
      %444 = vst.msk [vmem:[#allocation2 + $0xe0] sm:$0xff] %vm414, 0.0
      %445 = vst.msk [vmem:[#allocation2 + $0xe8] sm:$0x3] %vm417, 0.0
      %446 = vst.msk [vmem:[#allocation2 + $0xf0] sm:$0xff] %vm414, 0.0
      %447 = vst.msk [vmem:[#allocation2 + $0xf8] sm:$0xff] %vm414, 0.0
      %448 = vst.msk [vmem:[#allocation2 + $0x100] sm:$0x3] %vm417, 0.0
      %449 = vst.msk [vmem:[#allocation2 + $0x108] sm:$0xff] %vm414, 0.0
      %450 = vst.msk [vmem:[#allocation2 + $0x110] sm:$0xff] %vm414, 0.0
      %451 = vst.msk [vmem:[#allocation2 + $0x118] sm:$0x3] %vm417, 0.0
      %452 = vst.msk [vmem:[#allocation2 + $0x120] sm:$0xff] %vm414, 0.0
      %453 = vst.msk [vmem:[#allocation2 + $0x128] sm:$0xff] %vm414, 0.0
      %454 = vst.msk [vmem:[#allocation2 + $0x130] sm:$0x3] %vm417, 0.0
      %455 = vst.msk [vmem:[#allocation2 + $0x138] sm:$0xff] %vm414, 0.0
      %456 = vst.msk [vmem:[#allocation2 + $0x140] sm:$0xff] %vm414, 0.0
      %457 = vst.msk [vmem:[#allocation2 + $0x148] sm:$0x3] %vm417, 0.0
      %458 = vst.msk [vmem:[#allocation2 + $0x150] sm:$0xff] %vm414, 0.0
      %459 = vst.msk [vmem:[#allocation2 + $0x158] sm:$0xff] %vm414, 0.0
      %460 = vst.msk [vmem:[#allocation2 + $0x160] sm:$0x3] %vm417, 0.0
      %461 = vst.msk [vmem:[#allocation2 + $0x168] sm:$0xff] %vm414, 0.0
      %462 = vst.msk [vmem:[#allocation2 + $0x170] sm:$0xff] %vm414, 0.0
      %463 = vst.msk [vmem:[#allocation2 + $0x178] sm:$0x3] %vm417, 0.0
      %464 = vst.msk [vmem:[#allocation2 + $0x180] sm:$0xff] %vm414, 0.0
      %465 = vst.msk [vmem:[#allocation2 + $0x188] sm:$0xff] %vm414, 0.0
      %466 = vst.msk [vmem:[#allocation2 + $0x190] sm:$0x3] %vm417, 0.0
      %467 = vst.msk [vmem:[#allocation2 + $0x198] sm:$0xff] %vm414, 0.0
      %468 = vst.msk [vmem:[#allocation2 + $0x1a0] sm:$0xff] %vm414, 0.0
      %469 = vst.msk [vmem:[#allocation2 + $0x1a8] sm:$0x3] %vm417, 0.0
      %s470 = scalar_lea.vmem [#allocation2], 24
      %471 = vst.msk [vmem:[%s470 + $0x1] sm:$0xff] %vm414, %v382
      %472 = vst.msk [vmem:[%s470 + $0x9] sm:$0xff] %vm414, %v383
      %473 = vst.msk [vmem:[%s470 + $0x19] sm:$0xff] %vm414, %v384
      %474 = vst.msk [vmem:[%s470 + $0x21] sm:$0xff] %vm414, %v385
      %475 = vst.msk [vmem:[%s470 + $0x31] sm:$0xff] %vm414, %v386
      %476 = vst.msk [vmem:[%s470 + $0x39] sm:$0xff] %vm414, %v387
      %477 = vst.msk [vmem:[%s470 + $0x49] sm:$0xff] %vm414, %v388
      %478 = vst.msk [vmem:[%s470 + $0x51] sm:$0xff] %vm414, %v389
      %479 = vst.msk [vmem:[%s470 + $0x61] sm:$0xff] %vm414, %v390
      %480 = vst.msk [vmem:[%s470 + $0x69] sm:$0xff] %vm414, %v391
      %481 = vst.msk [vmem:[%s470 + $0x79] sm:$0xff] %vm414, %v392
      %482 = vst.msk [vmem:[%s470 + $0x81] sm:$0xff] %vm414, %v393
      %483 = vst.msk [vmem:[%s470 + $0x91] sm:$0xff] %vm414, %v394
      %484 = vst.msk [vmem:[%s470 + $0x99] sm:$0xff] %vm414, %v395
      %485 = vst.msk [vmem:[%s470 + $0xa9] sm:$0xff] %vm414, %v396
      %486 = vst.msk [vmem:[%s470 + $0xb1] sm:$0xff] %vm414, %v397
      %487 = vst.msk [vmem:[%s470 + $0xc1] sm:$0xff] %vm414, %v398
      %488 = vst.msk [vmem:[%s470 + $0xc9] sm:$0xff] %vm414, %v399
      %489 = vst.msk [vmem:[%s470 + $0xd9] sm:$0xff] %vm414, %v400
      %490 = vst.msk [vmem:[%s470 + $0xe1] sm:$0xff] %vm414, %v401
      %491 = vst.msk [vmem:[%s470 + $0xf1] sm:$0xff] %vm414, %v402
      %492 = vst.msk [vmem:[%s470 + $0xf9] sm:$0xff] %vm414, %v403
      %493 = vst.msk [vmem:[%s470 + $0x109] sm:$0xff] %vm414, %v404
      %494 = vst.msk [vmem:[%s470 + $0x111] sm:$0xff] %vm414, %v405
      %495 = vst.msk [vmem:[%s470 + $0x121] sm:$0xff] %vm414, %v406
      %496 = vst.msk [vmem:[%s470 + $0x129] sm:$0xff] %vm414, %v407
      %497 = vst.msk [vmem:[%s470 + $0x139] sm:$0xff] %vm414, %v408
      %498 = vst.msk [vmem:[%s470 + $0x141] sm:$0xff] %vm414, %v409
      %499 = vst.msk [vmem:[%s470 + $0x151] sm:$0xff] %vm414, %v410
      %500 = vst.msk [vmem:[%s470 + $0x159] sm:$0xff] %vm414, %v411
      %501 = vst.msk [vmem:[%s470 + $0x169] sm:$0xff] %vm414, %v412
      %502 = vst.msk [vmem:[%s470 + $0x171] sm:$0xff] %vm414, %v413
      %v503 = vld [vmem:[#allocation2] sm:$0xff]
      %v504 = vld [vmem:[#allocation2 + $0x8] sm:$0xff]
      %v505 = vld [vmem:[#allocation2 + $0x18] sm:$0xff]
      %v506 = vld [vmem:[#allocation2 + $0x20] sm:$0xff]
      %v507 = vld [vmem:[#allocation2 + $0x30] sm:$0xff]
      %v508 = vld [vmem:[#allocation2 + $0x38] sm:$0xff]
      %v509 = vld [vmem:[#allocation2 + $0x48] sm:$0xff]
      %v510 = vld [vmem:[#allocation2 + $0x50] sm:$0xff]
      %v511 = vld [vmem:[#allocation2 + $0x60] sm:$0xff]
      %v512 = vld [vmem:[#allocation2 + $0x68] sm:$0xff]
      %v513 = vld [vmem:[#allocation2 + $0x78] sm:$0xff]
      %v514 = vld [vmem:[#allocation2 + $0x80] sm:$0xff]
      %v515 = vld [vmem:[#allocation2 + $0x90] sm:$0xff]
      %v516 = vld [vmem:[#allocation2 + $0x98] sm:$0xff]
      %v517 = vld [vmem:[#allocation2 + $0xa8] sm:$0xff]
      %v518 = vld [vmem:[#allocation2 + $0xb0] sm:$0xff]
      %v519 = vld [vmem:[#allocation2 + $0xc0] sm:$0xff]
      %v520 = vld [vmem:[#allocation2 + $0xc8] sm:$0xff]
      %v521 = vld [vmem:[#allocation2 + $0xd8] sm:$0xff]
      %v522 = vld [vmem:[#allocation2 + $0xe0] sm:$0xff]
      %v523 = vld [vmem:[#allocation2 + $0xf0] sm:$0xff]
      %v524 = vld [vmem:[#allocation2 + $0xf8] sm:$0xff]
      %v525 = vld [vmem:[#allocation2 + $0x108] sm:$0xff]
      %v526 = vld [vmem:[#allocation2 + $0x110] sm:$0xff]
      %v527 = vld [vmem:[#allocation2 + $0x120] sm:$0xff]
      %v528 = vld [vmem:[#allocation2 + $0x128] sm:$0xff]
      %v529 = vld [vmem:[#allocation2 + $0x138] sm:$0xff]
      %v530 = vld [vmem:[#allocation2 + $0x140] sm:$0xff]
      %v531 = vld [vmem:[#allocation2 + $0x150] sm:$0xff]
      %v532 = vld [vmem:[#allocation2 + $0x158] sm:$0xff]
      %v533 = vld [vmem:[#allocation2 + $0x168] sm:$0xff]
      %v534 = vld [vmem:[#allocation2 + $0x170] sm:$0xff]
      %v535 = vld [vmem:[#allocation2 + $0x1] sm:$0xff]
      %v536 = vld [vmem:[#allocation2 + $0x9] sm:$0xff]
      %v537 = vld [vmem:[#allocation2 + $0x19] sm:$0xff]
      %v538 = vld [vmem:[#allocation2 + $0x21] sm:$0xff]
      %v539 = vld [vmem:[#allocation2 + $0x31] sm:$0xff]
      %v540 = vld [vmem:[#allocation2 + $0x39] sm:$0xff]
      %v541 = vld [vmem:[#allocation2 + $0x49] sm:$0xff]
      %v542 = vld [vmem:[#allocation2 + $0x51] sm:$0xff]
      %v543 = vld [vmem:[#allocation2 + $0x61] sm:$0xff]
      %v544 = vld [vmem:[#allocation2 + $0x69] sm:$0xff]
      %v545 = vld [vmem:[#allocation2 + $0x79] sm:$0xff]
      %v546 = vld [vmem:[#allocation2 + $0x81] sm:$0xff]
      %v547 = vld [vmem:[#allocation2 + $0x91] sm:$0xff]
      %v548 = vld [vmem:[#allocation2 + $0x99] sm:$0xff]
      %v549 = vld [vmem:[#allocation2 + $0xa9] sm:$0xff]
      %v550 = vld [vmem:[#allocation2 + $0xb1] sm:$0xff]
      %v551 = vld [vmem:[#allocation2 + $0xc1] sm:$0xff]
      %v552 = vld [vmem:[#allocation2 + $0xc9] sm:$0xff]
      %v553 = vld [vmem:[#allocation2 + $0xd9] sm:$0xff]
      %v554 = vld [vmem:[#allocation2 + $0xe1] sm:$0xff]
      %v555 = vld [vmem:[#allocation2 + $0xf1] sm:$0xff]
      %v556 = vld [vmem:[#allocation2 + $0xf9] sm:$0xff]
      %v557 = vld [vmem:[#allocation2 + $0x109] sm:$0xff]
      %v558 = vld [vmem:[#allocation2 + $0x111] sm:$0xff]
      %v559 = vld [vmem:[#allocation2 + $0x121] sm:$0xff]
      %v560 = vld [vmem:[#allocation2 + $0x129] sm:$0xff]
      %v561 = vld [vmem:[#allocation2 + $0x139] sm:$0xff]
      %v562 = vld [vmem:[#allocation2 + $0x141] sm:$0xff]
      %v563 = vld [vmem:[#allocation2 + $0x151] sm:$0xff]
      %v564 = vld [vmem:[#allocation2 + $0x159] sm:$0xff]
      %v565 = vld [vmem:[#allocation2 + $0x169] sm:$0xff]
      %v566 = vld [vmem:[#allocation2 + $0x171] sm:$0xff]
      %v567 = vld [vmem:[#allocation2 + $0x2] sm:$0xff]
      %v568 = vld [vmem:[#allocation2 + $0xa] sm:$0xff]
      %v569 = vld [vmem:[#allocation2 + $0x1a] sm:$0xff]
      %v570 = vld [vmem:[#allocation2 + $0x22] sm:$0xff]
      %v571 = vld [vmem:[#allocation2 + $0x32] sm:$0xff]
      %v572 = vld [vmem:[#allocation2 + $0x3a] sm:$0xff]
      %v573 = vld [vmem:[#allocation2 + $0x4a] sm:$0xff]
      %v574 = vld [vmem:[#allocation2 + $0x52] sm:$0xff]
      %v575 = vld [vmem:[#allocation2 + $0x62] sm:$0xff]
      %v576 = vld [vmem:[#allocation2 + $0x6a] sm:$0xff]
      %v577 = vld [vmem:[#allocation2 + $0x7a] sm:$0xff]
      %v578 = vld [vmem:[#allocation2 + $0x82] sm:$0xff]
      %v579 = vld [vmem:[#allocation2 + $0x92] sm:$0xff]
      %v580 = vld [vmem:[#allocation2 + $0x9a] sm:$0xff]
      %v581 = vld [vmem:[#allocation2 + $0xaa] sm:$0xff]
      %v582 = vld [vmem:[#allocation2 + $0xb2] sm:$0xff]
      %v583 = vld [vmem:[#allocation2 + $0xc2] sm:$0xff]
      %v584 = vld [vmem:[#allocation2 + $0xca] sm:$0xff]
      %v585 = vld [vmem:[#allocation2 + $0xda] sm:$0xff]
      %v586 = vld [vmem:[#allocation2 + $0xe2] sm:$0xff]
      %v587 = vld [vmem:[#allocation2 + $0xf2] sm:$0xff]
      %v588 = vld [vmem:[#allocation2 + $0xfa] sm:$0xff]
      %v589 = vld [vmem:[#allocation2 + $0x10a] sm:$0xff]
      %v590 = vld [vmem:[#allocation2 + $0x112] sm:$0xff]
      %v591 = vld [vmem:[#allocation2 + $0x122] sm:$0xff]
      %v592 = vld [vmem:[#allocation2 + $0x12a] sm:$0xff]
      %v593 = vld [vmem:[#allocation2 + $0x13a] sm:$0xff]
      %v594 = vld [vmem:[#allocation2 + $0x142] sm:$0xff]
      %v595 = vld [vmem:[#allocation2 + $0x152] sm:$0xff]
      %v596 = vld [vmem:[#allocation2 + $0x15a] sm:$0xff]
      %v597 = vld [vmem:[#allocation2 + $0x16a] sm:$0xff]
      %v598 = vld [vmem:[#allocation2 + $0x172] sm:$0xff]
      %v599 = vld [vmem:[%s470] sm:$0xff]
      %v600 = vld [vmem:[%s470 + $0x8] sm:$0xff]
      %v601 = vld [vmem:[%s470 + $0x18] sm:$0xff]
      %v602 = vld [vmem:[%s470 + $0x20] sm:$0xff]
      %v603 = vld [vmem:[%s470 + $0x30] sm:$0xff]
      %v604 = vld [vmem:[%s470 + $0x38] sm:$0xff]
      %v605 = vld [vmem:[%s470 + $0x48] sm:$0xff]
      %v606 = vld [vmem:[%s470 + $0x50] sm:$0xff]
      %v607 = vld [vmem:[%s470 + $0x60] sm:$0xff]
      %v608 = vld [vmem:[%s470 + $0x68] sm:$0xff]
      %v609 = vld [vmem:[%s470 + $0x78] sm:$0xff]
      %v610 = vld [vmem:[%s470 + $0x80] sm:$0xff]
      %v611 = vld [vmem:[%s470 + $0x90] sm:$0xff]
      %v612 = vld [vmem:[%s470 + $0x98] sm:$0xff]
      %v613 = vld [vmem:[%s470 + $0xa8] sm:$0xff]
      %v614 = vld [vmem:[%s470 + $0xb0] sm:$0xff]
      %v615 = vld [vmem:[%s470 + $0xc0] sm:$0xff]
      %v616 = vld [vmem:[%s470 + $0xc8] sm:$0xff]
      %v617 = vld [vmem:[%s470 + $0xd8] sm:$0xff]
      %v618 = vld [vmem:[%s470 + $0xe0] sm:$0xff]
      %v619 = vld [vmem:[%s470 + $0xf0] sm:$0xff]
      %v620 = vld [vmem:[%s470 + $0xf8] sm:$0xff]
      %v621 = vld [vmem:[%s470 + $0x108] sm:$0xff]
      %v622 = vld [vmem:[%s470 + $0x110] sm:$0xff]
      %v623 = vld [vmem:[%s470 + $0x120] sm:$0xff]
      %v624 = vld [vmem:[%s470 + $0x128] sm:$0xff]
      %v625 = vld [vmem:[%s470 + $0x138] sm:$0xff]
      %v626 = vld [vmem:[%s470 + $0x140] sm:$0xff]
      %v627 = vld [vmem:[%s470 + $0x150] sm:$0xff]
      %v628 = vld [vmem:[%s470 + $0x158] sm:$0xff]
      %v629 = vld [vmem:[%s470 + $0x168] sm:$0xff]
      %v630 = vld [vmem:[%s470 + $0x170] sm:$0xff]
      %v631 = vld [vmem:[%s470 + $0x1] sm:$0xff]
      %v632 = vld [vmem:[%s470 + $0x9] sm:$0xff]
      %v633 = vld [vmem:[%s470 + $0x19] sm:$0xff]
      %v634 = vld [vmem:[%s470 + $0x21] sm:$0xff]
      %v635 = vld [vmem:[%s470 + $0x31] sm:$0xff]
      %v636 = vld [vmem:[%s470 + $0x39] sm:$0xff]
      %v637 = vld [vmem:[%s470 + $0x49] sm:$0xff]
      %v638 = vld [vmem:[%s470 + $0x51] sm:$0xff]
      %v639 = vld [vmem:[%s470 + $0x61] sm:$0xff]
      %v640 = vld [vmem:[%s470 + $0x69] sm:$0xff]
      %v641 = vld [vmem:[%s470 + $0x79] sm:$0xff]
      %v642 = vld [vmem:[%s470 + $0x81] sm:$0xff]
      %v643 = vld [vmem:[%s470 + $0x91] sm:$0xff]
      %v644 = vld [vmem:[%s470 + $0x99] sm:$0xff]
      %v645 = vld [vmem:[%s470 + $0xa9] sm:$0xff]
      %v646 = vld [vmem:[%s470 + $0xb1] sm:$0xff]
      %v647 = vld [vmem:[%s470 + $0xc1] sm:$0xff]
      %v648 = vld [vmem:[%s470 + $0xc9] sm:$0xff]
      %v649 = vld [vmem:[%s470 + $0xd9] sm:$0xff]
      %v650 = vld [vmem:[%s470 + $0xe1] sm:$0xff]
      %v651 = vld [vmem:[%s470 + $0xf1] sm:$0xff]
      %v652 = vld [vmem:[%s470 + $0xf9] sm:$0xff]
      %v653 = vld [vmem:[%s470 + $0x109] sm:$0xff]
      %v654 = vld [vmem:[%s470 + $0x111] sm:$0xff]
      %v655 = vld [vmem:[%s470 + $0x121] sm:$0xff]
      %v656 = vld [vmem:[%s470 + $0x129] sm:$0xff]
      %v657 = vld [vmem:[%s470 + $0x139] sm:$0xff]
      %v658 = vld [vmem:[%s470 + $0x141] sm:$0xff]
      %v659 = vld [vmem:[%s470 + $0x151] sm:$0xff]
      %v660 = vld [vmem:[%s470 + $0x159] sm:$0xff]
      %v661 = vld [vmem:[%s470 + $0x169] sm:$0xff]
      %v662 = vld [vmem:[%s470 + $0x171] sm:$0xff]
      %v663 = vld [vmem:[%s470 + $0x2] sm:$0xff]
      %v664 = vld [vmem:[%s470 + $0xa] sm:$0xff]
      %v665 = vld [vmem:[%s470 + $0x1a] sm:$0xff]
      %v666 = vld [vmem:[%s470 + $0x22] sm:$0xff]
      %v667 = vld [vmem:[%s470 + $0x32] sm:$0xff]
      %v668 = vld [vmem:[%s470 + $0x3a] sm:$0xff]
      %v669 = vld [vmem:[%s470 + $0x4a] sm:$0xff]
      %v670 = vld [vmem:[%s470 + $0x52] sm:$0xff]
      %v671 = vld [vmem:[%s470 + $0x62] sm:$0xff]
      %v672 = vld [vmem:[%s470 + $0x6a] sm:$0xff]
      %v673 = vld [vmem:[%s470 + $0x7a] sm:$0xff]
      %v674 = vld [vmem:[%s470 + $0x82] sm:$0xff]
      %v675 = vld [vmem:[%s470 + $0x92] sm:$0xff]
      %v676 = vld [vmem:[%s470 + $0x9a] sm:$0xff]
      %v677 = vld [vmem:[%s470 + $0xaa] sm:$0xff]
      %v678 = vld [vmem:[%s470 + $0xb2] sm:$0xff]
      %v679 = vld [vmem:[%s470 + $0xc2] sm:$0xff]
      %v680 = vld [vmem:[%s470 + $0xca] sm:$0xff]
      %v681 = vld [vmem:[%s470 + $0xda] sm:$0xff]
      %v682 = vld [vmem:[%s470 + $0xe2] sm:$0xff]
      %v683 = vld [vmem:[%s470 + $0xf2] sm:$0xff]
      %v684 = vld [vmem:[%s470 + $0xfa] sm:$0xff]
      %v685 = vld [vmem:[%s470 + $0x10a] sm:$0xff]
      %v686 = vld [vmem:[%s470 + $0x112] sm:$0xff]
      %v687 = vld [vmem:[%s470 + $0x122] sm:$0xff]
      %v688 = vld [vmem:[%s470 + $0x12a] sm:$0xff]
      %v689 = vld [vmem:[%s470 + $0x13a] sm:$0xff]
      %v690 = vld [vmem:[%s470 + $0x142] sm:$0xff]
      %v691 = vld [vmem:[%s470 + $0x152] sm:$0xff]
      %v692 = vld [vmem:[%s470 + $0x15a] sm:$0xff]
      %v693 = vld [vmem:[%s470 + $0x16a] sm:$0xff]
      %v694 = vld [vmem:[%s470 + $0x172] sm:$0xff]
      %s695 = scalar_lea.vmem [#allocation2], 48
      %v696 = vld [vmem:[%s695] sm:$0xff]
      %v697 = vld [vmem:[%s695 + $0x8] sm:$0xff]
      %v698 = vld [vmem:[%s695 + $0x18] sm:$0xff]
      %v699 = vld [vmem:[%s695 + $0x20] sm:$0xff]
      %v700 = vld [vmem:[%s695 + $0x30] sm:$0xff]
      %v701 = vld [vmem:[%s695 + $0x38] sm:$0xff]
      %v702 = vld [vmem:[%s695 + $0x48] sm:$0xff]
      %v703 = vld [vmem:[%s695 + $0x50] sm:$0xff]
      %v704 = vld [vmem:[%s695 + $0x60] sm:$0xff]
      %v705 = vld [vmem:[%s695 + $0x68] sm:$0xff]
      %v706 = vld [vmem:[%s695 + $0x78] sm:$0xff]
      %v707 = vld [vmem:[%s695 + $0x80] sm:$0xff]
      %v708 = vld [vmem:[%s695 + $0x90] sm:$0xff]
      %v709 = vld [vmem:[%s695 + $0x98] sm:$0xff]
      %v710 = vld [vmem:[%s695 + $0xa8] sm:$0xff]
      %v711 = vld [vmem:[%s695 + $0xb0] sm:$0xff]
      %v712 = vld [vmem:[%s695 + $0xc0] sm:$0xff]
      %v713 = vld [vmem:[%s695 + $0xc8] sm:$0xff]
      %v714 = vld [vmem:[%s695 + $0xd8] sm:$0xff]
      %v715 = vld [vmem:[%s695 + $0xe0] sm:$0xff]
      %v716 = vld [vmem:[%s695 + $0xf0] sm:$0xff]
      %v717 = vld [vmem:[%s695 + $0xf8] sm:$0xff]
      %v718 = vld [vmem:[%s695 + $0x108] sm:$0xff]
      %v719 = vld [vmem:[%s695 + $0x110] sm:$0xff]
      %v720 = vld [vmem:[%s695 + $0x120] sm:$0xff]
      %v721 = vld [vmem:[%s695 + $0x128] sm:$0xff]
      %v722 = vld [vmem:[%s695 + $0x138] sm:$0xff]
      %v723 = vld [vmem:[%s695 + $0x140] sm:$0xff]
      %v724 = vld [vmem:[%s695 + $0x150] sm:$0xff]
      %v725 = vld [vmem:[%s695 + $0x158] sm:$0xff]
      %v726 = vld [vmem:[%s695 + $0x168] sm:$0xff]
      %v727 = vld [vmem:[%s695 + $0x170] sm:$0xff]
      %v728 = vld [vmem:[%s695 + $0x1] sm:$0xff]
      %v729 = vld [vmem:[%s695 + $0x9] sm:$0xff]
      %v730 = vld [vmem:[%s695 + $0x19] sm:$0xff]
      %v731 = vld [vmem:[%s695 + $0x21] sm:$0xff]
      %v732 = vld [vmem:[%s695 + $0x31] sm:$0xff]
      %v733 = vld [vmem:[%s695 + $0x39] sm:$0xff]
      %v734 = vld [vmem:[%s695 + $0x49] sm:$0xff]
      %v735 = vld [vmem:[%s695 + $0x51] sm:$0xff]
      %v736 = vld [vmem:[%s695 + $0x61] sm:$0xff]
      %v737 = vld [vmem:[%s695 + $0x69] sm:$0xff]
      %v738 = vld [vmem:[%s695 + $0x79] sm:$0xff]
      %v739 = vld [vmem:[%s695 + $0x81] sm:$0xff]
      %v740 = vld [vmem:[%s695 + $0x91] sm:$0xff]
      %v741 = vld [vmem:[%s695 + $0x99] sm:$0xff]
      %v742 = vld [vmem:[%s695 + $0xa9] sm:$0xff]
      %v743 = vld [vmem:[%s695 + $0xb1] sm:$0xff]
      %v744 = vld [vmem:[%s695 + $0xc1] sm:$0xff]
      %v745 = vld [vmem:[%s695 + $0xc9] sm:$0xff]
      %v746 = vld [vmem:[%s695 + $0xd9] sm:$0xff]
      %v747 = vld [vmem:[%s695 + $0xe1] sm:$0xff]
      %v748 = vld [vmem:[%s695 + $0xf1] sm:$0xff]
      %v749 = vld [vmem:[%s695 + $0xf9] sm:$0xff]
      %v750 = vld [vmem:[%s695 + $0x109] sm:$0xff]
      %v751 = vld [vmem:[%s695 + $0x111] sm:$0xff]
      %v752 = vld [vmem:[%s695 + $0x121] sm:$0xff]
      %v753 = vld [vmem:[%s695 + $0x129] sm:$0xff]
      %v754 = vld [vmem:[%s695 + $0x139] sm:$0xff]
      %v755 = vld [vmem:[%s695 + $0x141] sm:$0xff]
      %v756 = vld [vmem:[%s695 + $0x151] sm:$0xff]
      %v757 = vld [vmem:[%s695 + $0x159] sm:$0xff]
      %v758 = vld [vmem:[%s695 + $0x169] sm:$0xff]
      %v759 = vld [vmem:[%s695 + $0x171] sm:$0xff]
      %v760 = vld [vmem:[%s695 + $0x2] sm:$0xff]
      %v761 = vld [vmem:[%s695 + $0xa] sm:$0xff]
      %v762 = vld [vmem:[%s695 + $0x1a] sm:$0xff]
      %v763 = vld [vmem:[%s695 + $0x22] sm:$0xff]
      %v764 = vld [vmem:[%s695 + $0x32] sm:$0xff]
      %v765 = vld [vmem:[%s695 + $0x3a] sm:$0xff]
      %v766 = vld [vmem:[%s695 + $0x4a] sm:$0xff]
      %v767 = vld [vmem:[%s695 + $0x52] sm:$0xff]
      %v768 = vld [vmem:[%s695 + $0x62] sm:$0xff]
      %v769 = vld [vmem:[%s695 + $0x6a] sm:$0xff]
      %v770 = vld [vmem:[%s695 + $0x7a] sm:$0xff]
      %v771 = vld [vmem:[%s695 + $0x82] sm:$0xff]
      %v772 = vld [vmem:[%s695 + $0x92] sm:$0xff]
      %v773 = vld [vmem:[%s695 + $0x9a] sm:$0xff]
      %v774 = vld [vmem:[%s695 + $0xaa] sm:$0xff]
      %v775 = vld [vmem:[%s695 + $0xb2] sm:$0xff]
      %v776 = vld [vmem:[%s695 + $0xc2] sm:$0xff]
      %v777 = vld [vmem:[%s695 + $0xca] sm:$0xff]
      %v778 = vld [vmem:[%s695 + $0xda] sm:$0xff]
      %v779 = vld [vmem:[%s695 + $0xe2] sm:$0xff]
      %v780 = vld [vmem:[%s695 + $0xf2] sm:$0xff]
      %v781 = vld [vmem:[%s695 + $0xfa] sm:$0xff]
      %v782 = vld [vmem:[%s695 + $0x10a] sm:$0xff]
      %v783 = vld [vmem:[%s695 + $0x112] sm:$0xff]
      %v784 = vld [vmem:[%s695 + $0x122] sm:$0xff]
      %v785 = vld [vmem:[%s695 + $0x12a] sm:$0xff]
      %v786 = vld [vmem:[%s695 + $0x13a] sm:$0xff]
      %v787 = vld [vmem:[%s695 + $0x142] sm:$0xff]
      %v788 = vld [vmem:[%s695 + $0x152] sm:$0xff]
      %v789 = vld [vmem:[%s695 + $0x15a] sm:$0xff]
      %v790 = vld [vmem:[%s695 + $0x16a] sm:$0xff]
      %v791 = vld [vmem:[%s695 + $0x172] sm:$0xff]
      %824 = vrot.lane.b32.xlu0 %v535, 8
      %v825 = vpop.permute.xlu0 %824
      %826 = vrot.lane.b32.xlu0 %v536, 8
      %v827 = vpop.permute.xlu0 %826
      %828 = vrot.lane.b32.xlu0 %v537, 8
      %v829 = vpop.permute.xlu0 %828
      %830 = vrot.lane.b32.xlu0 %v538, 8
      %v831 = vpop.permute.xlu0 %830
      %832 = vrot.lane.b32.xlu0 %v539, 8
      %v833 = vpop.permute.xlu0 %832
      %834 = vrot.lane.b32.xlu0 %v540, 8
      %v835 = vpop.permute.xlu0 %834
      %836 = vrot.lane.b32.xlu0 %v541, 8
      %v837 = vpop.permute.xlu0 %836
      %838 = vrot.lane.b32.xlu0 %v542, 8
      %v839 = vpop.permute.xlu0 %838
      %840 = vrot.lane.b32.xlu0 %v543, 8
      %v841 = vpop.permute.xlu0 %840
      %842 = vrot.lane.b32.xlu0 %v544, 8
      %v843 = vpop.permute.xlu0 %842
      %844 = vrot.lane.b32.xlu0 %v545, 8
      %v845 = vpop.permute.xlu0 %844
      %846 = vrot.lane.b32.xlu0 %v546, 8
      %v847 = vpop.permute.xlu0 %846
      %848 = vrot.lane.b32.xlu0 %v547, 8
      %v849 = vpop.permute.xlu0 %848
      %850 = vrot.lane.b32.xlu0 %v548, 8
      %v851 = vpop.permute.xlu0 %850
      %852 = vrot.lane.b32.xlu0 %v549, 8
      %v853 = vpop.permute.xlu0 %852
      %854 = vrot.lane.b32.xlu0 %v550, 8
      %v855 = vpop.permute.xlu0 %854
      %856 = vrot.lane.b32.xlu0 %v551, 8
      %v857 = vpop.permute.xlu0 %856
      %858 = vrot.lane.b32.xlu0 %v552, 8
      %v859 = vpop.permute.xlu0 %858
      %860 = vrot.lane.b32.xlu0 %v553, 8
      %v861 = vpop.permute.xlu0 %860
      %862 = vrot.lane.b32.xlu0 %v554, 8
      %v863 = vpop.permute.xlu0 %862
      %864 = vrot.lane.b32.xlu0 %v555, 8
      %v865 = vpop.permute.xlu0 %864
      %866 = vrot.lane.b32.xlu0 %v556, 8
      %v867 = vpop.permute.xlu0 %866
      %868 = vrot.lane.b32.xlu0 %v557, 8
      %v869 = vpop.permute.xlu0 %868
      %870 = vrot.lane.b32.xlu0 %v558, 8
      %v871 = vpop.permute.xlu0 %870
      %872 = vrot.lane.b32.xlu0 %v559, 8
      %v873 = vpop.permute.xlu0 %872
      %874 = vrot.lane.b32.xlu0 %v560, 8
      %v875 = vpop.permute.xlu0 %874
      %876 = vrot.lane.b32.xlu0 %v561, 8
      %v877 = vpop.permute.xlu0 %876
      %878 = vrot.lane.b32.xlu0 %v562, 8
      %v879 = vpop.permute.xlu0 %878
      %880 = vrot.lane.b32.xlu0 %v563, 8
      %v881 = vpop.permute.xlu0 %880
      %882 = vrot.lane.b32.xlu0 %v564, 8
      %v883 = vpop.permute.xlu0 %882
      %884 = vrot.lane.b32.xlu0 %v565, 8
      %v885 = vpop.permute.xlu0 %884
      %886 = vrot.lane.b32.xlu0 %v566, 8
      %v887 = vpop.permute.xlu0 %886
      %952 = vrot.lane.b32.xlu0 %v567, 16
      %v953 = vpop.permute.xlu0 %952
      %954 = vrot.lane.b32.xlu0 %v568, 16
      %v955 = vpop.permute.xlu0 %954
      %956 = vrot.lane.b32.xlu0 %v569, 16
      %v957 = vpop.permute.xlu0 %956
      %958 = vrot.lane.b32.xlu0 %v570, 16
      %v959 = vpop.permute.xlu0 %958
      %960 = vrot.lane.b32.xlu0 %v571, 16
      %v961 = vpop.permute.xlu0 %960
      %962 = vrot.lane.b32.xlu0 %v572, 16
      %v963 = vpop.permute.xlu0 %962
      %964 = vrot.lane.b32.xlu0 %v573, 16
      %v965 = vpop.permute.xlu0 %964
      %966 = vrot.lane.b32.xlu0 %v574, 16
      %v967 = vpop.permute.xlu0 %966
      %968 = vrot.lane.b32.xlu0 %v575, 16
      %v969 = vpop.permute.xlu0 %968
      %970 = vrot.lane.b32.xlu0 %v576, 16
      %v971 = vpop.permute.xlu0 %970
      %972 = vrot.lane.b32.xlu0 %v577, 16
      %v973 = vpop.permute.xlu0 %972
      %974 = vrot.lane.b32.xlu0 %v578, 16
      %v975 = vpop.permute.xlu0 %974
      %976 = vrot.lane.b32.xlu0 %v579, 16
      %v977 = vpop.permute.xlu0 %976
      %978 = vrot.lane.b32.xlu0 %v580, 16
      %v979 = vpop.permute.xlu0 %978
      %980 = vrot.lane.b32.xlu0 %v581, 16
      %v981 = vpop.permute.xlu0 %980
      %982 = vrot.lane.b32.xlu0 %v582, 16
      %v983 = vpop.permute.xlu0 %982
      %984 = vrot.lane.b32.xlu0 %v583, 16
      %v985 = vpop.permute.xlu0 %984
      %986 = vrot.lane.b32.xlu0 %v584, 16
      %v987 = vpop.permute.xlu0 %986
      %988 = vrot.lane.b32.xlu0 %v585, 16
      %v989 = vpop.permute.xlu0 %988
      %990 = vrot.lane.b32.xlu0 %v586, 16
      %v991 = vpop.permute.xlu0 %990
      %992 = vrot.lane.b32.xlu0 %v587, 16
      %v993 = vpop.permute.xlu0 %992
      %994 = vrot.lane.b32.xlu0 %v588, 16
      %v995 = vpop.permute.xlu0 %994
      %996 = vrot.lane.b32.xlu0 %v589, 16
      %v997 = vpop.permute.xlu0 %996
      %998 = vrot.lane.b32.xlu0 %v590, 16
      %v999 = vpop.permute.xlu0 %998
      %1000 = vrot.lane.b32.xlu0 %v591, 16
      %v1001 = vpop.permute.xlu0 %1000
      %1002 = vrot.lane.b32.xlu0 %v592, 16
      %v1003 = vpop.permute.xlu0 %1002
      %1004 = vrot.lane.b32.xlu0 %v593, 16
      %v1005 = vpop.permute.xlu0 %1004
      %1006 = vrot.lane.b32.xlu0 %v594, 16
      %v1007 = vpop.permute.xlu0 %1006
      %1008 = vrot.lane.b32.xlu0 %v595, 16
      %v1009 = vpop.permute.xlu0 %1008
      %1010 = vrot.lane.b32.xlu0 %v596, 16
      %v1011 = vpop.permute.xlu0 %1010
      %1012 = vrot.lane.b32.xlu0 %v597, 16
      %v1013 = vpop.permute.xlu0 %1012
      %1014 = vrot.lane.b32.xlu0 %v598, 16
      %v1015 = vpop.permute.xlu0 %1014
      %1080 = vrot.lane.b32.xlu0 %v599, 24
      %v1081 = vpop.permute.xlu0 %1080
      %1082 = vrot.lane.b32.xlu0 %v600, 24
      %v1083 = vpop.permute.xlu0 %1082
      %1084 = vrot.lane.b32.xlu0 %v601, 24
      %v1085 = vpop.permute.xlu0 %1084
      %1086 = vrot.lane.b32.xlu0 %v602, 24
      %v1087 = vpop.permute.xlu0 %1086
      %1088 = vrot.lane.b32.xlu0 %v603, 24
      %v1089 = vpop.permute.xlu0 %1088
      %1090 = vrot.lane.b32.xlu0 %v604, 24
      %v1091 = vpop.permute.xlu0 %1090
      %1092 = vrot.lane.b32.xlu0 %v605, 24
      %v1093 = vpop.permute.xlu0 %1092
      %1094 = vrot.lane.b32.xlu0 %v606, 24
      %v1095 = vpop.permute.xlu0 %1094
      %1096 = vrot.lane.b32.xlu0 %v607, 24
      %v1097 = vpop.permute.xlu0 %1096
      %1098 = vrot.lane.b32.xlu0 %v608, 24
      %v1099 = vpop.permute.xlu0 %1098
      %1100 = vrot.lane.b32.xlu0 %v609, 24
      %v1101 = vpop.permute.xlu0 %1100
      %1102 = vrot.lane.b32.xlu0 %v610, 24
      %v1103 = vpop.permute.xlu0 %1102
      %1104 = vrot.lane.b32.xlu0 %v611, 24
      %v1105 = vpop.permute.xlu0 %1104
      %1106 = vrot.lane.b32.xlu0 %v612, 24
      %v1107 = vpop.permute.xlu0 %1106
      %1108 = vrot.lane.b32.xlu0 %v613, 24
      %v1109 = vpop.permute.xlu0 %1108
      %1110 = vrot.lane.b32.xlu0 %v614, 24
      %v1111 = vpop.permute.xlu0 %1110
      %1112 = vrot.lane.b32.xlu0 %v615, 24
      %v1113 = vpop.permute.xlu0 %1112
      %1114 = vrot.lane.b32.xlu0 %v616, 24
      %v1115 = vpop.permute.xlu0 %1114
      %1116 = vrot.lane.b32.xlu0 %v617, 24
      %v1117 = vpop.permute.xlu0 %1116
      %1118 = vrot.lane.b32.xlu0 %v618, 24
      %v1119 = vpop.permute.xlu0 %1118
      %1120 = vrot.lane.b32.xlu0 %v619, 24
      %v1121 = vpop.permute.xlu0 %1120
      %1122 = vrot.lane.b32.xlu0 %v620, 24
      %v1123 = vpop.permute.xlu0 %1122
      %1124 = vrot.lane.b32.xlu0 %v621, 24
      %v1125 = vpop.permute.xlu0 %1124
      %1126 = vrot.lane.b32.xlu0 %v622, 24
      %v1127 = vpop.permute.xlu0 %1126
      %1128 = vrot.lane.b32.xlu0 %v623, 24
      %v1129 = vpop.permute.xlu0 %1128
      %1130 = vrot.lane.b32.xlu0 %v624, 24
      %v1131 = vpop.permute.xlu0 %1130
      %1132 = vrot.lane.b32.xlu0 %v625, 24
      %v1133 = vpop.permute.xlu0 %1132
      %1134 = vrot.lane.b32.xlu0 %v626, 24
      %v1135 = vpop.permute.xlu0 %1134
      %1136 = vrot.lane.b32.xlu0 %v627, 24
      %v1137 = vpop.permute.xlu0 %1136
      %1138 = vrot.lane.b32.xlu0 %v628, 24
      %v1139 = vpop.permute.xlu0 %1138
      %1140 = vrot.lane.b32.xlu0 %v629, 24
      %v1141 = vpop.permute.xlu0 %1140
      %1142 = vrot.lane.b32.xlu0 %v630, 24
      %v1143 = vpop.permute.xlu0 %1142
      %1208 = vrot.lane.b32.xlu0 %v631, 32
      %v1209 = vpop.permute.xlu0 %1208
      %1210 = vrot.lane.b32.xlu0 %v632, 32
      %v1211 = vpop.permute.xlu0 %1210
      %1212 = vrot.lane.b32.xlu0 %v633, 32
      %v1213 = vpop.permute.xlu0 %1212
      %1214 = vrot.lane.b32.xlu0 %v634, 32
      %v1215 = vpop.permute.xlu0 %1214
      %1216 = vrot.lane.b32.xlu0 %v635, 32
      %v1217 = vpop.permute.xlu0 %1216
      %1218 = vrot.lane.b32.xlu0 %v636, 32
      %v1219 = vpop.permute.xlu0 %1218
      %1220 = vrot.lane.b32.xlu0 %v637, 32
      %v1221 = vpop.permute.xlu0 %1220
      %1222 = vrot.lane.b32.xlu0 %v638, 32
      %v1223 = vpop.permute.xlu0 %1222
      %1224 = vrot.lane.b32.xlu0 %v639, 32
      %v1225 = vpop.permute.xlu0 %1224
      %1226 = vrot.lane.b32.xlu0 %v640, 32
      %v1227 = vpop.permute.xlu0 %1226
      %1228 = vrot.lane.b32.xlu0 %v641, 32
      %v1229 = vpop.permute.xlu0 %1228
      %1230 = vrot.lane.b32.xlu0 %v642, 32
      %v1231 = vpop.permute.xlu0 %1230
      %1232 = vrot.lane.b32.xlu0 %v643, 32
      %v1233 = vpop.permute.xlu0 %1232
      %1234 = vrot.lane.b32.xlu0 %v644, 32
      %v1235 = vpop.permute.xlu0 %1234
      %1236 = vrot.lane.b32.xlu0 %v645, 32
      %v1237 = vpop.permute.xlu0 %1236
      %1238 = vrot.lane.b32.xlu0 %v646, 32
      %v1239 = vpop.permute.xlu0 %1238
      %1240 = vrot.lane.b32.xlu0 %v647, 32
      %v1241 = vpop.permute.xlu0 %1240
      %1242 = vrot.lane.b32.xlu0 %v648, 32
      %v1243 = vpop.permute.xlu0 %1242
      %1244 = vrot.lane.b32.xlu0 %v649, 32
      %v1245 = vpop.permute.xlu0 %1244
      %1246 = vrot.lane.b32.xlu0 %v650, 32
      %v1247 = vpop.permute.xlu0 %1246
      %1248 = vrot.lane.b32.xlu0 %v651, 32
      %v1249 = vpop.permute.xlu0 %1248
      %1250 = vrot.lane.b32.xlu0 %v652, 32
      %v1251 = vpop.permute.xlu0 %1250
      %1252 = vrot.lane.b32.xlu0 %v653, 32
      %v1253 = vpop.permute.xlu0 %1252
      %1254 = vrot.lane.b32.xlu0 %v654, 32
      %v1255 = vpop.permute.xlu0 %1254
      %1256 = vrot.lane.b32.xlu0 %v655, 32
      %v1257 = vpop.permute.xlu0 %1256
      %1258 = vrot.lane.b32.xlu0 %v656, 32
      %v1259 = vpop.permute.xlu0 %1258
      %1260 = vrot.lane.b32.xlu0 %v657, 32
      %v1261 = vpop.permute.xlu0 %1260
      %1262 = vrot.lane.b32.xlu0 %v658, 32
      %v1263 = vpop.permute.xlu0 %1262
      %1264 = vrot.lane.b32.xlu0 %v659, 32
      %v1265 = vpop.permute.xlu0 %1264
      %1266 = vrot.lane.b32.xlu0 %v660, 32
      %v1267 = vpop.permute.xlu0 %1266
      %1268 = vrot.lane.b32.xlu0 %v661, 32
      %v1269 = vpop.permute.xlu0 %1268
      %1270 = vrot.lane.b32.xlu0 %v662, 32
      %v1271 = vpop.permute.xlu0 %1270
      %1336 = vrot.lane.b32.xlu0 %v663, 40
      %v1337 = vpop.permute.xlu0 %1336
      %1338 = vrot.lane.b32.xlu0 %v664, 40
      %v1339 = vpop.permute.xlu0 %1338
      %1340 = vrot.lane.b32.xlu0 %v665, 40
      %v1341 = vpop.permute.xlu0 %1340
      %1342 = vrot.lane.b32.xlu0 %v666, 40
      %v1343 = vpop.permute.xlu0 %1342
      %1344 = vrot.lane.b32.xlu0 %v667, 40
      %v1345 = vpop.permute.xlu0 %1344
      %1346 = vrot.lane.b32.xlu0 %v668, 40
      %v1347 = vpop.permute.xlu0 %1346
      %1348 = vrot.lane.b32.xlu0 %v669, 40
      %v1349 = vpop.permute.xlu0 %1348
      %1350 = vrot.lane.b32.xlu0 %v670, 40
      %v1351 = vpop.permute.xlu0 %1350
      %1352 = vrot.lane.b32.xlu0 %v671, 40
      %v1353 = vpop.permute.xlu0 %1352
      %1354 = vrot.lane.b32.xlu0 %v672, 40
      %v1355 = vpop.permute.xlu0 %1354
      %1356 = vrot.lane.b32.xlu0 %v673, 40
      %v1357 = vpop.permute.xlu0 %1356
      %1358 = vrot.lane.b32.xlu0 %v674, 40
      %v1359 = vpop.permute.xlu0 %1358
      %1360 = vrot.lane.b32.xlu0 %v675, 40
      %v1361 = vpop.permute.xlu0 %1360
      %1362 = vrot.lane.b32.xlu0 %v676, 40
      %v1363 = vpop.permute.xlu0 %1362
      %1364 = vrot.lane.b32.xlu0 %v677, 40
      %v1365 = vpop.permute.xlu0 %1364
      %1366 = vrot.lane.b32.xlu0 %v678, 40
      %v1367 = vpop.permute.xlu0 %1366
      %1368 = vrot.lane.b32.xlu0 %v679, 40
      %v1369 = vpop.permute.xlu0 %1368
      %1370 = vrot.lane.b32.xlu0 %v680, 40
      %v1371 = vpop.permute.xlu0 %1370
      %1372 = vrot.lane.b32.xlu0 %v681, 40
      %v1373 = vpop.permute.xlu0 %1372
      %1374 = vrot.lane.b32.xlu0 %v682, 40
      %v1375 = vpop.permute.xlu0 %1374
      %1376 = vrot.lane.b32.xlu0 %v683, 40
      %v1377 = vpop.permute.xlu0 %1376
      %1378 = vrot.lane.b32.xlu0 %v684, 40
      %v1379 = vpop.permute.xlu0 %1378
      %1380 = vrot.lane.b32.xlu0 %v685, 40
      %v1381 = vpop.permute.xlu0 %1380
      %1382 = vrot.lane.b32.xlu0 %v686, 40
      %v1383 = vpop.permute.xlu0 %1382
      %1384 = vrot.lane.b32.xlu0 %v687, 40
      %v1385 = vpop.permute.xlu0 %1384
      %1386 = vrot.lane.b32.xlu0 %v688, 40
      %v1387 = vpop.permute.xlu0 %1386
      %1388 = vrot.lane.b32.xlu0 %v689, 40
      %v1389 = vpop.permute.xlu0 %1388
      %1390 = vrot.lane.b32.xlu0 %v690, 40
      %v1391 = vpop.permute.xlu0 %1390
      %1392 = vrot.lane.b32.xlu0 %v691, 40
      %v1393 = vpop.permute.xlu0 %1392
      %1394 = vrot.lane.b32.xlu0 %v692, 40
      %v1395 = vpop.permute.xlu0 %1394
      %1396 = vrot.lane.b32.xlu0 %v693, 40
      %v1397 = vpop.permute.xlu0 %1396
      %1398 = vrot.lane.b32.xlu0 %v694, 40
      %v1399 = vpop.permute.xlu0 %1398
      %1464 = vrot.lane.b32.xlu0 %v696, 48
      %v1465 = vpop.permute.xlu0 %1464
      %1466 = vrot.lane.b32.xlu0 %v697, 48
      %v1467 = vpop.permute.xlu0 %1466
      %1468 = vrot.lane.b32.xlu0 %v698, 48
      %v1469 = vpop.permute.xlu0 %1468
      %1470 = vrot.lane.b32.xlu0 %v699, 48
      %v1471 = vpop.permute.xlu0 %1470
      %1472 = vrot.lane.b32.xlu0 %v700, 48
      %v1473 = vpop.permute.xlu0 %1472
      %1474 = vrot.lane.b32.xlu0 %v701, 48
      %v1475 = vpop.permute.xlu0 %1474
      %1476 = vrot.lane.b32.xlu0 %v702, 48
      %v1477 = vpop.permute.xlu0 %1476
      %1478 = vrot.lane.b32.xlu0 %v703, 48
      %v1479 = vpop.permute.xlu0 %1478
      %1480 = vrot.lane.b32.xlu0 %v704, 48
      %v1481 = vpop.permute.xlu0 %1480
      %1482 = vrot.lane.b32.xlu0 %v705, 48
      %v1483 = vpop.permute.xlu0 %1482
      %1484 = vrot.lane.b32.xlu0 %v706, 48
      %v1485 = vpop.permute.xlu0 %1484
      %1486 = vrot.lane.b32.xlu0 %v707, 48
      %v1487 = vpop.permute.xlu0 %1486
      %1488 = vrot.lane.b32.xlu0 %v708, 48
      %v1489 = vpop.permute.xlu0 %1488
      %1490 = vrot.lane.b32.xlu0 %v709, 48
      %v1491 = vpop.permute.xlu0 %1490
      %1492 = vrot.lane.b32.xlu0 %v710, 48
      %v1493 = vpop.permute.xlu0 %1492
      %1494 = vrot.lane.b32.xlu0 %v711, 48
      %v1495 = vpop.permute.xlu0 %1494
      %1496 = vrot.lane.b32.xlu0 %v712, 48
      %v1497 = vpop.permute.xlu0 %1496
      %1498 = vrot.lane.b32.xlu0 %v713, 48
      %v1499 = vpop.permute.xlu0 %1498
      %1500 = vrot.lane.b32.xlu0 %v714, 48
      %v1501 = vpop.permute.xlu0 %1500
      %1502 = vrot.lane.b32.xlu0 %v715, 48
      %v1503 = vpop.permute.xlu0 %1502
      %1504 = vrot.lane.b32.xlu0 %v716, 48
      %v1505 = vpop.permute.xlu0 %1504
      %1506 = vrot.lane.b32.xlu0 %v717, 48
      %v1507 = vpop.permute.xlu0 %1506
      %1508 = vrot.lane.b32.xlu0 %v718, 48
      %v1509 = vpop.permute.xlu0 %1508
      %1510 = vrot.lane.b32.xlu0 %v719, 48
      %v1511 = vpop.permute.xlu0 %1510
      %1512 = vrot.lane.b32.xlu0 %v720, 48
      %v1513 = vpop.permute.xlu0 %1512
      %1514 = vrot.lane.b32.xlu0 %v721, 48
      %v1515 = vpop.permute.xlu0 %1514
      %1516 = vrot.lane.b32.xlu0 %v722, 48
      %v1517 = vpop.permute.xlu0 %1516
      %1518 = vrot.lane.b32.xlu0 %v723, 48
      %v1519 = vpop.permute.xlu0 %1518
      %1520 = vrot.lane.b32.xlu0 %v724, 48
      %v1521 = vpop.permute.xlu0 %1520
      %1522 = vrot.lane.b32.xlu0 %v725, 48
      %v1523 = vpop.permute.xlu0 %1522
      %1524 = vrot.lane.b32.xlu0 %v726, 48
      %v1525 = vpop.permute.xlu0 %1524
      %1526 = vrot.lane.b32.xlu0 %v727, 48
      %v1527 = vpop.permute.xlu0 %1526
      %1592 = vrot.lane.b32.xlu0 %v728, 56
      %v1593 = vpop.permute.xlu0 %1592
      %1594 = vrot.lane.b32.xlu0 %v729, 56
      %v1595 = vpop.permute.xlu0 %1594
      %1596 = vrot.lane.b32.xlu0 %v730, 56
      %v1597 = vpop.permute.xlu0 %1596
      %1598 = vrot.lane.b32.xlu0 %v731, 56
      %v1599 = vpop.permute.xlu0 %1598
      %1600 = vrot.lane.b32.xlu0 %v732, 56
      %v1601 = vpop.permute.xlu0 %1600
      %1602 = vrot.lane.b32.xlu0 %v733, 56
      %v1603 = vpop.permute.xlu0 %1602
      %1604 = vrot.lane.b32.xlu0 %v734, 56
      %v1605 = vpop.permute.xlu0 %1604
      %1606 = vrot.lane.b32.xlu0 %v735, 56
      %v1607 = vpop.permute.xlu0 %1606
      %1608 = vrot.lane.b32.xlu0 %v736, 56
      %v1609 = vpop.permute.xlu0 %1608
      %1610 = vrot.lane.b32.xlu0 %v737, 56
      %v1611 = vpop.permute.xlu0 %1610
      %1612 = vrot.lane.b32.xlu0 %v738, 56
      %v1613 = vpop.permute.xlu0 %1612
      %1614 = vrot.lane.b32.xlu0 %v739, 56
      %v1615 = vpop.permute.xlu0 %1614
      %1616 = vrot.lane.b32.xlu0 %v740, 56
      %v1617 = vpop.permute.xlu0 %1616
      %1618 = vrot.lane.b32.xlu0 %v741, 56
      %v1619 = vpop.permute.xlu0 %1618
      %1620 = vrot.lane.b32.xlu0 %v742, 56
      %v1621 = vpop.permute.xlu0 %1620
      %1622 = vrot.lane.b32.xlu0 %v743, 56
      %v1623 = vpop.permute.xlu0 %1622
      %1624 = vrot.lane.b32.xlu0 %v744, 56
      %v1625 = vpop.permute.xlu0 %1624
      %1626 = vrot.lane.b32.xlu0 %v745, 56
      %v1627 = vpop.permute.xlu0 %1626
      %1628 = vrot.lane.b32.xlu0 %v746, 56
      %v1629 = vpop.permute.xlu0 %1628
      %1630 = vrot.lane.b32.xlu0 %v747, 56
      %v1631 = vpop.permute.xlu0 %1630
      %1632 = vrot.lane.b32.xlu0 %v748, 56
      %v1633 = vpop.permute.xlu0 %1632
      %1634 = vrot.lane.b32.xlu0 %v749, 56
      %v1635 = vpop.permute.xlu0 %1634
      %1636 = vrot.lane.b32.xlu0 %v750, 56
      %v1637 = vpop.permute.xlu0 %1636
      %1638 = vrot.lane.b32.xlu0 %v751, 56
      %v1639 = vpop.permute.xlu0 %1638
      %1640 = vrot.lane.b32.xlu0 %v752, 56
      %v1641 = vpop.permute.xlu0 %1640
      %1642 = vrot.lane.b32.xlu0 %v753, 56
      %v1643 = vpop.permute.xlu0 %1642
      %1644 = vrot.lane.b32.xlu0 %v754, 56
      %v1645 = vpop.permute.xlu0 %1644
      %1646 = vrot.lane.b32.xlu0 %v755, 56
      %v1647 = vpop.permute.xlu0 %1646
      %1648 = vrot.lane.b32.xlu0 %v756, 56
      %v1649 = vpop.permute.xlu0 %1648
      %1650 = vrot.lane.b32.xlu0 %v757, 56
      %v1651 = vpop.permute.xlu0 %1650
      %1652 = vrot.lane.b32.xlu0 %v758, 56
      %v1653 = vpop.permute.xlu0 %1652
      %1654 = vrot.lane.b32.xlu0 %v759, 56
      %v1655 = vpop.permute.xlu0 %1654
      %1720 = vrot.lane.b32.xlu0 %v760, 64
      %v1721 = vpop.permute.xlu0 %1720
      %1722 = vrot.lane.b32.xlu0 %v761, 64
      %v1723 = vpop.permute.xlu0 %1722
      %1724 = vrot.lane.b32.xlu0 %v762, 64
      %v1725 = vpop.permute.xlu0 %1724
      %1726 = vrot.lane.b32.xlu0 %v763, 64
      %v1727 = vpop.permute.xlu0 %1726
      %1728 = vrot.lane.b32.xlu0 %v764, 64
      %v1729 = vpop.permute.xlu0 %1728
      %1730 = vrot.lane.b32.xlu0 %v765, 64
      %v1731 = vpop.permute.xlu0 %1730
      %1732 = vrot.lane.b32.xlu0 %v766, 64
      %v1733 = vpop.permute.xlu0 %1732
      %1734 = vrot.lane.b32.xlu0 %v767, 64
      %v1735 = vpop.permute.xlu0 %1734
      %1736 = vrot.lane.b32.xlu0 %v768, 64
      %v1737 = vpop.permute.xlu0 %1736
      %1738 = vrot.lane.b32.xlu0 %v769, 64
      %v1739 = vpop.permute.xlu0 %1738
      %1740 = vrot.lane.b32.xlu0 %v770, 64
      %v1741 = vpop.permute.xlu0 %1740
      %1742 = vrot.lane.b32.xlu0 %v771, 64
      %v1743 = vpop.permute.xlu0 %1742
      %1744 = vrot.lane.b32.xlu0 %v772, 64
      %v1745 = vpop.permute.xlu0 %1744
      %1746 = vrot.lane.b32.xlu0 %v773, 64
      %v1747 = vpop.permute.xlu0 %1746
      %1748 = vrot.lane.b32.xlu0 %v774, 64
      %v1749 = vpop.permute.xlu0 %1748
      %1750 = vrot.lane.b32.xlu0 %v775, 64
      %v1751 = vpop.permute.xlu0 %1750
      %1752 = vrot.lane.b32.xlu0 %v776, 64
      %v1753 = vpop.permute.xlu0 %1752
      %1754 = vrot.lane.b32.xlu0 %v777, 64
      %v1755 = vpop.permute.xlu0 %1754
      %1756 = vrot.lane.b32.xlu0 %v778, 64
      %v1757 = vpop.permute.xlu0 %1756
      %1758 = vrot.lane.b32.xlu0 %v779, 64
      %v1759 = vpop.permute.xlu0 %1758
      %1760 = vrot.lane.b32.xlu0 %v780, 64
      %v1761 = vpop.permute.xlu0 %1760
      %1762 = vrot.lane.b32.xlu0 %v781, 64
      %v1763 = vpop.permute.xlu0 %1762
      %1764 = vrot.lane.b32.xlu0 %v782, 64
      %v1765 = vpop.permute.xlu0 %1764
      %1766 = vrot.lane.b32.xlu0 %v783, 64
      %v1767 = vpop.permute.xlu0 %1766
      %1768 = vrot.lane.b32.xlu0 %v784, 64
      %v1769 = vpop.permute.xlu0 %1768
      %1770 = vrot.lane.b32.xlu0 %v785, 64
      %v1771 = vpop.permute.xlu0 %1770
      %1772 = vrot.lane.b32.xlu0 %v786, 64
      %v1773 = vpop.permute.xlu0 %1772
      %1774 = vrot.lane.b32.xlu0 %v787, 64
      %v1775 = vpop.permute.xlu0 %1774
      %1776 = vrot.lane.b32.xlu0 %v788, 64
      %v1777 = vpop.permute.xlu0 %1776
      %1778 = vrot.lane.b32.xlu0 %v789, 64
      %v1779 = vpop.permute.xlu0 %1778
      %1780 = vrot.lane.b32.xlu0 %v790, 64
      %v1781 = vpop.permute.xlu0 %1780
      %1782 = vrot.lane.b32.xlu0 %v791, 64
      %v1783 = vpop.permute.xlu0 %1782
      %v1816 = vsel %vm414, %v503, %v825
      %v1817 = vsel %vm414, %v504, %v827
      %v1818 = vsel %vm414, %v505, %v829
      %v1819 = vsel %vm414, %v506, %v831
      %v1820 = vsel %vm414, %v507, %v833
      %v1821 = vsel %vm414, %v508, %v835
      %v1822 = vsel %vm414, %v509, %v837
      %v1823 = vsel %vm414, %v510, %v839
      %v1824 = vsel %vm414, %v511, %v841
      %v1825 = vsel %vm414, %v512, %v843
      %v1826 = vsel %vm414, %v513, %v845
      %v1827 = vsel %vm414, %v514, %v847
      %v1828 = vsel %vm414, %v515, %v849
      %v1829 = vsel %vm414, %v516, %v851
      %v1830 = vsel %vm414, %v517, %v853
      %v1831 = vsel %vm414, %v518, %v855
      %v1832 = vsel %vm414, %v519, %v857
      %v1833 = vsel %vm414, %v520, %v859
      %v1834 = vsel %vm414, %v521, %v861
      %v1835 = vsel %vm414, %v522, %v863
      %v1836 = vsel %vm414, %v523, %v865
      %v1837 = vsel %vm414, %v524, %v867
      %v1838 = vsel %vm414, %v525, %v869
      %v1839 = vsel %vm414, %v526, %v871
      %v1840 = vsel %vm414, %v527, %v873
      %v1841 = vsel %vm414, %v528, %v875
      %v1842 = vsel %vm414, %v529, %v877
      %v1843 = vsel %vm414, %v530, %v879
      %v1844 = vsel %vm414, %v531, %v881
      %v1845 = vsel %vm414, %v532, %v883
      %v1846 = vsel %vm414, %v533, %v885
      %v1847 = vsel %vm414, %v534, %v887
      %vm1848 = vcmask 130048
      %v1849 = vsel %vm1848, %v1816, %v953
      %v1850 = vsel %vm1848, %v1817, %v955
      %v1851 = vsel %vm1848, %v1818, %v957
      %v1852 = vsel %vm1848, %v1819, %v959
      %v1853 = vsel %vm1848, %v1820, %v961
      %v1854 = vsel %vm1848, %v1821, %v963
      %v1855 = vsel %vm1848, %v1822, %v965
      %v1856 = vsel %vm1848, %v1823, %v967
      %v1857 = vsel %vm1848, %v1824, %v969
      %v1858 = vsel %vm1848, %v1825, %v971
      %v1859 = vsel %vm1848, %v1826, %v973
      %v1860 = vsel %vm1848, %v1827, %v975
      %v1861 = vsel %vm1848, %v1828, %v977
      %v1862 = vsel %vm1848, %v1829, %v979
      %v1863 = vsel %vm1848, %v1830, %v981
      %v1864 = vsel %vm1848, %v1831, %v983
      %v1865 = vsel %vm1848, %v1832, %v985
      %v1866 = vsel %vm1848, %v1833, %v987
      %v1867 = vsel %vm1848, %v1834, %v989
      %v1868 = vsel %vm1848, %v1835, %v991
      %v1869 = vsel %vm1848, %v1836, %v993
      %v1870 = vsel %vm1848, %v1837, %v995
      %v1871 = vsel %vm1848, %v1838, %v997
      %v1872 = vsel %vm1848, %v1839, %v999
      %v1873 = vsel %vm1848, %v1840, %v1001
      %v1874 = vsel %vm1848, %v1841, %v1003
      %v1875 = vsel %vm1848, %v1842, %v1005
      %v1876 = vsel %vm1848, %v1843, %v1007
      %v1877 = vsel %vm1848, %v1844, %v1009
      %v1878 = vsel %vm1848, %v1845, %v1011
      %v1879 = vsel %vm1848, %v1846, %v1013
      %v1880 = vsel %vm1848, %v1847, %v1015
      %vm1881 = vcmask 195584
      %v1882 = vsel %vm1881, %v1849, %v1081
      %v1883 = vsel %vm1881, %v1850, %v1083
      %v1884 = vsel %vm1881, %v1851, %v1085
      %v1885 = vsel %vm1881, %v1852, %v1087
      %v1886 = vsel %vm1881, %v1853, %v1089
      %v1887 = vsel %vm1881, %v1854, %v1091
      %v1888 = vsel %vm1881, %v1855, %v1093
      %v1889 = vsel %vm1881, %v1856, %v1095
      %v1890 = vsel %vm1881, %v1857, %v1097
      %v1891 = vsel %vm1881, %v1858, %v1099
      %v1892 = vsel %vm1881, %v1859, %v1101
      %v1893 = vsel %vm1881, %v1860, %v1103
      %v1894 = vsel %vm1881, %v1861, %v1105
      %v1895 = vsel %vm1881, %v1862, %v1107
      %v1896 = vsel %vm1881, %v1863, %v1109
      %v1897 = vsel %vm1881, %v1864, %v1111
      %v1898 = vsel %vm1881, %v1865, %v1113
      %v1899 = vsel %vm1881, %v1866, %v1115
      %v1900 = vsel %vm1881, %v1867, %v1117
      %v1901 = vsel %vm1881, %v1868, %v1119
      %v1902 = vsel %vm1881, %v1869, %v1121
      %v1903 = vsel %vm1881, %v1870, %v1123
      %v1904 = vsel %vm1881, %v1871, %v1125
      %v1905 = vsel %vm1881, %v1872, %v1127
      %v1906 = vsel %vm1881, %v1873, %v1129
      %v1907 = vsel %vm1881, %v1874, %v1131
      %v1908 = vsel %vm1881, %v1875, %v1133
      %v1909 = vsel %vm1881, %v1876, %v1135
      %v1910 = vsel %vm1881, %v1877, %v1137
      %v1911 = vsel %vm1881, %v1878, %v1139
      %v1912 = vsel %vm1881, %v1879, %v1141
      %v1913 = vsel %vm1881, %v1880, %v1143
      %vm1914 = vcmask 261120
      %v1915 = vsel %vm1914, %v1882, %v1209
      %v1916 = vsel %vm1914, %v1883, %v1211
      %v1917 = vsel %vm1914, %v1884, %v1213
      %v1918 = vsel %vm1914, %v1885, %v1215
      %v1919 = vsel %vm1914, %v1886, %v1217
      %v1920 = vsel %vm1914, %v1887, %v1219
      %v1921 = vsel %vm1914, %v1888, %v1221
      %v1922 = vsel %vm1914, %v1889, %v1223
      %v1923 = vsel %vm1914, %v1890, %v1225
      %v1924 = vsel %vm1914, %v1891, %v1227
      %v1925 = vsel %vm1914, %v1892, %v1229
      %v1926 = vsel %vm1914, %v1893, %v1231
      %v1927 = vsel %vm1914, %v1894, %v1233
      %v1928 = vsel %vm1914, %v1895, %v1235
      %v1929 = vsel %vm1914, %v1896, %v1237
      %v1930 = vsel %vm1914, %v1897, %v1239
      %v1931 = vsel %vm1914, %v1898, %v1241
      %v1932 = vsel %vm1914, %v1899, %v1243
      %v1933 = vsel %vm1914, %v1900, %v1245
      %v1934 = vsel %vm1914, %v1901, %v1247
      %v1935 = vsel %vm1914, %v1902, %v1249
      %v1936 = vsel %vm1914, %v1903, %v1251
      %v1937 = vsel %vm1914, %v1904, %v1253
      %v1938 = vsel %vm1914, %v1905, %v1255
      %v1939 = vsel %vm1914, %v1906, %v1257
      %v1940 = vsel %vm1914, %v1907, %v1259
      %v1941 = vsel %vm1914, %v1908, %v1261
      %v1942 = vsel %vm1914, %v1909, %v1263
      %v1943 = vsel %vm1914, %v1910, %v1265
      %v1944 = vsel %vm1914, %v1911, %v1267
      %v1945 = vsel %vm1914, %v1912, %v1269
      %v1946 = vsel %vm1914, %v1913, %v1271
      %vm1947 = vcmask 326656
      %v1948 = vsel %vm1947, %v1915, %v1337
      %v1949 = vsel %vm1947, %v1916, %v1339
      %v1950 = vsel %vm1947, %v1917, %v1341
      %v1951 = vsel %vm1947, %v1918, %v1343
      %v1952 = vsel %vm1947, %v1919, %v1345
      %v1953 = vsel %vm1947, %v1920, %v1347
      %v1954 = vsel %vm1947, %v1921, %v1349
      %v1955 = vsel %vm1947, %v1922, %v1351
      %v1956 = vsel %vm1947, %v1923, %v1353
      %v1957 = vsel %vm1947, %v1924, %v1355
      %v1958 = vsel %vm1947, %v1925, %v1357
      %v1959 = vsel %vm1947, %v1926, %v1359
      %v1960 = vsel %vm1947, %v1927, %v1361
      %v1961 = vsel %vm1947, %v1928, %v1363
      %v1962 = vsel %vm1947, %v1929, %v1365
      %v1963 = vsel %vm1947, %v1930, %v1367
      %v1964 = vsel %vm1947, %v1931, %v1369
      %v1965 = vsel %vm1947, %v1932, %v1371
      %v1966 = vsel %vm1947, %v1933, %v1373
      %v1967 = vsel %vm1947, %v1934, %v1375
      %v1968 = vsel %vm1947, %v1935, %v1377
      %v1969 = vsel %vm1947, %v1936, %v1379
      %v1970 = vsel %vm1947, %v1937, %v1381
      %v1971 = vsel %vm1947, %v1938, %v1383
      %v1972 = vsel %vm1947, %v1939, %v1385
      %v1973 = vsel %vm1947, %v1940, %v1387
      %v1974 = vsel %vm1947, %v1941, %v1389
      %v1975 = vsel %vm1947, %v1942, %v1391
      %v1976 = vsel %vm1947, %v1943, %v1393
      %v1977 = vsel %vm1947, %v1944, %v1395
      %v1978 = vsel %vm1947, %v1945, %v1397
      %v1979 = vsel %vm1947, %v1946, %v1399
      %vm1980 = vcmask 392192
      %v1981 = vsel %vm1980, %v1948, %v1465
      %v1982 = vsel %vm1980, %v1949, %v1467
      %v1983 = vsel %vm1980, %v1950, %v1469
      %v1984 = vsel %vm1980, %v1951, %v1471
      %v1985 = vsel %vm1980, %v1952, %v1473
      %v1986 = vsel %vm1980, %v1953, %v1475
      %v1987 = vsel %vm1980, %v1954, %v1477
      %v1988 = vsel %vm1980, %v1955, %v1479
      %v1989 = vsel %vm1980, %v1956, %v1481
      %v1990 = vsel %vm1980, %v1957, %v1483
      %v1991 = vsel %vm1980, %v1958, %v1485
      %v1992 = vsel %vm1980, %v1959, %v1487
      %v1993 = vsel %vm1980, %v1960, %v1489
      %v1994 = vsel %vm1980, %v1961, %v1491
      %v1995 = vsel %vm1980, %v1962, %v1493
      %v1996 = vsel %vm1980, %v1963, %v1495
      %v1997 = vsel %vm1980, %v1964, %v1497
      %v1998 = vsel %vm1980, %v1965, %v1499
      %v1999 = vsel %vm1980, %v1966, %v1501
      %v2000 = vsel %vm1980, %v1967, %v1503
      %v2001 = vsel %vm1980, %v1968, %v1505
      %v2002 = vsel %vm1980, %v1969, %v1507
      %v2003 = vsel %vm1980, %v1970, %v1509
      %v2004 = vsel %vm1980, %v1971, %v1511
      %v2005 = vsel %vm1980, %v1972, %v1513
      %v2006 = vsel %vm1980, %v1973, %v1515
      %v2007 = vsel %vm1980, %v1974, %v1517
      %v2008 = vsel %vm1980, %v1975, %v1519
      %v2009 = vsel %vm1980, %v1976, %v1521
      %v2010 = vsel %vm1980, %v1977, %v1523
      %v2011 = vsel %vm1980, %v1978, %v1525
      %v2012 = vsel %vm1980, %v1979, %v1527
      %vm2013 = vcmask 457728
      %v2014 = vsel %vm2013, %v1981, %v1593
      %v2015 = vsel %vm2013, %v1982, %v1595
      %v2016 = vsel %vm2013, %v1983, %v1597
      %v2017 = vsel %vm2013, %v1984, %v1599
      %v2018 = vsel %vm2013, %v1985, %v1601
      %v2019 = vsel %vm2013, %v1986, %v1603
      %v2020 = vsel %vm2013, %v1987, %v1605
      %v2021 = vsel %vm2013, %v1988, %v1607
      %v2022 = vsel %vm2013, %v1989, %v1609
      %v2023 = vsel %vm2013, %v1990, %v1611
      %v2024 = vsel %vm2013, %v1991, %v1613
      %v2025 = vsel %vm2013, %v1992, %v1615
      %v2026 = vsel %vm2013, %v1993, %v1617
      %v2027 = vsel %vm2013, %v1994, %v1619
      %v2028 = vsel %vm2013, %v1995, %v1621
      %v2029 = vsel %vm2013, %v1996, %v1623
      %v2030 = vsel %vm2013, %v1997, %v1625
      %v2031 = vsel %vm2013, %v1998, %v1627
      %v2032 = vsel %vm2013, %v1999, %v1629
      %v2033 = vsel %vm2013, %v2000, %v1631
      %v2034 = vsel %vm2013, %v2001, %v1633
      %v2035 = vsel %vm2013, %v2002, %v1635
      %v2036 = vsel %vm2013, %v2003, %v1637
      %v2037 = vsel %vm2013, %v2004, %v1639
      %v2038 = vsel %vm2013, %v2005, %v1641
      %v2039 = vsel %vm2013, %v2006, %v1643
      %v2040 = vsel %vm2013, %v2007, %v1645
      %v2041 = vsel %vm2013, %v2008, %v1647
      %v2042 = vsel %vm2013, %v2009, %v1649
      %v2043 = vsel %vm2013, %v2010, %v1651
      %v2044 = vsel %vm2013, %v2011, %v1653
      %v2045 = vsel %vm2013, %v2012, %v1655
      %vm2046 = vcmask 523264
      %v2047 = vsel %vm2046, %v2014, %v1721
      %v2048 = vsel %vm2046, %v2015, %v1723
      %v2049 = vsel %vm2046, %v2016, %v1725
      %v2050 = vsel %vm2046, %v2017, %v1727
      %v2051 = vsel %vm2046, %v2018, %v1729
      %v2052 = vsel %vm2046, %v2019, %v1731
      %v2053 = vsel %vm2046, %v2020, %v1733
      %v2054 = vsel %vm2046, %v2021, %v1735
      %v2055 = vsel %vm2046, %v2022, %v1737
      %v2056 = vsel %vm2046, %v2023, %v1739
      %v2057 = vsel %vm2046, %v2024, %v1741
      %v2058 = vsel %vm2046, %v2025, %v1743
      %v2059 = vsel %vm2046, %v2026, %v1745
      %v2060 = vsel %vm2046, %v2027, %v1747
      %v2061 = vsel %vm2046, %v2028, %v1749
      %v2062 = vsel %vm2046, %v2029, %v1751
      %v2063 = vsel %vm2046, %v2030, %v1753
      %v2064 = vsel %vm2046, %v2031, %v1755
      %v2065 = vsel %vm2046, %v2032, %v1757
      %v2066 = vsel %vm2046, %v2033, %v1759
      %v2067 = vsel %vm2046, %v2034, %v1761
      %v2068 = vsel %vm2046, %v2035, %v1763
      %v2069 = vsel %vm2046, %v2036, %v1765
      %v2070 = vsel %vm2046, %v2037, %v1767
      %v2071 = vsel %vm2046, %v2038, %v1769
      %v2072 = vsel %vm2046, %v2039, %v1771
      %v2073 = vsel %vm2046, %v2040, %v1773
      %v2074 = vsel %vm2046, %v2041, %v1775
      %v2075 = vsel %vm2046, %v2042, %v1777
      %v2076 = vsel %vm2046, %v2043, %v1779
      %v2077 = vsel %vm2046, %v2044, %v1781
      %v2078 = vsel %vm2046, %v2045, %v1783
      %v2079 = vld [vmem:[%s3] sm:$0xff]
      %v2080 = vld [vmem:[%s3 + $0x8] sm:$0xff]
      %v2081 = vld [vmem:[%s3 + $0x10] sm:$0xff]
      %v2082 = vld [vmem:[%s3 + $0x18] sm:$0xff]
      %v2083 = vld [vmem:[%s3 + $0x20] sm:$0xff]
      %v2084 = vld [vmem:[%s3 + $0x28] sm:$0xff]
      %v2085 = vld [vmem:[%s3 + $0x30] sm:$0xff]
      %v2086 = vld [vmem:[%s3 + $0x38] sm:$0xff]
      %v2087 = vld [vmem:[%s3 + $0x40] sm:$0xff]
      %v2088 = vld [vmem:[%s266] sm:$0xff]
      %v2089 = vld [vmem:[%s266 + $0x8] sm:$0xff]
      %v2090 = vld [vmem:[%s266 + $0x10] sm:$0xff]
      %v2091 = vld [vmem:[%s266 + $0x18] sm:$0xff]
      %v2092 = vld [vmem:[%s266 + $0x20] sm:$0xff]
      %v2093 = vld [vmem:[%s266 + $0x28] sm:$0xff]
      %v2094 = vld [vmem:[%s266 + $0x30] sm:$0xff]
      %v2095 = vld [vmem:[%s266 + $0x38] sm:$0xff]
      %v2096 = vld [vmem:[%s266 + $0x40] sm:$0xff]
      %v2097 = vld [vmem:[%s266 + $0x48] sm:$0xff]
      %v2098 = vld [vmem:[%s266 + $0x50] sm:$0xff]
      %v2099 = vld [vmem:[%s266 + $0x58] sm:$0xff]
      %v2100 = vld [vmem:[%s266 + $0x60] sm:$0xff]
      %v2101 = vld [vmem:[%s266 + $0x68] sm:$0xff]
      %v2102 = vld [vmem:[%s266 + $0x70] sm:$0xff]
      %v2103 = vld [vmem:[%s266 + $0x78] sm:$0xff]
      %v2104 = vld [vmem:[%s266 + $0x80] sm:$0xff]
      %v2105 = vld [vmem:[%s266 + $0x88] sm:$0xff]
      %v2106 = vld [vmem:[%s266 + $0x90] sm:$0xff]
      %v2107 = vld [vmem:[%s266 + $0x98] sm:$0xff]
      %v2108 = vld [vmem:[%s266 + $0xa0] sm:$0xff]
      %v2109 = vld [vmem:[%s266 + $0xa8] sm:$0xff]
      %v2110 = vld [vmem:[%s266 + $0xb0] sm:$0xff]
      %v2111 = vld [vmem:[%s266 + $0xb8] sm:$0xff]
      %v2112 = vld [vmem:[%s266 + $0xc0] sm:$0xff]
      %v2113 = vld [vmem:[%s266 + $0xc8] sm:$0xff]
      %v2114 = vld [vmem:[%s266 + $0xd0] sm:$0xff]
      %v2115 = vld [vmem:[%s266 + $0xd8] sm:$0xff]
      %v2116 = vld [vmem:[%s266 + $0xe0] sm:$0xff]
      %v2117 = vld [vmem:[%s266 + $0xe8] sm:$0xff]
      %v2118 = vld [vmem:[%s266 + $0xf0] sm:$0xff]
      %v2119 = vld [vmem:[%s266 + $0xf8] sm:$0xff]
      %v2120 = vld [vmem:[%s5] sm:$0xf]
      %vm2121 = vcmask 31744
      %v2123 = vsel %vm2121, %v2088, 0
      %v2126 = vsel %vm2121, %v2089, 0
      %v2129 = vsel %vm2121, %v2090, 0
      %v2132 = vsel %vm2121, %v2091, 0
      %v2135 = vsel %vm2121, %v2092, 0
      %v2138 = vsel %vm2121, %v2093, 0
      %v2141 = vsel %vm2121, %v2094, 0
      %v2144 = vsel %vm2121, %v2095, 0
      %v2147 = vsel %vm2121, %v2096, 0
      %v2150 = vsel %vm2121, %v2097, 0
      %v2153 = vsel %vm2121, %v2098, 0
      %v2156 = vsel %vm2121, %v2099, 0
      %v2159 = vsel %vm2121, %v2100, 0
      %v2162 = vsel %vm2121, %v2101, 0
      %v2165 = vsel %vm2121, %v2102, 0
      %v2168 = vsel %vm2121, %v2103, 0
      %v2171 = vsel %vm2121, %v2104, 0
      %v2174 = vsel %vm2121, %v2105, 0
      %v2177 = vsel %vm2121, %v2106, 0
      %v2180 = vsel %vm2121, %v2107, 0
      %v2183 = vsel %vm2121, %v2108, 0
      %v2186 = vsel %vm2121, %v2109, 0
      %v2189 = vsel %vm2121, %v2110, 0
      %v2192 = vsel %vm2121, %v2111, 0
      %v2195 = vsel %vm2121, %v2112, 0
      %v2198 = vsel %vm2121, %v2113, 0
      %v2201 = vsel %vm2121, %v2114, 0
      %v2204 = vsel %vm2121, %v2115, 0
      %v2207 = vsel %vm2121, %v2116, 0
      %v2210 = vsel %vm2121, %v2117, 0
      %v2213 = vsel %vm2121, %v2118, 0
      %v2216 = vsel %vm2121, %v2119, 0
      %vm2218 = vcmask 1043456
      %v2220 = vsel %vm2218, %v2120, 0
      %2222 = vmatprep.subr.mxu0 0.0
      %2223 = vmatpush1.msra.mxu0 0.0
      %2224 = vmatprep.subr.mxu0 0.0
      %2225 = vmatpush1.msra.mxu0 0.0
      %2226 = vmatprep.subr.mxu0 0.0
      %2227 = vmatpush1.msra.mxu0 0.0
      %2228 = vmatprep.subr.mxu0 0.0
      %2229 = vmatpush1.msra.mxu0 0.0
      %2230 = vmatprep.subr.mxu0 0.0
      %2231 = vmatpush1.msra.mxu0 0.0
      %2232 = vmatprep.subr.mxu0 0.0
      %2233 = vmatpush1.msra.mxu0 0.0
      %2234 = vmatprep.subr.mxu0 0.0
      %2235 = vmatpush1.msra.mxu0 0.0
      %2236 = vmatprep.subr.mxu0 0.0
      %2237 = vmatpush1.msra.mxu0 0.0
      %2238 = vmatprep.subr.mxu0 0.0
      %2239 = vmatpush1.msra.mxu0 0.0
      %2240 = vmatprep.subr.mxu0 0.0
      %2241 = vmatpush1.msra.mxu0 0.0
      %2242 = vmatprep.subr.mxu0 0.0
      %2243 = vmatpush1.msra.mxu0 0.0
      %2244 = vmatprep.subr.mxu0 0.0
      %2245 = vmatpush1.msra.mxu0 0.0
      %2246 = vmatprep.subr.mxu0 0.0
      %2247 = vmatpush1.msra.mxu0 0.0
      %2248 = vmatprep.subr.mxu0 0.0
      %2249 = vmatpush1.msra.mxu0 0.0
      %2250 = vmatprep.subr.mxu0 0.0
      %2251 = vmatpush1.msra.mxu0 0.0
      %2252 = vmatprep.subr.mxu0 0.0
      %2253 = vmatpush1.msra.mxu0 %v2220
      %2254 = vmatprep.subr.mxu0 0.0
      %2255 = vmatpush2.msra.mxu0 0.0
      %2256 = vmatprep.subr.mxu0 0.0
      %2257 = vmatpush2.msra.mxu0 0.0
      %2258 = vmatprep.subr.mxu0 0.0
      %2259 = vmatpush2.msra.mxu0 0.0
      %2260 = vmatprep.subr.mxu0 0.0
      %2261 = vmatpush2.msra.mxu0 0.0
      %2262 = vmatprep.subr.mxu0 0.0
      %2263 = vmatpush2.msra.mxu0 0.0
      %2264 = vmatprep.subr.mxu0 0.0
      %2265 = vmatpush2.msra.mxu0 0.0
      %2266 = vmatprep.subr.mxu0 0.0
      %2267 = vmatpush2.msra.mxu0 0.0
      %2268 = vmatprep.subr.mxu0 0.0
      %2269 = vmatpush2.msra.mxu0 0.0
      %2270 = vmatprep.subr.mxu0 0.0
      %2271 = vmatpush2.msra.mxu0 0.0
      %2272 = vmatprep.subr.mxu0 0.0
      %2273 = vmatpush2.msra.mxu0 0.0
      %2274 = vmatprep.subr.mxu0 0.0
      %2275 = vmatpush2.msra.mxu0 0.0
      %2276 = vmatprep.subr.mxu0 0.0
      %2277 = vmatpush2.msra.mxu0 0.0
      %2278 = vmatprep.subr.mxu0 0.0
      %2279 = vmatpush2.msra.mxu0 0.0
      %2280 = vmatprep.subr.mxu0 0.0
      %2281 = vmatpush2.msra.mxu0 0.0
      %2282 = vmatprep.subr.mxu0 0.0
      %2283 = vmatpush2.msra.mxu0 0.0
      %2284 = vmatprep.subr.mxu0 0.0
      %2285 = vmatpush2.msra.mxu0 0.0
      %2286 = vmatprep.mubr.f32.mxu0 0.0
      %2287 = vmatmul.mubr.f32.gmra.mxu0 %v2123
      %v2288 = vpop.f32.mrf.mxu0
      %v2289 = vadd.f32 0.0, %v2288
      %v2290 = vpop.f32.mrf.mxu0
      %2291 = vmatprep.mubr.f32.mxu0 0.0
      %2292 = vmatmul.mubr.f32.gmra.mxu0 %v2126
      %v2293 = vpop.f32.mrf.mxu0
      %v2294 = vadd.f32 0.0, %v2293
      %v2295 = vpop.f32.mrf.mxu0
      %2296 = vmatprep.mubr.f32.mxu0 0.0
      %2297 = vmatmul.mubr.f32.gmra.mxu0 %v2129
      %v2298 = vpop.f32.mrf.mxu0
      %v2299 = vadd.f32 0.0, %v2298
      %v2300 = vpop.f32.mrf.mxu0
      %2301 = vmatprep.mubr.f32.mxu0 0.0
      %2302 = vmatmul.mubr.f32.gmra.mxu0 %v2132
      %v2303 = vpop.f32.mrf.mxu0
      %v2304 = vadd.f32 0.0, %v2303
      %v2305 = vpop.f32.mrf.mxu0
      %2306 = vmatprep.mubr.f32.mxu0 0.0
      %2307 = vmatmul.mubr.f32.gmra.mxu0 %v2135
      %v2308 = vpop.f32.mrf.mxu0
      %v2309 = vadd.f32 0.0, %v2308
      %v2310 = vpop.f32.mrf.mxu0
      %2311 = vmatprep.mubr.f32.mxu0 0.0
      %2312 = vmatmul.mubr.f32.gmra.mxu0 %v2138
      %v2313 = vpop.f32.mrf.mxu0
      %v2314 = vadd.f32 0.0, %v2313
      %v2315 = vpop.f32.mrf.mxu0
      %2316 = vmatprep.mubr.f32.mxu0 0.0
      %2317 = vmatmul.mubr.f32.gmra.mxu0 %v2141
      %v2318 = vpop.f32.mrf.mxu0
      %v2319 = vadd.f32 0.0, %v2318
      %v2320 = vpop.f32.mrf.mxu0
      %2321 = vmatprep.mubr.f32.mxu0 0.0
      %2322 = vmatmul.mubr.f32.gmra.mxu0 %v2144
      %v2323 = vpop.f32.mrf.mxu0
      %v2324 = vadd.f32 0.0, %v2323
      %v2325 = vpop.f32.mrf.mxu0
      %2326 = vmatprep.mubr.f32.mxu0 0.0
      %2327 = vmatmul.mubr.f32.gmra.mxu0 %v2147
      %v2328 = vpop.f32.mrf.mxu0
      %v2329 = vadd.f32 0.0, %v2328
      %v2330 = vpop.f32.mrf.mxu0
      %2331 = vmatprep.mubr.f32.mxu0 0.0
      %2332 = vmatmul.mubr.f32.gmra.mxu0 %v2150
      %v2333 = vpop.f32.mrf.mxu0
      %v2334 = vadd.f32 0.0, %v2333
      %v2335 = vpop.f32.mrf.mxu0
      %2336 = vmatprep.mubr.f32.mxu0 0.0
      %2337 = vmatmul.mubr.f32.gmra.mxu0 %v2153
      %v2338 = vpop.f32.mrf.mxu0
      %v2339 = vadd.f32 0.0, %v2338
      %v2340 = vpop.f32.mrf.mxu0
      %2341 = vmatprep.mubr.f32.mxu0 0.0
      %2342 = vmatmul.mubr.f32.gmra.mxu0 %v2156
      %v2343 = vpop.f32.mrf.mxu0
      %v2344 = vadd.f32 0.0, %v2343
      %v2345 = vpop.f32.mrf.mxu0
      %2346 = vmatprep.mubr.f32.mxu0 0.0
      %2347 = vmatmul.mubr.f32.gmra.mxu0 %v2159
      %v2348 = vpop.f32.mrf.mxu0
      %v2349 = vadd.f32 0.0, %v2348
      %v2350 = vpop.f32.mrf.mxu0
      %2351 = vmatprep.mubr.f32.mxu0 0.0
      %2352 = vmatmul.mubr.f32.gmra.mxu0 %v2162
      %v2353 = vpop.f32.mrf.mxu0
      %v2354 = vadd.f32 0.0, %v2353
      %v2355 = vpop.f32.mrf.mxu0
      %2356 = vmatprep.mubr.f32.mxu0 0.0
      %2357 = vmatmul.mubr.f32.gmra.mxu0 %v2165
      %v2358 = vpop.f32.mrf.mxu0
      %v2359 = vadd.f32 0.0, %v2358
      %v2360 = vpop.f32.mrf.mxu0
      %2361 = vmatprep.mubr.f32.mxu0 0.0
      %2362 = vmatmul.mubr.f32.gmra.mxu0 %v2168
      %v2363 = vpop.f32.mrf.mxu0
      %v2364 = vadd.f32 0.0, %v2363
      %v2365 = vpop.f32.mrf.mxu0
      %2366 = vmatprep.mubr.f32.mxu0 0.0
      %2367 = vmatmul.mubr.f32.gmra.mxu0 %v2171
      %v2368 = vpop.f32.mrf.mxu0
      %v2369 = vadd.f32 0.0, %v2368
      %v2370 = vpop.f32.mrf.mxu0
      %2371 = vmatprep.mubr.f32.mxu0 0.0
      %2372 = vmatmul.mubr.f32.gmra.mxu0 %v2174
      %v2373 = vpop.f32.mrf.mxu0
      %v2374 = vadd.f32 0.0, %v2373
      %v2375 = vpop.f32.mrf.mxu0
      %2376 = vmatprep.mubr.f32.mxu0 0.0
      %2377 = vmatmul.mubr.f32.gmra.mxu0 %v2177
      %v2378 = vpop.f32.mrf.mxu0
      %v2379 = vadd.f32 0.0, %v2378
      %v2380 = vpop.f32.mrf.mxu0
      %2381 = vmatprep.mubr.f32.mxu0 0.0
      %2382 = vmatmul.mubr.f32.gmra.mxu0 %v2180
      %v2383 = vpop.f32.mrf.mxu0
      %v2384 = vadd.f32 0.0, %v2383
      %v2385 = vpop.f32.mrf.mxu0
      %2386 = vmatprep.mubr.f32.mxu0 0.0
      %2387 = vmatmul.mubr.f32.gmra.mxu0 %v2183
      %v2388 = vpop.f32.mrf.mxu0
      %v2389 = vadd.f32 0.0, %v2388
      %v2390 = vpop.f32.mrf.mxu0
      %2391 = vmatprep.mubr.f32.mxu0 0.0
      %2392 = vmatmul.mubr.f32.gmra.mxu0 %v2186
      %v2393 = vpop.f32.mrf.mxu0
      %v2394 = vadd.f32 0.0, %v2393
      %v2395 = vpop.f32.mrf.mxu0
      %2396 = vmatprep.mubr.f32.mxu0 0.0
      %2397 = vmatmul.mubr.f32.gmra.mxu0 %v2189
      %v2398 = vpop.f32.mrf.mxu0
      %v2399 = vadd.f32 0.0, %v2398
      %v2400 = vpop.f32.mrf.mxu0
      %2401 = vmatprep.mubr.f32.mxu0 0.0
      %2402 = vmatmul.mubr.f32.gmra.mxu0 %v2192
      %v2403 = vpop.f32.mrf.mxu0
      %v2404 = vadd.f32 0.0, %v2403
      %v2405 = vpop.f32.mrf.mxu0
      %2406 = vmatprep.mubr.f32.mxu0 0.0
      %2407 = vmatmul.mubr.f32.gmra.mxu0 %v2195
      %v2408 = vpop.f32.mrf.mxu0
      %v2409 = vadd.f32 0.0, %v2408
      %v2410 = vpop.f32.mrf.mxu0
      %2411 = vmatprep.mubr.f32.mxu0 0.0
      %2412 = vmatmul.mubr.f32.gmra.mxu0 %v2198
      %v2413 = vpop.f32.mrf.mxu0
      %v2414 = vadd.f32 0.0, %v2413
      %v2415 = vpop.f32.mrf.mxu0
      %2416 = vmatprep.mubr.f32.mxu0 0.0
      %2417 = vmatmul.mubr.f32.gmra.mxu0 %v2201
      %v2418 = vpop.f32.mrf.mxu0
      %v2419 = vadd.f32 0.0, %v2418
      %v2420 = vpop.f32.mrf.mxu0
      %2421 = vmatprep.mubr.f32.mxu0 0.0
      %2422 = vmatmul.mubr.f32.gmra.mxu0 %v2204
      %v2423 = vpop.f32.mrf.mxu0
      %v2424 = vadd.f32 0.0, %v2423
      %v2425 = vpop.f32.mrf.mxu0
      %2426 = vmatprep.mubr.f32.mxu0 0.0
      %2427 = vmatmul.mubr.f32.gmra.mxu0 %v2207
      %v2428 = vpop.f32.mrf.mxu0
      %v2429 = vadd.f32 0.0, %v2428
      %v2430 = vpop.f32.mrf.mxu0
      %2431 = vmatprep.mubr.f32.mxu0 0.0
      %2432 = vmatmul.mubr.f32.gmra.mxu0 %v2210
      %v2433 = vpop.f32.mrf.mxu0
      %v2434 = vadd.f32 0.0, %v2433
      %v2435 = vpop.f32.mrf.mxu0
      %2436 = vmatprep.mubr.f32.mxu0 0.0
      %2437 = vmatmul.mubr.f32.gmra.mxu0 %v2213
      %v2438 = vpop.f32.mrf.mxu0
      %v2439 = vadd.f32 0.0, %v2438
      %v2440 = vpop.f32.mrf.mxu0
      %2441 = vmatprep.mubr.f32.mxu0 0.0
      %2442 = vmatmul.mubr.f32.gmra.mxu0 %v2216
      %v2443 = vpop.f32.mrf.mxu0
      %v2444 = vadd.f32 0.0, %v2443
      %v2445 = vpop.f32.mrf.mxu0
      %2446 = vdwg.mxu0
      %vm2447 = vcmask 588800
      %v2449 = vsel %vm2447, %v2047, 0
      %v2452 = vsel %vm2447, %v2048, 0
      %v2455 = vsel %vm2447, %v2049, 0
      %v2458 = vsel %vm2447, %v2050, 0
      %v2461 = vsel %vm2447, %v2051, 0
      %v2464 = vsel %vm2447, %v2052, 0
      %v2467 = vsel %vm2447, %v2053, 0
      %v2470 = vsel %vm2447, %v2054, 0
      %v2473 = vsel %vm2447, %v2055, 0
      %v2476 = vsel %vm2447, %v2056, 0
      %v2479 = vsel %vm2447, %v2057, 0
      %v2482 = vsel %vm2447, %v2058, 0
      %v2485 = vsel %vm2447, %v2059, 0
      %v2488 = vsel %vm2447, %v2060, 0
      %v2491 = vsel %vm2447, %v2061, 0
      %v2494 = vsel %vm2447, %v2062, 0
      %v2497 = vsel %vm2447, %v2063, 0
      %v2500 = vsel %vm2447, %v2064, 0
      %v2503 = vsel %vm2447, %v2065, 0
      %v2506 = vsel %vm2447, %v2066, 0
      %v2509 = vsel %vm2447, %v2067, 0
      %v2512 = vsel %vm2447, %v2068, 0
      %v2515 = vsel %vm2447, %v2069, 0
      %v2518 = vsel %vm2447, %v2070, 0
      %v2521 = vsel %vm2447, %v2071, 0
      %v2524 = vsel %vm2447, %v2072, 0
      %v2527 = vsel %vm2447, %v2073, 0
      %v2530 = vsel %vm2447, %v2074, 0
      %v2533 = vsel %vm2447, %v2075, 0
      %v2536 = vsel %vm2447, %v2076, 0
      %v2539 = vsel %vm2447, %v2077, 0
      %v2542 = vsel %vm2447, %v2078, 0
      %2544 = vmatprep.subr.mxu0 0.0
      %2545 = vmatpush1.msra.mxu0 0.0
      %2546 = vmatprep.subr.mxu0 0.0
      %2547 = vmatpush1.msra.mxu0 0.0
      %2548 = vmatprep.subr.mxu0 0.0
      %2549 = vmatpush1.msra.mxu0 0.0
      %2550 = vmatprep.subr.mxu0 0.0
      %2551 = vmatpush1.msra.mxu0 0.0
      %2552 = vmatprep.subr.mxu0 0.0
      %2553 = vmatpush1.msra.mxu0 0.0
      %2554 = vmatprep.subr.mxu0 0.0
      %2555 = vmatpush1.msra.mxu0 0.0
      %2556 = vmatprep.subr.mxu0 0.0
      %2557 = vmatpush1.msra.mxu0 0.0
      %2558 = vmatprep.subr.mxu0 0.0
      %2559 = vmatpush1.msra.mxu0 %v2087
      %2560 = vmatprep.subr.mxu0 0.0
      %2561 = vmatpush1.msra.mxu0 %v2086
      %2562 = vmatprep.subr.mxu0 0.0
      %2563 = vmatpush1.msra.mxu0 %v2085
      %2564 = vmatprep.subr.mxu0 0.0
      %2565 = vmatpush1.msra.mxu0 %v2084
      %2566 = vmatprep.subr.mxu0 0.0
      %2567 = vmatpush1.msra.mxu0 %v2083
      %2568 = vmatprep.subr.mxu0 0.0
      %2569 = vmatpush1.msra.mxu0 %v2082
      %2570 = vmatprep.subr.mxu0 0.0
      %2571 = vmatpush1.msra.mxu0 %v2081
      %2572 = vmatprep.subr.mxu0 0.0
      %2573 = vmatpush1.msra.mxu0 %v2080
      %2574 = vmatprep.subr.mxu0 0.0
      %2575 = vmatpush1.msra.mxu0 %v2079
      %2576 = vmatprep.subr.mxu0 0.0
      %2577 = vmatpush2.msra.mxu0 0.0
      %2578 = vmatprep.subr.mxu0 0.0
      %2579 = vmatpush2.msra.mxu0 0.0
      %2580 = vmatprep.subr.mxu0 0.0
      %2581 = vmatpush2.msra.mxu0 0.0
      %2582 = vmatprep.subr.mxu0 0.0
      %2583 = vmatpush2.msra.mxu0 0.0
      %2584 = vmatprep.subr.mxu0 0.0
      %2585 = vmatpush2.msra.mxu0 0.0
      %2586 = vmatprep.subr.mxu0 0.0
      %2587 = vmatpush2.msra.mxu0 0.0
      %2588 = vmatprep.subr.mxu0 0.0
      %2589 = vmatpush2.msra.mxu0 0.0
      %2590 = vmatprep.subr.mxu0 0.0
      %2591 = vmatpush2.msra.mxu0 0.0
      %2592 = vmatprep.subr.mxu0 0.0
      %2593 = vmatpush2.msra.mxu0 0.0
      %2594 = vmatprep.subr.mxu0 0.0
      %2595 = vmatpush2.msra.mxu0 0.0
      %2596 = vmatprep.subr.mxu0 0.0
      %2597 = vmatpush2.msra.mxu0 0.0
      %2598 = vmatprep.subr.mxu0 0.0
      %2599 = vmatpush2.msra.mxu0 0.0
      %2600 = vmatprep.subr.mxu0 0.0
      %2601 = vmatpush2.msra.mxu0 0.0
      %2602 = vmatprep.subr.mxu0 0.0
      %2603 = vmatpush2.msra.mxu0 0.0
      %2604 = vmatprep.subr.mxu0 0.0
      %2605 = vmatpush2.msra.mxu0 0.0
      %2606 = vmatprep.subr.mxu0 0.0
      %2607 = vmatpush2.msra.mxu0 0.0
      %2608 = vmatprep.mubr.f32.mxu0 0.0
      %2609 = vmatmul.mubr.f32.gmra.mxu0 %v2449
      %v2610 = vpop.f32.mrf.mxu0
      %v2611 = vadd.f32 %v2289, %v2610
      %v2612 = vpop.f32.mrf.mxu0
      %2613 = vmatprep.mubr.f32.mxu0 0.0
      %2614 = vmatmul.mubr.f32.gmra.mxu0 %v2452
      %v2615 = vpop.f32.mrf.mxu0
      %v2616 = vadd.f32 %v2294, %v2615
      %v2617 = vpop.f32.mrf.mxu0
      %2618 = vmatprep.mubr.f32.mxu0 0.0
      %2619 = vmatmul.mubr.f32.gmra.mxu0 %v2455
      %v2620 = vpop.f32.mrf.mxu0
      %v2621 = vadd.f32 %v2299, %v2620
      %v2622 = vpop.f32.mrf.mxu0
      %2623 = vmatprep.mubr.f32.mxu0 0.0
      %2624 = vmatmul.mubr.f32.gmra.mxu0 %v2458
      %v2625 = vpop.f32.mrf.mxu0
      %v2626 = vadd.f32 %v2304, %v2625
      %v2627 = vpop.f32.mrf.mxu0
      %2628 = vmatprep.mubr.f32.mxu0 0.0
      %2629 = vmatmul.mubr.f32.gmra.mxu0 %v2461
      %v2630 = vpop.f32.mrf.mxu0
      %v2631 = vadd.f32 %v2309, %v2630
      %v2632 = vpop.f32.mrf.mxu0
      %2633 = vmatprep.mubr.f32.mxu0 0.0
      %2634 = vmatmul.mubr.f32.gmra.mxu0 %v2464
      %v2635 = vpop.f32.mrf.mxu0
      %v2636 = vadd.f32 %v2314, %v2635
      %v2637 = vpop.f32.mrf.mxu0
      %2638 = vmatprep.mubr.f32.mxu0 0.0
      %2639 = vmatmul.mubr.f32.gmra.mxu0 %v2467
      %v2640 = vpop.f32.mrf.mxu0
      %v2641 = vadd.f32 %v2319, %v2640
      %v2642 = vpop.f32.mrf.mxu0
      %2643 = vmatprep.mubr.f32.mxu0 0.0
      %2644 = vmatmul.mubr.f32.gmra.mxu0 %v2470
      %v2645 = vpop.f32.mrf.mxu0
      %v2646 = vadd.f32 %v2324, %v2645
      %v2647 = vpop.f32.mrf.mxu0
      %2648 = vmatprep.mubr.f32.mxu0 0.0
      %2649 = vmatmul.mubr.f32.gmra.mxu0 %v2473
      %v2650 = vpop.f32.mrf.mxu0
      %v2651 = vadd.f32 %v2329, %v2650
      %v2652 = vpop.f32.mrf.mxu0
      %2653 = vmatprep.mubr.f32.mxu0 0.0
      %2654 = vmatmul.mubr.f32.gmra.mxu0 %v2476
      %v2655 = vpop.f32.mrf.mxu0
      %v2656 = vadd.f32 %v2334, %v2655
      %v2657 = vpop.f32.mrf.mxu0
      %2658 = vmatprep.mubr.f32.mxu0 0.0
      %2659 = vmatmul.mubr.f32.gmra.mxu0 %v2479
      %v2660 = vpop.f32.mrf.mxu0
      %v2661 = vadd.f32 %v2339, %v2660
      %v2662 = vpop.f32.mrf.mxu0
      %2663 = vmatprep.mubr.f32.mxu0 0.0
      %2664 = vmatmul.mubr.f32.gmra.mxu0 %v2482
      %v2665 = vpop.f32.mrf.mxu0
      %v2666 = vadd.f32 %v2344, %v2665
      %v2667 = vpop.f32.mrf.mxu0
      %2668 = vmatprep.mubr.f32.mxu0 0.0
      %2669 = vmatmul.mubr.f32.gmra.mxu0 %v2485
      %v2670 = vpop.f32.mrf.mxu0
      %v2671 = vadd.f32 %v2349, %v2670
      %v2672 = vpop.f32.mrf.mxu0
      %2673 = vmatprep.mubr.f32.mxu0 0.0
      %2674 = vmatmul.mubr.f32.gmra.mxu0 %v2488
      %v2675 = vpop.f32.mrf.mxu0
      %v2676 = vadd.f32 %v2354, %v2675
      %v2677 = vpop.f32.mrf.mxu0
      %2678 = vmatprep.mubr.f32.mxu0 0.0
      %2679 = vmatmul.mubr.f32.gmra.mxu0 %v2491
      %v2680 = vpop.f32.mrf.mxu0
      %v2681 = vadd.f32 %v2359, %v2680
      %v2682 = vpop.f32.mrf.mxu0
      %2683 = vmatprep.mubr.f32.mxu0 0.0
      %2684 = vmatmul.mubr.f32.gmra.mxu0 %v2494
      %v2685 = vpop.f32.mrf.mxu0
      %v2686 = vadd.f32 %v2364, %v2685
      %v2687 = vpop.f32.mrf.mxu0
      %2688 = vmatprep.mubr.f32.mxu0 0.0
      %2689 = vmatmul.mubr.f32.gmra.mxu0 %v2497
      %v2690 = vpop.f32.mrf.mxu0
      %v2691 = vadd.f32 %v2369, %v2690
      %v2692 = vpop.f32.mrf.mxu0
      %2693 = vmatprep.mubr.f32.mxu0 0.0
      %2694 = vmatmul.mubr.f32.gmra.mxu0 %v2500
      %v2695 = vpop.f32.mrf.mxu0
      %v2696 = vadd.f32 %v2374, %v2695
      %v2697 = vpop.f32.mrf.mxu0
      %2698 = vmatprep.mubr.f32.mxu0 0.0
      %2699 = vmatmul.mubr.f32.gmra.mxu0 %v2503
      %v2700 = vpop.f32.mrf.mxu0
      %v2701 = vadd.f32 %v2379, %v2700
      %v2702 = vpop.f32.mrf.mxu0
      %2703 = vmatprep.mubr.f32.mxu0 0.0
      %2704 = vmatmul.mubr.f32.gmra.mxu0 %v2506
      %v2705 = vpop.f32.mrf.mxu0
      %v2706 = vadd.f32 %v2384, %v2705
      %v2707 = vpop.f32.mrf.mxu0
      %2708 = vmatprep.mubr.f32.mxu0 0.0
      %2709 = vmatmul.mubr.f32.gmra.mxu0 %v2509
      %v2710 = vpop.f32.mrf.mxu0
      %v2711 = vadd.f32 %v2389, %v2710
      %v2712 = vpop.f32.mrf.mxu0
      %2713 = vmatprep.mubr.f32.mxu0 0.0
      %2714 = vmatmul.mubr.f32.gmra.mxu0 %v2512
      %v2715 = vpop.f32.mrf.mxu0
      %v2716 = vadd.f32 %v2394, %v2715
      %v2717 = vpop.f32.mrf.mxu0
      %2718 = vmatprep.mubr.f32.mxu0 0.0
      %2719 = vmatmul.mubr.f32.gmra.mxu0 %v2515
      %v2720 = vpop.f32.mrf.mxu0
      %v2721 = vadd.f32 %v2399, %v2720
      %v2722 = vpop.f32.mrf.mxu0
      %2723 = vmatprep.mubr.f32.mxu0 0.0
      %2724 = vmatmul.mubr.f32.gmra.mxu0 %v2518
      %v2725 = vpop.f32.mrf.mxu0
      %v2726 = vadd.f32 %v2404, %v2725
      %v2727 = vpop.f32.mrf.mxu0
      %2728 = vmatprep.mubr.f32.mxu0 0.0
      %2729 = vmatmul.mubr.f32.gmra.mxu0 %v2521
      %v2730 = vpop.f32.mrf.mxu0
      %v2731 = vadd.f32 %v2409, %v2730
      %v2732 = vpop.f32.mrf.mxu0
      %2733 = vmatprep.mubr.f32.mxu0 0.0
      %2734 = vmatmul.mubr.f32.gmra.mxu0 %v2524
      %v2735 = vpop.f32.mrf.mxu0
      %v2736 = vadd.f32 %v2414, %v2735
      %v2737 = vpop.f32.mrf.mxu0
      %2738 = vmatprep.mubr.f32.mxu0 0.0
      %2739 = vmatmul.mubr.f32.gmra.mxu0 %v2527
      %v2740 = vpop.f32.mrf.mxu0
      %v2741 = vadd.f32 %v2419, %v2740
      %v2742 = vpop.f32.mrf.mxu0
      %2743 = vmatprep.mubr.f32.mxu0 0.0
      %2744 = vmatmul.mubr.f32.gmra.mxu0 %v2530
      %v2745 = vpop.f32.mrf.mxu0
      %v2746 = vadd.f32 %v2424, %v2745
      %v2747 = vpop.f32.mrf.mxu0
      %2748 = vmatprep.mubr.f32.mxu0 0.0
      %2749 = vmatmul.mubr.f32.gmra.mxu0 %v2533
      %v2750 = vpop.f32.mrf.mxu0
      %v2751 = vadd.f32 %v2429, %v2750
      %v2752 = vpop.f32.mrf.mxu0
      %2753 = vmatprep.mubr.f32.mxu0 0.0
      %2754 = vmatmul.mubr.f32.gmra.mxu0 %v2536
      %v2755 = vpop.f32.mrf.mxu0
      %v2756 = vadd.f32 %v2434, %v2755
      %v2757 = vpop.f32.mrf.mxu0
      %2758 = vmatprep.mubr.f32.mxu0 0.0
      %2759 = vmatmul.mubr.f32.gmra.mxu0 %v2539
      %v2760 = vpop.f32.mrf.mxu0
      %v2761 = vadd.f32 %v2439, %v2760
      %v2762 = vpop.f32.mrf.mxu0
      %2763 = vmatprep.mubr.f32.mxu0 0.0
      %2764 = vmatmul.mubr.f32.gmra.mxu0 %v2542
      %v2765 = vpop.f32.mrf.mxu0
      %v2766 = vadd.f32 %v2444, %v2765
      %v2767 = vpop.f32.mrf.mxu0
      %2768 = vdwg.mxu0
      %2769 = vst.msk [vmem:[%s271] sm:$0xff] %vm414, %v2611
      %2770 = vst.msk [vmem:[%s271 + $0x8] sm:$0xff] %vm414, %v2616
      %2771 = vst.msk [vmem:[%s271 + $0x10] sm:$0xff] %vm414, %v2621
      %2772 = vst.msk [vmem:[%s271 + $0x18] sm:$0xff] %vm414, %v2626
      %2773 = vst.msk [vmem:[%s271 + $0x20] sm:$0xff] %vm414, %v2631
      %2774 = vst.msk [vmem:[%s271 + $0x28] sm:$0xff] %vm414, %v2636
      %2775 = vst.msk [vmem:[%s271 + $0x30] sm:$0xff] %vm414, %v2641
      %2776 = vst.msk [vmem:[%s271 + $0x38] sm:$0xff] %vm414, %v2646
      %2777 = vst.msk [vmem:[%s271 + $0x40] sm:$0xff] %vm414, %v2651
      %2778 = vst.msk [vmem:[%s271 + $0x48] sm:$0xff] %vm414, %v2656
      %2779 = vst.msk [vmem:[%s271 + $0x50] sm:$0xff] %vm414, %v2661
      %2780 = vst.msk [vmem:[%s271 + $0x58] sm:$0xff] %vm414, %v2666
      %2781 = vst.msk [vmem:[%s271 + $0x60] sm:$0xff] %vm414, %v2671
      %2782 = vst.msk [vmem:[%s271 + $0x68] sm:$0xff] %vm414, %v2676
      %2783 = vst.msk [vmem:[%s271 + $0x70] sm:$0xff] %vm414, %v2681
      %2784 = vst.msk [vmem:[%s271 + $0x78] sm:$0xff] %vm414, %v2686
      %2785 = vst.msk [vmem:[%s271 + $0x80] sm:$0xff] %vm414, %v2691
      %2786 = vst.msk [vmem:[%s271 + $0x88] sm:$0xff] %vm414, %v2696
      %2787 = vst.msk [vmem:[%s271 + $0x90] sm:$0xff] %vm414, %v2701
      %2788 = vst.msk [vmem:[%s271 + $0x98] sm:$0xff] %vm414, %v2706
      %2789 = vst.msk [vmem:[%s271 + $0xa0] sm:$0xff] %vm414, %v2711
      %2790 = vst.msk [vmem:[%s271 + $0xa8] sm:$0xff] %vm414, %v2716
      %2791 = vst.msk [vmem:[%s271 + $0xb0] sm:$0xff] %vm414, %v2721
      %2792 = vst.msk [vmem:[%s271 + $0xb8] sm:$0xff] %vm414, %v2726
      %2793 = vst.msk [vmem:[%s271 + $0xc0] sm:$0xff] %vm414, %v2731
      %2794 = vst.msk [vmem:[%s271 + $0xc8] sm:$0xff] %vm414, %v2736
      %2795 = vst.msk [vmem:[%s271 + $0xd0] sm:$0xff] %vm414, %v2741
      %2796 = vst.msk [vmem:[%s271 + $0xd8] sm:$0xff] %vm414, %v2746
      %2797 = vst.msk [vmem:[%s271 + $0xe0] sm:$0xff] %vm414, %v2751
      %2798 = vst.msk [vmem:[%s271 + $0xe8] sm:$0xff] %vm414, %v2756
      %2799 = vst.msk [vmem:[%s271 + $0xf0] sm:$0xff] %vm414, %v2761
      %2800 = vst.msk [vmem:[%s271 + $0xf8] sm:$0xff] %vm414, %v2766
      %p2801 = scmp.lt.s32.totalorder %s17, 1
      %s2802 = scalar_select %p2801, %s17, 1
      %s2803 = smul.addr %s2802, 32
      %s2804 = smul.addr %s2803, 8
      %s2805 = scalar_lea.vmem %s6, %s2804
      // Predicated region
      $region45: #{preact_block.5} parent=43 // pred_check
        %p2806 = pneg %p171
      $region46: #{preact_block.5} parent=43 // pred_check_branch
        %2808 = sbr.rel (%p2806) target = $region48
      $region47: #{preact_block.5} parent=43 // pred_region
        _
      $region48: #{preact_block.5} parent=43 // pred_fallthru
        _
    $region44: #{preact_block.5} parent=5 // pred_fallthru
      _
    %p2809 = scmp.le.s32.totalorder 2, %s12
    // Predicated region
    $region49: #{preact_block.5} parent=5 // pred_check
      %p2810 = pneg %p2809
    $region50: #{preact_block.5} parent=5 // pred_check_branch
      %2812 = sbr.rel (%p2810) target = $region52
    $region51: #{preact_block.5} parent=5 // pred_region
      %s2813 = ssub.s32 %s12, 2
      // Predicated region
      $region53: #{preact_block.5} parent=51 // pred_check
        %p2814 = pneg %p177
      $region54: #{preact_block.5} parent=51 // pred_check_branch
        %2816 = sbr.rel (%p2814) target = $region56
      $region55: #{preact_block.5} parent=51 // pred_region
        %p2817 = scmp.lt.s32.totalorder %s18, 1
        %s2818 = scalar_select %p2817, %s18, 1
        %s2819 = smul.addr %s2818, 32
        %s2820 = smul.addr %s2819, 8
        %s2821 = scalar_lea.vmem %s6, %s2820
      $region56: #{preact_block.5} parent=51 // pred_fallthru
        _
    $region52: #{preact_block.5} parent=5 // pred_fallthru
      _
  $region6: #{preact_block.5} parent=0 // loop_footer
    %s16 = sadd.s32 1, %s12
  $region7: #{preact_block.5} parent=0 // loop_footer_branch
    %11 = sbr.rel target = $region3
  $region8: #{preact_block.5} parent=0 // loop_exit
    _

</llo_original>
